<compile_context>
chip_gen: v7x
topology: tpu7x:2x2x1
jax: 0.10.0
libtpu: 0.0.40
codegen_flags: <defaults>
</compile_context>

<pallas_src>
import functools

import jax
import jax.numpy as jnp
import numpy as np
from jax.experimental import pallas as pl
from jax.experimental.pallas import tpu as pltpu


# ----------------------------------------------------------------------------
# Fused AOTBlock kernel (one grid step per batch element).
#
# Layout: "Q coordinates" = flat index h*Wp + w over the original H rows with
# the padded row stride Wp; columns w in [0, W) are valid, the rest are slack.
# Every conv tap of a rate-r, reflect-pad-r conv is then the contiguous slice
# of the flattened padded input starting at (r_max-r)*(Wp+1) + r*(kh*Wp+kw).
# ----------------------------------------------------------------------------
def _aot_block_kernel(xflat_ref, wb_ref, bb_ref, wf_ref, bf_ref, wg_ref, bg_ref,
                      o_ref, patch_ref, catf_ref, *,
                      H, W, C, Cb, Wp, rates, r_max, pad0, fuse_first):
    L = H * Wp                     # working length (valid + slack lanes)
    HW = H * W                     # number of valid pixels (gate statistics)
    n_b = len(rates)

    col = jax.lax.broadcasted_iota(jnp.int32, (1, L), 1) % Wp
    valid = col < W

    # -- im2col: 9 contiguous (C, L) slices of the flat padded input ----------
    def fill_patch(rate):
        base = (r_max - rate) * (Wp + 1)
        for kh in range(3):
            for kw in range(3):
                k = kh * 3 + kw
                s = base + rate * (kh * Wp + kw)
                patch_ref[k * C:(k + 1) * C, :] = (
                    xflat_ref[0, :, s:s + L].astype(patch_ref.dtype))

    def conv(w, b):                # (Cout, 9C) @ (9C, L) + (Cout, 1)
        return jnp.dot(w, patch_ref[...],
                       preferred_element_type=jnp.float32) + b

    # -- gate conv (rate 1), fused with the rate-1 branch when possible -------
    fill_patch(1)
    gb = conv(wg_ref[...], bg_ref[...])               # (C [+Cb], L) f32
    gated = gb[:C]

    # -- my_layer_norm(gate) -> sigmoid (stats over valid lanes only) ---------
    gsum = jnp.sum(jnp.where(valid, gated, 0.0), axis=1, keepdims=True)
    mean = gsum * (1.0 / HW)
    diff = gated - mean
    vsum = jnp.sum(jnp.where(valid, diff * diff, 0.0), axis=1, keepdims=True)
    std = jnp.sqrt(vsum * (1.0 / (HW - 1)))           # unbiased (ddof=1)
    inv_std = 1.0 / (std + 1e-9)                      # eps outside sqrt, as in ref
    feat = 5.0 * (2.0 * diff * inv_std - 1.0)
    mask = 0.5 * (jnp.tanh(0.5 * feat) + 1.0)         # sigmoid via EUP tanh

    # -- dilated branch convs + ReLU ------------------------------------------
    ys = []
    cur_rate = 1
    start = 0
    if fuse_first:                                    # rate-1 branch came with gate
        ys.append(jnp.maximum(gb[C:], 0.0))
        start = 1
    for i in range(start, n_b):
        r = rates[i]
        if r != cur_rate:
            fill_patch(r)
            cur_rate = r
        ys.append(jnp.maximum(conv(wb_ref[i], bb_ref[i]), 0.0))
    cat = jnp.concatenate(ys, axis=0)                 # (C, L) f32, single concat
    catv = cat.astype(catf_ref.dtype)

    # -- build the reflect-padded concat in catf (row stride Wp) --------------
    # Main block: rows 0..H-1 at lane offset pad0 (lane-aligned full store).
    catf_ref[:, pad0:pad0 + L] = catv
    # W-direction reflection slots inside the slack columns:
    #   col == W     <- cat[h, W-2]       (value 2 lanes to the left)
    #   col == Wp-1  <- cat[h+1, 1]       (value 2 lanes to the right)
    shift_m2 = catf_ref[:, pad0 - 2:pad0 - 2 + L]
    shift_p2 = catf_ref[:, pad0 + 2:pad0 + 2 + L]
    upd = jnp.where(col == W, shift_m2, catv)
    upd = jnp.where(col == Wp - 1, shift_p2, upd)
    catf_ref[:, pad0:pad0 + L] = upd
    # Left-reflection slot of row 0 sits one lane before the main block.
    catf_ref[:, pad0 - 1:pad0] = catf_ref[:, pad0 + 1:pad0 + 2]
    # H-direction reflection rows (row -1 := row 1, row H := row H-2),
    # copied together with their already-filled left/right edge slots.
    wchunk = W + 2
    catf_ref[:, pad0 - Wp - 1:pad0 - Wp - 1 + wchunk] = (
        catf_ref[:, pad0 + Wp - 1:pad0 + Wp - 1 + wchunk])
    catf_ref[:, pad0 + H * Wp - 1:pad0 + H * Wp - 1 + wchunk] = (
        catf_ref[:, pad0 + (H - 2) * Wp - 1:pad0 + (H - 2) * Wp - 1 + wchunk])

    # -- fuse conv (3x3, rate 1, reflect pad 1) on the concat ------------------
    for kh in range(3):
        for kw in range(3):
            k = kh * 3 + kw
            s = pad0 + (kh - 1) * Wp + (kw - 1)
            patch_ref[k * C:(k + 1) * C, :] = catf_ref[:, s:s + L]
    fused = conv(wf_ref[...], bf_ref[...])            # (C, L) f32

    # -- blend and store (full-lane, unmasked) ---------------------------------
    x_ctr = xflat_ref[0, :, r_max * (Wp + 1):r_max * (Wp + 1) + L]
    x_ctr = x_ctr.astype(jnp.float32)
    o_ref[0] = x_ctr * (1.0 - mask) + fused * mask


# ----------------------------------------------------------------------------
# Parameter init (PyTorch OIHW shapes) and forward wrapper.
# ----------------------------------------------------------------------------
def init_params(key, dim, rates):
    params = {}
    n_branches = len(rates)
    keys = jax.random.split(key, 2 * (n_branches + 2))
    ki = 0
    for i in range(n_branches):
        w = jax.random.normal(keys[ki], (dim // 4, dim, 3, 3),
                              jnp.float32) * 0.1
        b = jax.random.normal(keys[ki + 1], (dim // 4,), jnp.float32) * 0.1
        params[f"block{i:02d}"] = (w, b)
        ki += 2
    for name in ("fuse", "gate"):
        w = jax.random.normal(keys[ki], (dim, dim, 3, 3), jnp.float32) * 0.1
        b = jax.random.normal(keys[ki + 1], (dim,), jnp.float32) * 0.1
        params[name] = (w, b)
        ki += 2
    return params


def _flatten_conv_weight(w_oihw):
    # (Cout, Cin, 3, 3) -> (Cout, 3, 3, Cin) -> (Cout, 9*Cin); column index
    # (kh*3 + kw)*Cin + ci matches the kernel's im2col row order.
    cout, cin = w_oihw.shape[0], w_oihw.shape[1]
    return jnp.transpose(w_oihw, (0, 2, 3, 1)).reshape(cout, 9 * cin)


def aot_block_forward(x_nchw, params, rates, matmul_dtype=jnp.float32):
    """Fused Pallas implementation.  Input/output stay NCHW (PyTorch layout)."""
    x = x_nchw.astype(jnp.float32)
    N, C, H, W = x.shape
    n_b = len(rates)
    Cb = C // 4
    r_max = max(rates)
    assert n_b * Cb == C, "len(rates) * (dim // 4) must equal dim"
    assert H >= 3 and W >= 3 and r_max <= min(H, W) - 1
    if matmul_dtype == jnp.bfloat16:
        assert C % 2 == 0

    Hp, Wp = H + 2 * r_max, W + 2 * r_max
    L = H * Wp
    # Single reflection pad with the maximum rate, flattened so every conv tap
    # is a contiguous lane slice.  A 2*r_max zero tail keeps the largest tap's
    # full-length slice in bounds (those lanes only feed garbage columns).
    xpad = jnp.pad(x, ((0, 0), (0, 0), (r_max, r_max), (r_max, r_max)),
                   mode="reflect").reshape(N, C, Hp * Wp)
    xflat = jnp.pad(xpad, ((0, 0), (0, 0), (0, 2 * r_max)))
    Lflat = Hp * Wp + 2 * r_max

    wdt = matmul_dtype
    wb = jnp.stack([_flatten_conv_weight(params[f"block{i:02d}"][0])
                    for i in range(n_b)]).astype(wdt)             # (n_b, Cb, 9C)
    bb = jnp.stack([params[f"block{i:02d}"][1]
                    for i in range(n_b)])[:, :, None]             # (n_b, Cb, 1) f32
    wf = _flatten_conv_weight(params["fuse"][0]).astype(wdt)      # (C, 9C)
    bf = params["fuse"][1][:, None]                               # (C, 1)  f32
    wg = _flatten_conv_weight(params["gate"][0]).astype(wdt)      # (C, 9C)
    bg = params["gate"][1][:, None]                               # (C, 1)  f32

    # Gate conv + rate-1 branch conv share the same rate-1 im2col patch:
    # fuse them into one matmul by stacking along the output-channel dim.
    fuse_first = (rates[0] == 1)
    if fuse_first:
        wg = jnp.concatenate([wg, wb[0]], axis=0)                 # (C+Cb, 9C)
        bg = jnp.concatenate([bg, bb[0]], axis=0)                 # (C+Cb, 1)

    pad0 = ((Wp + 127) // 128) * 128      # lane-aligned start of cat main block
    cat_len = pad0 + (H + 2) * Wp

    kernel = functools.partial(
        _aot_block_kernel, H=H, W=W, C=C, Cb=Cb, Wp=Wp,
        rates=tuple(rates), r_max=r_max, pad0=pad0, fuse_first=fuse_first)

    out_flat = pl.pallas_call(
        kernel,
        out_shape=jax.ShapeDtypeStruct((N, C, L), jnp.float32),
        grid_spec=pltpu.PrefetchScalarGridSpec(
            num_scalar_prefetch=0,
            grid=(N,),
            in_specs=[
                pl.BlockSpec((1, C, Lflat), lambda n: (n, 0, 0)),
                pl.BlockSpec((n_b, Cb, 9 * C), lambda n: (0, 0, 0)),
                pl.BlockSpec((n_b, Cb, 1), lambda n: (0, 0, 0)),
                pl.BlockSpec((C, 9 * C), lambda n: (0, 0)),
                pl.BlockSpec((C, 1), lambda n: (0, 0)),
                pl.BlockSpec(wg.shape, lambda n: (0, 0)),
                pl.BlockSpec(bg.shape, lambda n: (0, 0)),
            ],
            out_specs=pl.BlockSpec((1, C, L), lambda n: (n, 0, 0)),
            scratch_shapes=[
                pltpu.VMEM((9 * C, L), matmul_dtype),     # shared im2col patch
                pltpu.VMEM((C, cat_len), matmul_dtype),   # reflect-padded concat
            ],
        ),
        compiler_params=pltpu.CompilerParams(
            dimension_semantics=("parallel",)),
    )(xflat, wb, bb, wf, bf, wg, bg)

    # Valid pixels occupy columns [0, W) of each padded-width (Wp) row.
    return out_flat.reshape(N, C, H, Wp)[:, :, :, :W]


# ----------------------------------------------------------------------------
# Pure-JAX reference (mirrors the PyTorch module, NCHW) for correctness check.
# ----------------------------------------------------------------------------
def _ref_conv(x_nchw, w_oihw, b, rate):
    xp = jnp.pad(x_nchw, ((0, 0), (0, 0), (rate, rate), (rate, rate)),
                 mode="reflect")
    y = jax.lax.conv_general_dilated(
        xp, w_oihw, window_strides=(1, 1), padding="VALID",
        rhs_dilation=(rate, rate),
        dimension_numbers=("NCHW", "OIHW", "NCHW"))
    return y + b[None, :, None, None]


def ref_forward(x_nchw, params, rates):
    outs = []
    for i, r in enumerate(rates):
        w, b = params[f"block{i:02d}"]
        outs.append(jnp.maximum(_ref_conv(x_nchw, w, b, r), 0.0))
    out = jnp.concatenate(outs, axis=1)
    wf, bf = params["fuse"]
    out = _ref_conv(out, wf, bf, 1)
    wg, bg = params["gate"]
    g = _ref_conv(x_nchw, wg, bg, 1)
    mean = jnp.mean(g, axis=(2, 3), keepdims=True)
    std = jnp.std(g, axis=(2, 3), keepdims=True, ddof=1) + 1e-9
    feat = 5.0 * (2.0 * (g - mean) / std - 1.0)
    mask = jax.nn.sigmoid(feat)
    return x_nchw * (1.0 - mask) + out * mask


if __name__ == "__main__":
    dim = 16
    rates = (1, 2, 4, 8)
    N, H, W = 2, 16, 16

    key = jax.random.PRNGKey(0)
    k_x, k_p = jax.random.split(key)
    x = jax.random.normal(k_x, (N, dim, H, W), jnp.float32)   # NCHW input
    params = init_params(k_p, dim, rates)

    # f32 path: strict check against the pure-JAX reference.
    out = jax.block_until_ready(aot_block_forward(x, params, rates))
    ref = jax.block_until_ready(ref_forward(x, params, rates))
    np.testing.assert_allclose(np.asarray(out), np.asarray(ref),
                               rtol=1e-3, atol=2e-3)

    # bf16-matmul path (v6e/v7x MXU optimization, f32 accumulation):
    # compare against the reference evaluated with bf16-rounded inputs/weights,
    # so the tolerance only has to absorb the residual quantization effects
    # (blend uses unrounded x, concat is re-rounded before the fuse conv).
    out_bf = jax.block_until_ready(
        aot_block_forward(x, params, rates, matmul_dtype=jnp.bfloat16))
    q = lambda a: a.astype(jnp.bfloat16).astype(jnp.float32)
    params_q = {k: (q(w), b) for k, (w, b) in params.items()}
    ref_bf = jax.block_until_ready(ref_forward(q(x), params_q, rates))
    np.testing.assert_allclose(np.asarray(out_bf), np.asarray(ref_bf),
                               rtol=5e-2, atol=5e-2)

    print("KERNEL_OK")
</pallas_src>

<mosaic_0001>
module attributes {stable_mosaic.version = 11 : i64} {
  func.func @_aot_block_kernel(%arg0: i32, %arg1: memref<1x16x1040xf32, #tpu.memory_space<vmem>>, %arg2: memref<4x4x144xf32, #tpu.memory_space<vmem>>, %arg3: memref<4x4x1xf32, #tpu.memory_space<vmem>>, %arg4: memref<16x144xf32, #tpu.memory_space<vmem>>, %arg5: memref<16x1xf32, #tpu.memory_space<vmem>>, %arg6: memref<20x144xf32, #tpu.memory_space<vmem>>, %arg7: memref<20x1xf32, #tpu.memory_space<vmem>>, %arg8: memref<1x16x512xf32, #tpu.memory_space<vmem>>, %arg9: memref<144x512xf32, #tpu.memory_space<vmem>>, %arg10: memref<16x704xf32, #tpu.memory_space<vmem>>) attributes {dimension_semantics = [#tpu.dimension_semantics<parallel>], iteration_bounds = array<i64: 2>, scalar_prefetch = 0 : i64, scratch_operands = 2 : i64, tpu.core_type = #tpu.core_type<tc>, window_params = [{transform_indices = @transform_0, window_bounds = array<i64: 1, 16, 1040>}, {pipeline_mode = #tpu.pipeline_mode<synchronous>, transform_indices = @transform_1, window_bounds = array<i64: 4, 4, 144>}, {pipeline_mode = #tpu.pipeline_mode<synchronous>, transform_indices = @transform_2, window_bounds = array<i64: 4, 4, 1>}, {pipeline_mode = #tpu.pipeline_mode<synchronous>, transform_indices = @transform_3, window_bounds = array<i64: 16, 144>}, {pipeline_mode = #tpu.pipeline_mode<synchronous>, transform_indices = @transform_4, window_bounds = array<i64: 16, 1>}, {pipeline_mode = #tpu.pipeline_mode<synchronous>, transform_indices = @transform_5, window_bounds = array<i64: 20, 144>}, {pipeline_mode = #tpu.pipeline_mode<synchronous>, transform_indices = @transform_6, window_bounds = array<i64: 20, 1>}, {transform_indices = @transform_7, window_bounds = array<i64: 1, 16, 512>}]} {
    %0 = tpu.iota {dimensions = array<i32: 1>} : vector<1x512xi32>
    %c32_i32 = arith.constant 32 : i32
    %c0_i32 = arith.constant 0 : i32
    %1 = arith.cmpi eq, %c32_i32, %c0_i32 : i32
    %c1_i32 = arith.constant 1 : i32
    %2 = arith.select %1, %c1_i32, %c32_i32 : i32
    %3 = vector.broadcast %2 : i32 to vector<1x512xi32>
    %4 = arith.remsi %0, %3 : vector<1x512xi32>
    %c0_i32_0 = arith.constant 0 : i32
    %5 = vector.broadcast %c0_i32_0 : i32 to vector<1x512xi32>
    %6 = arith.cmpi ne, %4, %5 : vector<1x512xi32>
    %c0_i32_1 = arith.constant 0 : i32
    %7 = vector.broadcast %c0_i32_1 : i32 to vector<1x512xi32>
    %8 = arith.cmpi slt, %4, %7 : vector<1x512xi32>
    %c0_i32_2 = arith.constant 0 : i32
    %9 = arith.cmpi slt, %2, %c0_i32_2 : i32
    %10 = vector.broadcast %9 : i1 to vector<1x512xi1>
    %11 = vector.broadcast %10 : vector<1x512xi1> to vector<1x512xi1>
    %12 = arith.xori %8, %11 : vector<1x512xi1>
    %13 = arith.andi %12, %6 : vector<1x512xi1>
    %14 = vector.broadcast %2 : i32 to vector<1x512xi32>
    %15 = arith.addi %4, %14 : vector<1x512xi32>
    %16 = arith.select %13, %15, %4 : vector<1x512xi1>, vector<1x512xi32>
    %c16_i32 = arith.constant 16 : i32
    %17 = vector.broadcast %c16_i32 : i32 to vector<1x512xi32>
    %18 = arith.cmpi slt, %16, %17 : vector<1x512xi32>
    %c0 = arith.constant 0 : index
    %c0_3 = arith.constant 0 : index
    %c231 = arith.constant 231 : index
    %19 = vector.load %arg1[%c0, %c0_3, %c231] : memref<1x16x1040xf32, #tpu.memory_space<vmem>>, vector<1x16x512xf32>
    %20 = vector.shape_cast %19 : vector<1x16x512xf32> to vector<16x512xf32>
    %c0_4 = arith.constant 0 : index
    %c0_5 = arith.constant 0 : index
    %21 = vector.load %arg9[%c0_4, %c0_5] : memref<144x512xf32, #tpu.memory_space<vmem>>, vector<16x512xf32>
    tpu.vector_store %arg9[%c0_4, %c0_5], %20 {strides = array<i32>} : memref<144x512xf32, #tpu.memory_space<vmem>>, vector<16x512xf32>,
    %c0_6 = arith.constant 0 : index
    %c0_7 = arith.constant 0 : index
    %c232 = arith.constant 232 : index
    %22 = vector.load %arg1[%c0_6, %c0_7, %c232] : memref<1x16x1040xf32, #tpu.memory_space<vmem>>, vector<1x16x512xf32>
    %23 = vector.shape_cast %22 : vector<1x16x512xf32> to vector<16x512xf32>
    %c16 = arith.constant 16 : index
    %c0_8 = arith.constant 0 : index
    %24 = vector.load %arg9[%c16, %c0_8] : memref<144x512xf32, #tpu.memory_space<vmem>>, vector<16x512xf32>
    tpu.vector_store %arg9[%c16, %c0_8], %23 {strides = array<i32>} : memref<144x512xf32, #tpu.memory_space<vmem>>, vector<16x512xf32>,
    %c0_9 = arith.constant 0 : index
    %c0_10 = arith.constant 0 : index
    %c233 = arith.constant 233 : index
    %25 = vector.load %arg1[%c0_9, %c0_10, %c233] : memref<1x16x1040xf32, #tpu.memory_space<vmem>>, vector<1x16x512xf32>
    %26 = vector.shape_cast %25 : vector<1x16x512xf32> to vector<16x512xf32>
    %c32 = arith.constant 32 : index
    %c0_11 = arith.constant 0 : index
    %27 = vector.load %arg9[%c32, %c0_11] : memref<144x512xf32, #tpu.memory_space<vmem>>, vector<16x512xf32>
    tpu.vector_store %arg9[%c32, %c0_11], %26 {strides = array<i32>} : memref<144x512xf32, #tpu.memory_space<vmem>>, vector<16x512xf32>,
    %c0_12 = arith.constant 0 : index
    %c0_13 = arith.constant 0 : index
    %c263 = arith.constant 263 : index
    %28 = vector.load %arg1[%c0_12, %c0_13, %c263] : memref<1x16x1040xf32, #tpu.memory_space<vmem>>, vector<1x16x512xf32>
    %29 = vector.shape_cast %28 : vector<1x16x512xf32> to vector<16x512xf32>
    %c48 = arith.constant 48 : index
    %c0_14 = arith.constant 0 : index
    %30 = vector.load %arg9[%c48, %c0_14] : memref<144x512xf32, #tpu.memory_space<vmem>>, vector<16x512xf32>
    tpu.vector_store %arg9[%c48, %c0_14], %29 {strides = array<i32>} : memref<144x512xf32, #tpu.memory_space<vmem>>, vector<16x512xf32>,
    %c0_15 = arith.constant 0 : index
    %c0_16 = arith.constant 0 : index
    %c264 = arith.constant 264 : index
    %31 = vector.load %arg1[%c0_15, %c0_16, %c264] : memref<1x16x1040xf32, #tpu.memory_space<vmem>>, vector<1x16x512xf32>
    %32 = vector.shape_cast %31 : vector<1x16x512xf32> to vector<16x512xf32>
    %c64 = arith.constant 64 : index
    %c0_17 = arith.constant 0 : index
    %33 = vector.load %arg9[%c64, %c0_17] : memref<144x512xf32, #tpu.memory_space<vmem>>, vector<16x512xf32>
    tpu.vector_store %arg9[%c64, %c0_17], %32 {strides = array<i32>} : memref<144x512xf32, #tpu.memory_space<vmem>>, vector<16x512xf32>,
    %c0_18 = arith.constant 0 : index
    %c0_19 = arith.constant 0 : index
    %c265 = arith.constant 265 : index
    %34 = vector.load %arg1[%c0_18, %c0_19, %c265] : memref<1x16x1040xf32, #tpu.memory_space<vmem>>, vector<1x16x512xf32>
    %35 = vector.shape_cast %34 : vector<1x16x512xf32> to vector<16x512xf32>
    %c80 = arith.constant 80 : index
    %c0_20 = arith.constant 0 : index
    %36 = vector.load %arg9[%c80, %c0_20] : memref<144x512xf32, #tpu.memory_space<vmem>>, vector<16x512xf32>
    tpu.vector_store %arg9[%c80, %c0_20], %35 {strides = array<i32>} : memref<144x512xf32, #tpu.memory_space<vmem>>, vector<16x512xf32>,
    %c0_21 = arith.constant 0 : index
    %c0_22 = arith.constant 0 : index
    %c295 = arith.constant 295 : index
    %37 = vector.load %arg1[%c0_21, %c0_22, %c295] : memref<1x16x1040xf32, #tpu.memory_space<vmem>>, vector<1x16x512xf32>
    %38 = vector.shape_cast %37 : vector<1x16x512xf32> to vector<16x512xf32>
    %c96 = arith.constant 96 : index
    %c0_23 = arith.constant 0 : index
    %39 = vector.load %arg9[%c96, %c0_23] : memref<144x512xf32, #tpu.memory_space<vmem>>, vector<16x512xf32>
    tpu.vector_store %arg9[%c96, %c0_23], %38 {strides = array<i32>} : memref<144x512xf32, #tpu.memory_space<vmem>>, vector<16x512xf32>,
    %c0_24 = arith.constant 0 : index
    %c0_25 = arith.constant 0 : index
    %c296 = arith.constant 296 : index
    %40 = vector.load %arg1[%c0_24, %c0_25, %c296] : memref<1x16x1040xf32, #tpu.memory_space<vmem>>, vector<1x16x512xf32>
    %41 = vector.shape_cast %40 : vector<1x16x512xf32> to vector<16x512xf32>
    %c112 = arith.constant 112 : index
    %c0_26 = arith.constant 0 : index
    %42 = vector.load %arg9[%c112, %c0_26] : memref<144x512xf32, #tpu.memory_space<vmem>>, vector<16x512xf32>
    tpu.vector_store %arg9[%c112, %c0_26], %41 {strides = array<i32>} : memref<144x512xf32, #tpu.memory_space<vmem>>, vector<16x512xf32>,
    %c0_27 = arith.constant 0 : index
    %c0_28 = arith.constant 0 : index
    %c297 = arith.constant 297 : index
    %43 = vector.load %arg1[%c0_27, %c0_28, %c297] : memref<1x16x1040xf32, #tpu.memory_space<vmem>>, vector<1x16x512xf32>
    %44 = vector.shape_cast %43 : vector<1x16x512xf32> to vector<16x512xf32>
    %c128 = arith.constant 128 : index
    %c0_29 = arith.constant 0 : index
    %45 = vector.load %arg9[%c128, %c0_29] : memref<144x512xf32, #tpu.memory_space<vmem>>, vector<16x512xf32>
    tpu.vector_store %arg9[%c128, %c0_29], %44 {strides = array<i32>} : memref<144x512xf32, #tpu.memory_space<vmem>>, vector<16x512xf32>,
    %c0_30 = arith.constant 0 : index
    %c0_31 = arith.constant 0 : index
    %46 = vector.load %arg6[%c0_30, %c0_31] : memref<20x144xf32, #tpu.memory_space<vmem>>, vector<20x144xf32>
    %c0_32 = arith.constant 0 : index
    %c0_33 = arith.constant 0 : index
    %47 = vector.load %arg7[%c0_32, %c0_33] : memref<20x1xf32, #tpu.memory_space<vmem>>, vector<20x1xf32>
    %c0_34 = arith.constant 0 : index
    %c0_35 = arith.constant 0 : index
    %48 = vector.load %arg9[%c0_34, %c0_35] : memref<144x512xf32, #tpu.memory_space<vmem>>, vector<144x512xf32>
    %cst = arith.constant dense<0.000000e+00> : vector<20x512xf32>
    %49 = tpu.matmul %46, %48, %cst {dimension_numbers = #tpu.dot_dimension_numbers<[1], [0], [0], [1], [0, 0, 1, 1], [], []>} : vector<20x144xf32>, vector<144x512xf32>, vector<20x512xf32> -> vector<20x512xf32>
    %50 = vector.broadcast %47 : vector<20x1xf32> to vector<20x512xf32>
    %51 = arith.addf %49, %50 : vector<20x512xf32>
    %52 = vector.extract_strided_slice %51 {offsets = [0, 0], sizes = [16, 512], strides = [1, 1]} : vector<20x512xf32> to vector<16x512xf32>
    %cst_36 = arith.constant 0.000000e+00 : f32
    %53 = vector.shape_cast %18 : vector<1x512xi1> to vector<1x512xi1>
    %54 = vector.broadcast %53 : vector<1x512xi1> to vector<16x512xi1>
    %55 = vector.broadcast %cst_36 : f32 to vector<16x512xf32>
    %56 = arith.select %54, %52, %55 : vector<16x512xi1>, vector<16x512xf32>
    %cst_37 = arith.constant dense<0.000000e+00> : vector<16xf32>
    %57 = vector.multi_reduction <add>, %56, %cst_37 [1] : vector<16x512xf32> to vector<16xf32>
    %58 = vector.shape_cast %57 : vector<16xf32> to vector<16x1xf32>
    %cst_38 = arith.constant 3.906250e-03 : f32
    %59 = vector.broadcast %cst_38 : f32 to vector<16x1xf32>
    %60 = arith.mulf %58, %59 : vector<16x1xf32>
    %61 = vector.broadcast %60 : vector<16x1xf32> to vector<16x512xf32>
    %62 = arith.subf %52, %61 : vector<16x512xf32>
    %63 = arith.mulf %62, %62 : vector<16x512xf32>
    %cst_39 = arith.constant 0.000000e+00 : f32
    %64 = vector.shape_cast %18 : vector<1x512xi1> to vector<1x512xi1>
    %65 = vector.broadcast %64 : vector<1x512xi1> to vector<16x512xi1>
    %66 = vector.broadcast %cst_39 : f32 to vector<16x512xf32>
    %67 = arith.select %65, %63, %66 : vector<16x512xi1>, vector<16x512xf32>
    %cst_40 = arith.constant dense<0.000000e+00> : vector<16xf32>
    %68 = vector.multi_reduction <add>, %67, %cst_40 [1] : vector<16x512xf32> to vector<16xf32>
    %69 = vector.shape_cast %68 : vector<16xf32> to vector<16x1xf32>
    %cst_41 = arith.constant 0.00392156886 : f32
    %70 = vector.broadcast %cst_41 : f32 to vector<16x1xf32>
    %71 = arith.mulf %69, %70 : vector<16x1xf32>
    %72 = math.sqrt %71 : vector<16x1xf32>
    %cst_42 = arith.constant 9.99999971E-10 : f32
    %73 = vector.broadcast %cst_42 : f32 to vector<16x1xf32>
    %74 = arith.addf %72, %73 : vector<16x1xf32>
    %cst_43 = arith.constant 1.000000e+00 : f32
    %75 = vector.broadcast %cst_43 : f32 to vector<16x1xf32>
    %76 = arith.divf %75, %74 : vector<16x1xf32>
    %cst_44 = arith.constant 2.000000e+00 : f32
    %77 = vector.broadcast %cst_44 : f32 to vector<16x512xf32>
    %78 = arith.mulf %77, %62 : vector<16x512xf32>
    %79 = vector.broadcast %76 : vector<16x1xf32> to vector<16x512xf32>
    %80 = arith.mulf %78, %79 : vector<16x512xf32>
    %cst_45 = arith.constant 1.000000e+00 : f32
    %81 = vector.broadcast %cst_45 : f32 to vector<16x512xf32>
    %82 = arith.subf %80, %81 : vector<16x512xf32>
    %cst_46 = arith.constant 5.000000e+00 : f32
    %83 = vector.broadcast %cst_46 : f32 to vector<16x512xf32>
    %84 = arith.mulf %83, %82 : vector<16x512xf32>
    %cst_47 = arith.constant 5.000000e-01 : f32
    %85 = vector.broadcast %cst_47 : f32 to vector<16x512xf32>
    %86 = arith.mulf %85, %84 : vector<16x512xf32>
    %87 = math.tanh %86 : vector<16x512xf32>
    %cst_48 = arith.constant 1.000000e+00 : f32
    %88 = vector.broadcast %cst_48 : f32 to vector<16x512xf32>
    %89 = arith.addf %87, %88 : vector<16x512xf32>
    %cst_49 = arith.constant 5.000000e-01 : f32
    %90 = vector.broadcast %cst_49 : f32 to vector<16x512xf32>
    %91 = arith.mulf %90, %89 : vector<16x512xf32>
    %92 = vector.extract_strided_slice %51 {offsets = [16, 0], sizes = [4, 512], strides = [1, 1]} : vector<20x512xf32> to vector<4x512xf32>
    %cst_50 = arith.constant 0.000000e+00 : f32
    %93 = vector.broadcast %cst_50 : f32 to vector<4x512xf32>
    %94 = arith.maximumf %92, %93 : vector<4x512xf32>
    %c0_51 = arith.constant 0 : index
    %c0_52 = arith.constant 0 : index
    %c198 = arith.constant 198 : index
    %95 = vector.load %arg1[%c0_51, %c0_52, %c198] : memref<1x16x1040xf32, #tpu.memory_space<vmem>>, vector<1x16x512xf32>
    %96 = vector.shape_cast %95 : vector<1x16x512xf32> to vector<16x512xf32>
    %c0_53 = arith.constant 0 : index
    %c0_54 = arith.constant 0 : index
    %97 = vector.load %arg9[%c0_53, %c0_54] : memref<144x512xf32, #tpu.memory_space<vmem>>, vector<16x512xf32>
    tpu.vector_store %arg9[%c0_53, %c0_54], %96 {strides = array<i32>} : memref<144x512xf32, #tpu.memory_space<vmem>>, vector<16x512xf32>,
    %c0_55 = arith.constant 0 : index
    %c0_56 = arith.constant 0 : index
    %c200 = arith.constant 200 : index
    %98 = vector.load %arg1[%c0_55, %c0_56, %c200] : memref<1x16x1040xf32, #tpu.memory_space<vmem>>, vector<1x16x512xf32>
    %99 = vector.shape_cast %98 : vector<1x16x512xf32> to vector<16x512xf32>
    %c16_57 = arith.constant 16 : index
    %c0_58 = arith.constant 0 : index
    %100 = vector.load %arg9[%c16_57, %c0_58] : memref<144x512xf32, #tpu.memory_space<vmem>>, vector<16x512xf32>
    tpu.vector_store %arg9[%c16_57, %c0_58], %99 {strides = array<i32>} : memref<144x512xf32, #tpu.memory_space<vmem>>, vector<16x512xf32>,
    %c0_59 = arith.constant 0 : index
    %c0_60 = arith.constant 0 : index
    %c202 = arith.constant 202 : index
    %101 = vector.load %arg1[%c0_59, %c0_60, %c202] : memref<1x16x1040xf32, #tpu.memory_space<vmem>>, vector<1x16x512xf32>
    %102 = vector.shape_cast %101 : vector<1x16x512xf32> to vector<16x512xf32>
    %c32_61 = arith.constant 32 : index
    %c0_62 = arith.constant 0 : index
    %103 = vector.load %arg9[%c32_61, %c0_62] : memref<144x512xf32, #tpu.memory_space<vmem>>, vector<16x512xf32>
    tpu.vector_store %arg9[%c32_61, %c0_62], %102 {strides = array<i32>} : memref<144x512xf32, #tpu.memory_space<vmem>>, vector<16x512xf32>,
    %c0_63 = arith.constant 0 : index
    %c0_64 = arith.constant 0 : index
    %c262 = arith.constant 262 : index
    %104 = vector.load %arg1[%c0_63, %c0_64, %c262] : memref<1x16x1040xf32, #tpu.memory_space<vmem>>, vector<1x16x512xf32>
    %105 = vector.shape_cast %104 : vector<1x16x512xf32> to vector<16x512xf32>
    %c48_65 = arith.constant 48 : index
    %c0_66 = arith.constant 0 : index
    %106 = vector.load %arg9[%c48_65, %c0_66] : memref<144x512xf32, #tpu.memory_space<vmem>>, vector<16x512xf32>
    tpu.vector_store %arg9[%c48_65, %c0_66], %105 {strides = array<i32>} : memref<144x512xf32, #tpu.memory_space<vmem>>, vector<16x512xf32>,
    %c0_67 = arith.constant 0 : index
    %c0_68 = arith.constant 0 : index
    %c264_69 = arith.constant 264 : index
    %107 = vector.load %arg1[%c0_67, %c0_68, %c264_69] : memref<1x16x1040xf32, #tpu.memory_space<vmem>>, vector<1x16x512xf32>
    %108 = vector.shape_cast %107 : vector<1x16x512xf32> to vector<16x512xf32>
    %c64_70 = arith.constant 64 : index
    %c0_71 = arith.constant 0 : index
    %109 = vector.load %arg9[%c64_70, %c0_71] : memref<144x512xf32, #tpu.memory_space<vmem>>, vector<16x512xf32>
    tpu.vector_store %arg9[%c64_70, %c0_71], %108 {strides = array<i32>} : memref<144x512xf32, #tpu.memory_space<vmem>>, vector<16x512xf32>,
    %c0_72 = arith.constant 0 : index
    %c0_73 = arith.constant 0 : index
    %c266 = arith.constant 266 : index
    %110 = vector.load %arg1[%c0_72, %c0_73, %c266] : memref<1x16x1040xf32, #tpu.memory_space<vmem>>, vector<1x16x512xf32>
    %111 = vector.shape_cast %110 : vector<1x16x512xf32> to vector<16x512xf32>
    %c80_74 = arith.constant 80 : index
    %c0_75 = arith.constant 0 : index
    %112 = vector.load %arg9[%c80_74, %c0_75] : memref<144x512xf32, #tpu.memory_space<vmem>>, vector<16x512xf32>
    tpu.vector_store %arg9[%c80_74, %c0_75], %111 {strides = array<i32>} : memref<144x512xf32, #tpu.memory_space<vmem>>, vector<16x512xf32>,
    %c0_76 = arith.constant 0 : index
    %c0_77 = arith.constant 0 : index
    %c326 = arith.constant 326 : index
    %113 = vector.load %arg1[%c0_76, %c0_77, %c326] : memref<1x16x1040xf32, #tpu.memory_space<vmem>>, vector<1x16x512xf32>
    %114 = vector.shape_cast %113 : vector<1x16x512xf32> to vector<16x512xf32>
    %c96_78 = arith.constant 96 : index
    %c0_79 = arith.constant 0 : index
    %115 = vector.load %arg9[%c96_78, %c0_79] : memref<144x512xf32, #tpu.memory_space<vmem>>, vector<16x512xf32>
    tpu.vector_store %arg9[%c96_78, %c0_79], %114 {strides = array<i32>} : memref<144x512xf32, #tpu.memory_space<vmem>>, vector<16x512xf32>,
    %c0_80 = arith.constant 0 : index
    %c0_81 = arith.constant 0 : index
    %c328 = arith.constant 328 : index
    %116 = vector.load %arg1[%c0_80, %c0_81, %c328] : memref<1x16x1040xf32, #tpu.memory_space<vmem>>, vector<1x16x512xf32>
    %117 = vector.shape_cast %116 : vector<1x16x512xf32> to vector<16x512xf32>
    %c112_82 = arith.constant 112 : index
    %c0_83 = arith.constant 0 : index
    %118 = vector.load %arg9[%c112_82, %c0_83] : memref<144x512xf32, #tpu.memory_space<vmem>>, vector<16x512xf32>
    tpu.vector_store %arg9[%c112_82, %c0_83], %117 {strides = array<i32>} : memref<144x512xf32, #tpu.memory_space<vmem>>, vector<16x512xf32>,
    %c0_84 = arith.constant 0 : index
    %c0_85 = arith.constant 0 : index
    %c330 = arith.constant 330 : index
    %119 = vector.load %arg1[%c0_84, %c0_85, %c330] : memref<1x16x1040xf32, #tpu.memory_space<vmem>>, vector<1x16x512xf32>
    %120 = vector.shape_cast %119 : vector<1x16x512xf32> to vector<16x512xf32>
    %c128_86 = arith.constant 128 : index
    %c0_87 = arith.constant 0 : index
    %121 = vector.load %arg9[%c128_86, %c0_87] : memref<144x512xf32, #tpu.memory_space<vmem>>, vector<16x512xf32>
    tpu.vector_store %arg9[%c128_86, %c0_87], %120 {strides = array<i32>} : memref<144x512xf32, #tpu.memory_space<vmem>>, vector<16x512xf32>,
    %c1 = arith.constant 1 : index
    %c0_88 = arith.constant 0 : index
    %c0_89 = arith.constant 0 : index
    %122 = vector.load %arg2[%c1, %c0_88, %c0_89] : memref<4x4x144xf32, #tpu.memory_space<vmem>>, vector<1x4x144xf32>
    %123 = vector.shape_cast %122 : vector<1x4x144xf32> to vector<4x144xf32>
    %c1_90 = arith.constant 1 : index
    %c0_91 = arith.constant 0 : index
    %c0_92 = arith.constant 0 : index
    %124 = vector.load %arg3[%c1_90, %c0_91, %c0_92] : memref<4x4x1xf32, #tpu.memory_space<vmem>>, vector<1x4x1xf32>
    %125 = vector.shape_cast %124 : vector<1x4x1xf32> to vector<4x1xf32>
    %c0_93 = arith.constant 0 : index
    %c0_94 = arith.constant 0 : index
    %126 = vector.load %arg9[%c0_93, %c0_94] : memref<144x512xf32, #tpu.memory_space<vmem>>, vector<144x512xf32>
    %cst_95 = arith.constant dense<0.000000e+00> : vector<4x512xf32>
    %127 = tpu.matmul %123, %126, %cst_95 {dimension_numbers = #tpu.dot_dimension_numbers<[1], [0], [0], [1], [0, 0, 1, 1], [], []>} : vector<4x144xf32>, vector<144x512xf32>, vector<4x512xf32> -> vector<4x512xf32>
    %128 = vector.broadcast %125 : vector<4x1xf32> to vector<4x512xf32>
    %129 = arith.addf %127, %128 : vector<4x512xf32>
    %cst_96 = arith.constant 0.000000e+00 : f32
    %130 = vector.broadcast %cst_96 : f32 to vector<4x512xf32>
    %131 = arith.maximumf %129, %130 : vector<4x512xf32>
    %c0_97 = arith.constant 0 : index
    %c0_98 = arith.constant 0 : index
    %c132 = arith.constant 132 : index
    %132 = vector.load %arg1[%c0_97, %c0_98, %c132] : memref<1x16x1040xf32, #tpu.memory_space<vmem>>, vector<1x16x512xf32>
    %133 = vector.shape_cast %132 : vector<1x16x512xf32> to vector<16x512xf32>
    %c0_99 = arith.constant 0 : index
    %c0_100 = arith.constant 0 : index
    %134 = vector.load %arg9[%c0_99, %c0_100] : memref<144x512xf32, #tpu.memory_space<vmem>>, vector<16x512xf32>
    tpu.vector_store %arg9[%c0_99, %c0_100], %133 {strides = array<i32>} : memref<144x512xf32, #tpu.memory_space<vmem>>, vector<16x512xf32>,
    %c0_101 = arith.constant 0 : index
    %c0_102 = arith.constant 0 : index
    %c136 = arith.constant 136 : index
    %135 = vector.load %arg1[%c0_101, %c0_102, %c136] : memref<1x16x1040xf32, #tpu.memory_space<vmem>>, vector<1x16x512xf32>
    %136 = vector.shape_cast %135 : vector<1x16x512xf32> to vector<16x512xf32>
    %c16_103 = arith.constant 16 : index
    %c0_104 = arith.constant 0 : index
    %137 = vector.load %arg9[%c16_103, %c0_104] : memref<144x512xf32, #tpu.memory_space<vmem>>, vector<16x512xf32>
    tpu.vector_store %arg9[%c16_103, %c0_104], %136 {strides = array<i32>} : memref<144x512xf32, #tpu.memory_space<vmem>>, vector<16x512xf32>,
    %c0_105 = arith.constant 0 : index
    %c0_106 = arith.constant 0 : index
    %c140 = arith.constant 140 : index
    %138 = vector.load %arg1[%c0_105, %c0_106, %c140] : memref<1x16x1040xf32, #tpu.memory_space<vmem>>, vector<1x16x512xf32>
    %139 = vector.shape_cast %138 : vector<1x16x512xf32> to vector<16x512xf32>
    %c32_107 = arith.constant 32 : index
    %c0_108 = arith.constant 0 : index
    %140 = vector.load %arg9[%c32_107, %c0_108] : memref<144x512xf32, #tpu.memory_space<vmem>>, vector<16x512xf32>
    tpu.vector_store %arg9[%c32_107, %c0_108], %139 {strides = array<i32>} : memref<144x512xf32, #tpu.memory_space<vmem>>, vector<16x512xf32>,
    %c0_109 = arith.constant 0 : index
    %c0_110 = arith.constant 0 : index
    %c260 = arith.constant 260 : index
    %141 = vector.load %arg1[%c0_109, %c0_110, %c260] : memref<1x16x1040xf32, #tpu.memory_space<vmem>>, vector<1x16x512xf32>
    %142 = vector.shape_cast %141 : vector<1x16x512xf32> to vector<16x512xf32>
    %c48_111 = arith.constant 48 : index
    %c0_112 = arith.constant 0 : index
    %143 = vector.load %arg9[%c48_111, %c0_112] : memref<144x512xf32, #tpu.memory_space<vmem>>, vector<16x512xf32>
    tpu.vector_store %arg9[%c48_111, %c0_112], %142 {strides = array<i32>} : memref<144x512xf32, #tpu.memory_space<vmem>>, vector<16x512xf32>,
    %c0_113 = arith.constant 0 : index
    %c0_114 = arith.constant 0 : index
    %c264_115 = arith.constant 264 : index
    %144 = vector.load %arg1[%c0_113, %c0_114, %c264_115] : memref<1x16x1040xf32, #tpu.memory_space<vmem>>, vector<1x16x512xf32>
    %145 = vector.shape_cast %144 : vector<1x16x512xf32> to vector<16x512xf32>
    %c64_116 = arith.constant 64 : index
    %c0_117 = arith.constant 0 : index
    %146 = vector.load %arg9[%c64_116, %c0_117] : memref<144x512xf32, #tpu.memory_space<vmem>>, vector<16x512xf32>
    tpu.vector_store %arg9[%c64_116, %c0_117], %145 {strides = array<i32>} : memref<144x512xf32, #tpu.memory_space<vmem>>, vector<16x512xf32>,
    %c0_118 = arith.constant 0 : index
    %c0_119 = arith.constant 0 : index
    %c268 = arith.constant 268 : index
    %147 = vector.load %arg1[%c0_118, %c0_119, %c268] : memref<1x16x1040xf32, #tpu.memory_space<vmem>>, vector<1x16x512xf32>
    %148 = vector.shape_cast %147 : vector<1x16x512xf32> to vector<16x512xf32>
    %c80_120 = arith.constant 80 : index
    %c0_121 = arith.constant 0 : index
    %149 = vector.load %arg9[%c80_120, %c0_121] : memref<144x512xf32, #tpu.memory_space<vmem>>, vector<16x512xf32>
    tpu.vector_store %arg9[%c80_120, %c0_121], %148 {strides = array<i32>} : memref<144x512xf32, #tpu.memory_space<vmem>>, vector<16x512xf32>,
    %c0_122 = arith.constant 0 : index
    %c0_123 = arith.constant 0 : index
    %c388 = arith.constant 388 : index
    %150 = vector.load %arg1[%c0_122, %c0_123, %c388] : memref<1x16x1040xf32, #tpu.memory_space<vmem>>, vector<1x16x512xf32>
    %151 = vector.shape_cast %150 : vector<1x16x512xf32> to vector<16x512xf32>
    %c96_124 = arith.constant 96 : index
    %c0_125 = arith.constant 0 : index
    %152 = vector.load %arg9[%c96_124, %c0_125] : memref<144x512xf32, #tpu.memory_space<vmem>>, vector<16x512xf32>
    tpu.vector_store %arg9[%c96_124, %c0_125], %151 {strides = array<i32>} : memref<144x512xf32, #tpu.memory_space<vmem>>, vector<16x512xf32>,
    %c0_126 = arith.constant 0 : index
    %c0_127 = arith.constant 0 : index
    %c392 = arith.constant 392 : index
    %153 = vector.load %arg1[%c0_126, %c0_127, %c392] : memref<1x16x1040xf32, #tpu.memory_space<vmem>>, vector<1x16x512xf32>
    %154 = vector.shape_cast %153 : vector<1x16x512xf32> to vector<16x512xf32>
    %c112_128 = arith.constant 112 : index
    %c0_129 = arith.constant 0 : index
    %155 = vector.load %arg9[%c112_128, %c0_129] : memref<144x512xf32, #tpu.memory_space<vmem>>, vector<16x512xf32>
    tpu.vector_store %arg9[%c112_128, %c0_129], %154 {strides = array<i32>} : memref<144x512xf32, #tpu.memory_space<vmem>>, vector<16x512xf32>,
    %c0_130 = arith.constant 0 : index
    %c0_131 = arith.constant 0 : index
    %c396 = arith.constant 396 : index
    %156 = vector.load %arg1[%c0_130, %c0_131, %c396] : memref<1x16x1040xf32, #tpu.memory_space<vmem>>, vector<1x16x512xf32>
    %157 = vector.shape_cast %156 : vector<1x16x512xf32> to vector<16x512xf32>
    %c128_132 = arith.constant 128 : index
    %c0_133 = arith.constant 0 : index
    %158 = vector.load %arg9[%c128_132, %c0_133] : memref<144x512xf32, #tpu.memory_space<vmem>>, vector<16x512xf32>
    tpu.vector_store %arg9[%c128_132, %c0_133], %157 {strides = array<i32>} : memref<144x512xf32, #tpu.memory_space<vmem>>, vector<16x512xf32>,
    %c2 = arith.constant 2 : index
    %c0_134 = arith.constant 0 : index
    %c0_135 = arith.constant 0 : index
    %159 = vector.load %arg2[%c2, %c0_134, %c0_135] : memref<4x4x144xf32, #tpu.memory_space<vmem>>, vector<1x4x144xf32>
    %160 = vector.shape_cast %159 : vector<1x4x144xf32> to vector<4x144xf32>
    %c2_136 = arith.constant 2 : index
    %c0_137 = arith.constant 0 : index
    %c0_138 = arith.constant 0 : index
    %161 = vector.load %arg3[%c2_136, %c0_137, %c0_138] : memref<4x4x1xf32, #tpu.memory_space<vmem>>, vector<1x4x1xf32>
    %162 = vector.shape_cast %161 : vector<1x4x1xf32> to vector<4x1xf32>
    %c0_139 = arith.constant 0 : index
    %c0_140 = arith.constant 0 : index
    %163 = vector.load %arg9[%c0_139, %c0_140] : memref<144x512xf32, #tpu.memory_space<vmem>>, vector<144x512xf32>
    %cst_141 = arith.constant dense<0.000000e+00> : vector<4x512xf32>
    %164 = tpu.matmul %160, %163, %cst_141 {dimension_numbers = #tpu.dot_dimension_numbers<[1], [0], [0], [1], [0, 0, 1, 1], [], []>} : vector<4x144xf32>, vector<144x512xf32>, vector<4x512xf32> -> vector<4x512xf32>
    %165 = vector.broadcast %162 : vector<4x1xf32> to vector<4x512xf32>
    %166 = arith.addf %164, %165 : vector<4x512xf32>
    %cst_142 = arith.constant 0.000000e+00 : f32
    %167 = vector.broadcast %cst_142 : f32 to vector<4x512xf32>
    %168 = arith.maximumf %166, %167 : vector<4x512xf32>
    %c0_143 = arith.constant 0 : index
    %c0_144 = arith.constant 0 : index
    %c0_145 = arith.constant 0 : index
    %169 = vector.load %arg1[%c0_143, %c0_144, %c0_145] : memref<1x16x1040xf32, #tpu.memory_space<vmem>>, vector<1x16x512xf32>
    %170 = vector.shape_cast %169 : vector<1x16x512xf32> to vector<16x512xf32>
    %c0_146 = arith.constant 0 : index
    %c0_147 = arith.constant 0 : index
    %171 = vector.load %arg9[%c0_146, %c0_147] : memref<144x512xf32, #tpu.memory_space<vmem>>, vector<16x512xf32>
    tpu.vector_store %arg9[%c0_146, %c0_147], %170 {strides = array<i32>} : memref<144x512xf32, #tpu.memory_space<vmem>>, vector<16x512xf32>,
    %c0_148 = arith.constant 0 : index
    %c0_149 = arith.constant 0 : index
    %c8 = arith.constant 8 : index
    %172 = vector.load %arg1[%c0_148, %c0_149, %c8] : memref<1x16x1040xf32, #tpu.memory_space<vmem>>, vector<1x16x512xf32>
    %173 = vector.shape_cast %172 : vector<1x16x512xf32> to vector<16x512xf32>
    %c16_150 = arith.constant 16 : index
    %c0_151 = arith.constant 0 : index
    %174 = vector.load %arg9[%c16_150, %c0_151] : memref<144x512xf32, #tpu.memory_space<vmem>>, vector<16x512xf32>
    tpu.vector_store %arg9[%c16_150, %c0_151], %173 {strides = array<i32>} : memref<144x512xf32, #tpu.memory_space<vmem>>, vector<16x512xf32>,
    %c0_152 = arith.constant 0 : index
    %c0_153 = arith.constant 0 : index
    %c16_154 = arith.constant 16 : index
    %175 = vector.load %arg1[%c0_152, %c0_153, %c16_154] : memref<1x16x1040xf32, #tpu.memory_space<vmem>>, vector<1x16x512xf32>
    %176 = vector.shape_cast %175 : vector<1x16x512xf32> to vector<16x512xf32>
    %c32_155 = arith.constant 32 : index
    %c0_156 = arith.constant 0 : index
    %177 = vector.load %arg9[%c32_155, %c0_156] : memref<144x512xf32, #tpu.memory_space<vmem>>, vector<16x512xf32>
    tpu.vector_store %arg9[%c32_155, %c0_156], %176 {strides = array<i32>} : memref<144x512xf32, #tpu.memory_space<vmem>>, vector<16x512xf32>,
    %c0_157 = arith.constant 0 : index
    %c0_158 = arith.constant 0 : index
    %c256 = arith.constant 256 : index
    %178 = vector.load %arg1[%c0_157, %c0_158, %c256] : memref<1x16x1040xf32, #tpu.memory_space<vmem>>, vector<1x16x512xf32>
    %179 = vector.shape_cast %178 : vector<1x16x512xf32> to vector<16x512xf32>
    %c48_159 = arith.constant 48 : index
    %c0_160 = arith.constant 0 : index
    %180 = vector.load %arg9[%c48_159, %c0_160] : memref<144x512xf32, #tpu.memory_space<vmem>>, vector<16x512xf32>
    tpu.vector_store %arg9[%c48_159, %c0_160], %179 {strides = array<i32>} : memref<144x512xf32, #tpu.memory_space<vmem>>, vector<16x512xf32>,
    %c0_161 = arith.constant 0 : index
    %c0_162 = arith.constant 0 : index
    %c264_163 = arith.constant 264 : index
    %181 = vector.load %arg1[%c0_161, %c0_162, %c264_163] : memref<1x16x1040xf32, #tpu.memory_space<vmem>>, vector<1x16x512xf32>
    %182 = vector.shape_cast %181 : vector<1x16x512xf32> to vector<16x512xf32>
    %c64_164 = arith.constant 64 : index
    %c0_165 = arith.constant 0 : index
    %183 = vector.load %arg9[%c64_164, %c0_165] : memref<144x512xf32, #tpu.memory_space<vmem>>, vector<16x512xf32>
    tpu.vector_store %arg9[%c64_164, %c0_165], %182 {strides = array<i32>} : memref<144x512xf32, #tpu.memory_space<vmem>>, vector<16x512xf32>,
    %c0_166 = arith.constant 0 : index
    %c0_167 = arith.constant 0 : index
    %c272 = arith.constant 272 : index
    %184 = vector.load %arg1[%c0_166, %c0_167, %c272] : memref<1x16x1040xf32, #tpu.memory_space<vmem>>, vector<1x16x512xf32>
    %185 = vector.shape_cast %184 : vector<1x16x512xf32> to vector<16x512xf32>
    %c80_168 = arith.constant 80 : index
    %c0_169 = arith.constant 0 : index
    %186 = vector.load %arg9[%c80_168, %c0_169] : memref<144x512xf32, #tpu.memory_space<vmem>>, vector<16x512xf32>
    tpu.vector_store %arg9[%c80_168, %c0_169], %185 {strides = array<i32>} : memref<144x512xf32, #tpu.memory_space<vmem>>, vector<16x512xf32>,
    %c0_170 = arith.constant 0 : index
    %c0_171 = arith.constant 0 : index
    %c512 = arith.constant 512 : index
    %187 = vector.load %arg1[%c0_170, %c0_171, %c512] : memref<1x16x1040xf32, #tpu.memory_space<vmem>>, vector<1x16x512xf32>
    %188 = vector.shape_cast %187 : vector<1x16x512xf32> to vector<16x512xf32>
    %c96_172 = arith.constant 96 : index
    %c0_173 = arith.constant 0 : index
    %189 = vector.load %arg9[%c96_172, %c0_173] : memref<144x512xf32, #tpu.memory_space<vmem>>, vector<16x512xf32>
    tpu.vector_store %arg9[%c96_172, %c0_173], %188 {strides = array<i32>} : memref<144x512xf32, #tpu.memory_space<vmem>>, vector<16x512xf32>,
    %c0_174 = arith.constant 0 : index
    %c0_175 = arith.constant 0 : index
    %c520 = arith.constant 520 : index
    %190 = vector.load %arg1[%c0_174, %c0_175, %c520] : memref<1x16x1040xf32, #tpu.memory_space<vmem>>, vector<1x16x512xf32>
    %191 = vector.shape_cast %190 : vector<1x16x512xf32> to vector<16x512xf32>
    %c112_176 = arith.constant 112 : index
    %c0_177 = arith.constant 0 : index
    %192 = vector.load %arg9[%c112_176, %c0_177] : memref<144x512xf32, #tpu.memory_space<vmem>>, vector<16x512xf32>
    tpu.vector_store %arg9[%c112_176, %c0_177], %191 {strides = array<i32>} : memref<144x512xf32, #tpu.memory_space<vmem>>, vector<16x512xf32>,
    %c0_178 = arith.constant 0 : index
    %c0_179 = arith.constant 0 : index
    %c528 = arith.constant 528 : index
    %193 = vector.load %arg1[%c0_178, %c0_179, %c528] : memref<1x16x1040xf32, #tpu.memory_space<vmem>>, vector<1x16x512xf32>
    %194 = vector.shape_cast %193 : vector<1x16x512xf32> to vector<16x512xf32>
    %c128_180 = arith.constant 128 : index
    %c0_181 = arith.constant 0 : index
    %195 = vector.load %arg9[%c128_180, %c0_181] : memref<144x512xf32, #tpu.memory_space<vmem>>, vector<16x512xf32>
    tpu.vector_store %arg9[%c128_180, %c0_181], %194 {strides = array<i32>} : memref<144x512xf32, #tpu.memory_space<vmem>>, vector<16x512xf32>,
    %c3 = arith.constant 3 : index
    %c0_182 = arith.constant 0 : index
    %c0_183 = arith.constant 0 : index
    %196 = vector.load %arg2[%c3, %c0_182, %c0_183] : memref<4x4x144xf32, #tpu.memory_space<vmem>>, vector<1x4x144xf32>
    %197 = vector.shape_cast %196 : vector<1x4x144xf32> to vector<4x144xf32>
    %c3_184 = arith.constant 3 : index
    %c0_185 = arith.constant 0 : index
    %c0_186 = arith.constant 0 : index
    %198 = vector.load %arg3[%c3_184, %c0_185, %c0_186] : memref<4x4x1xf32, #tpu.memory_space<vmem>>, vector<1x4x1xf32>
    %199 = vector.shape_cast %198 : vector<1x4x1xf32> to vector<4x1xf32>
    %c0_187 = arith.constant 0 : index
    %c0_188 = arith.constant 0 : index
    %200 = vector.load %arg9[%c0_187, %c0_188] : memref<144x512xf32, #tpu.memory_space<vmem>>, vector<144x512xf32>
    %cst_189 = arith.constant dense<0.000000e+00> : vector<4x512xf32>
    %201 = tpu.matmul %197, %200, %cst_189 {dimension_numbers = #tpu.dot_dimension_numbers<[1], [0], [0], [1], [0, 0, 1, 1], [], []>} : vector<4x144xf32>, vector<144x512xf32>, vector<4x512xf32> -> vector<4x512xf32>
    %202 = vector.broadcast %199 : vector<4x1xf32> to vector<4x512xf32>
    %203 = arith.addf %201, %202 : vector<4x512xf32>
    %cst_190 = arith.constant 0.000000e+00 : f32
    %204 = vector.broadcast %cst_190 : f32 to vector<4x512xf32>
    %205 = arith.maximumf %203, %204 : vector<4x512xf32>
    %206 = tpu.concatenate %94, %131, %168, %205 in 0 : vector<4x512xf32>, vector<4x512xf32>, vector<4x512xf32>, vector<4x512xf32> -> vector<16x512xf32>
    %c0_191 = arith.constant 0 : index
    %c128_192 = arith.constant 128 : index
    %207 = vector.load %arg10[%c0_191, %c128_192] : memref<16x704xf32, #tpu.memory_space<vmem>>, vector<16x512xf32>
    tpu.vector_store %arg10[%c0_191, %c128_192], %206 {strides = array<i32>} : memref<16x704xf32, #tpu.memory_space<vmem>>, vector<16x512xf32>,
    %c0_193 = arith.constant 0 : index
    %c126 = arith.constant 126 : index
    %208 = vector.load %arg10[%c0_193, %c126] : memref<16x704xf32, #tpu.memory_space<vmem>>, vector<16x512xf32>
    %c0_194 = arith.constant 0 : index
    %c130 = arith.constant 130 : index
    %209 = vector.load %arg10[%c0_194, %c130] : memref<16x704xf32, #tpu.memory_space<vmem>>, vector<16x512xf32>
    %c16_i32_195 = arith.constant 16 : i32
    %210 = vector.broadcast %c16_i32_195 : i32 to vector<1x512xi32>
    %211 = arith.cmpi eq, %16, %210 : vector<1x512xi32>
    %212 = vector.shape_cast %211 : vector<1x512xi1> to vector<1x512xi1>
    %213 = vector.broadcast %212 : vector<1x512xi1> to vector<16x512xi1>
    %214 = arith.select %213, %208, %206 : vector<16x512xi1>, vector<16x512xf32>
    %c31_i32 = arith.constant 31 : i32
    %215 = vector.broadcast %c31_i32 : i32 to vector<1x512xi32>
    %216 = arith.cmpi eq, %16, %215 : vector<1x512xi32>
    %217 = vector.shape_cast %216 : vector<1x512xi1> to vector<1x512xi1>
    %218 = vector.broadcast %217 : vector<1x512xi1> to vector<16x512xi1>
    %219 = arith.select %218, %209, %214 : vector<16x512xi1>, vector<16x512xf32>
    %c0_196 = arith.constant 0 : index
    %c128_197 = arith.constant 128 : index
    %220 = vector.load %arg10[%c0_196, %c128_197] : memref<16x704xf32, #tpu.memory_space<vmem>>, vector<16x512xf32>
    tpu.vector_store %arg10[%c0_196, %c128_197], %219 {strides = array<i32>} : memref<16x704xf32, #tpu.memory_space<vmem>>, vector<16x512xf32>,
    %c0_198 = arith.constant 0 : index
    %c129 = arith.constant 129 : index
    %221 = vector.load %arg10[%c0_198, %c129] : memref<16x704xf32, #tpu.memory_space<vmem>>, vector<16x1xf32>
    %c0_199 = arith.constant 0 : index
    %c127 = arith.constant 127 : index
    %222 = vector.load %arg10[%c0_199, %c127] : memref<16x704xf32, #tpu.memory_space<vmem>>, vector<16x1xf32>
    tpu.vector_store %arg10[%c0_199, %c127], %221 {strides = array<i32>} : memref<16x704xf32, #tpu.memory_space<vmem>>, vector<16x1xf32>,
    %c0_200 = arith.constant 0 : index
    %c159 = arith.constant 159 : index
    %223 = vector.load %arg10[%c0_200, %c159] : memref<16x704xf32, #tpu.memory_space<vmem>>, vector<16x18xf32>
    %c0_201 = arith.constant 0 : index
    %c95 = arith.constant 95 : index
    %224 = vector.load %arg10[%c0_201, %c95] : memref<16x704xf32, #tpu.memory_space<vmem>>, vector<16x18xf32>
    tpu.vector_store %arg10[%c0_201, %c95], %223 {strides = array<i32>} : memref<16x704xf32, #tpu.memory_space<vmem>>, vector<16x18xf32>,
    %c0_202 = arith.constant 0 : index
    %c575 = arith.constant 575 : index
    %225 = vector.load %arg10[%c0_202, %c575] : memref<16x704xf32, #tpu.memory_space<vmem>>, vector<16x18xf32>
    %c0_203 = arith.constant 0 : index
    %c639 = arith.constant 639 : index
    %226 = vector.load %arg10[%c0_203, %c639] : memref<16x704xf32, #tpu.memory_space<vmem>>, vector<16x18xf32>
    tpu.vector_store %arg10[%c0_203, %c639], %225 {strides = array<i32>} : memref<16x704xf32, #tpu.memory_space<vmem>>, vector<16x18xf32>,
    %c0_204 = arith.constant 0 : index
    %c95_205 = arith.constant 95 : index
    %227 = vector.load %arg10[%c0_204, %c95_205] : memref<16x704xf32, #tpu.memory_space<vmem>>, vector<16x512xf32>
    %c0_206 = arith.constant 0 : index
    %c0_207 = arith.constant 0 : index
    %228 = vector.load %arg9[%c0_206, %c0_207] : memref<144x512xf32, #tpu.memory_space<vmem>>, vector<16x512xf32>
    tpu.vector_store %arg9[%c0_206, %c0_207], %227 {strides = array<i32>} : memref<144x512xf32, #tpu.memory_space<vmem>>, vector<16x512xf32>,
    %c0_208 = arith.constant 0 : index
    %c96_209 = arith.constant 96 : index
    %229 = vector.load %arg10[%c0_208, %c96_209] : memref<16x704xf32, #tpu.memory_space<vmem>>, vector<16x512xf32>
    %c16_210 = arith.constant 16 : index
    %c0_211 = arith.constant 0 : index
    %230 = vector.load %arg9[%c16_210, %c0_211] : memref<144x512xf32, #tpu.memory_space<vmem>>, vector<16x512xf32>
    tpu.vector_store %arg9[%c16_210, %c0_211], %229 {strides = array<i32>} : memref<144x512xf32, #tpu.memory_space<vmem>>, vector<16x512xf32>,
    %c0_212 = arith.constant 0 : index
    %c97 = arith.constant 97 : index
    %231 = vector.load %arg10[%c0_212, %c97] : memref<16x704xf32, #tpu.memory_space<vmem>>, vector<16x512xf32>
    %c32_213 = arith.constant 32 : index
    %c0_214 = arith.constant 0 : index
    %232 = vector.load %arg9[%c32_213, %c0_214] : memref<144x512xf32, #tpu.memory_space<vmem>>, vector<16x512xf32>
    tpu.vector_store %arg9[%c32_213, %c0_214], %231 {strides = array<i32>} : memref<144x512xf32, #tpu.memory_space<vmem>>, vector<16x512xf32>,
    %c0_215 = arith.constant 0 : index
    %c127_216 = arith.constant 127 : index
    %233 = vector.load %arg10[%c0_215, %c127_216] : memref<16x704xf32, #tpu.memory_space<vmem>>, vector<16x512xf32>
    %c48_217 = arith.constant 48 : index
    %c0_218 = arith.constant 0 : index
    %234 = vector.load %arg9[%c48_217, %c0_218] : memref<144x512xf32, #tpu.memory_space<vmem>>, vector<16x512xf32>
    tpu.vector_store %arg9[%c48_217, %c0_218], %233 {strides = array<i32>} : memref<144x512xf32, #tpu.memory_space<vmem>>, vector<16x512xf32>,
    %c0_219 = arith.constant 0 : index
    %c128_220 = arith.constant 128 : index
    %235 = vector.load %arg10[%c0_219, %c128_220] : memref<16x704xf32, #tpu.memory_space<vmem>>, vector<16x512xf32>
    %c64_221 = arith.constant 64 : index
    %c0_222 = arith.constant 0 : index
    %236 = vector.load %arg9[%c64_221, %c0_222] : memref<144x512xf32, #tpu.memory_space<vmem>>, vector<16x512xf32>
    tpu.vector_store %arg9[%c64_221, %c0_222], %235 {strides = array<i32>} : memref<144x512xf32, #tpu.memory_space<vmem>>, vector<16x512xf32>,
    %c0_223 = arith.constant 0 : index
    %c129_224 = arith.constant 129 : index
    %237 = vector.load %arg10[%c0_223, %c129_224] : memref<16x704xf32, #tpu.memory_space<vmem>>, vector<16x512xf32>
    %c80_225 = arith.constant 80 : index
    %c0_226 = arith.constant 0 : index
    %238 = vector.load %arg9[%c80_225, %c0_226] : memref<144x512xf32, #tpu.memory_space<vmem>>, vector<16x512xf32>
    tpu.vector_store %arg9[%c80_225, %c0_226], %237 {strides = array<i32>} : memref<144x512xf32, #tpu.memory_space<vmem>>, vector<16x512xf32>,
    %c0_227 = arith.constant 0 : index
    %c159_228 = arith.constant 159 : index
    %239 = vector.load %arg10[%c0_227, %c159_228] : memref<16x704xf32, #tpu.memory_space<vmem>>, vector<16x512xf32>
    %c96_229 = arith.constant 96 : index
    %c0_230 = arith.constant 0 : index
    %240 = vector.load %arg9[%c96_229, %c0_230] : memref<144x512xf32, #tpu.memory_space<vmem>>, vector<16x512xf32>
    tpu.vector_store %arg9[%c96_229, %c0_230], %239 {strides = array<i32>} : memref<144x512xf32, #tpu.memory_space<vmem>>, vector<16x512xf32>,
    %c0_231 = arith.constant 0 : index
    %c160 = arith.constant 160 : index
    %241 = vector.load %arg10[%c0_231, %c160] : memref<16x704xf32, #tpu.memory_space<vmem>>, vector<16x512xf32>
    %c112_232 = arith.constant 112 : index
    %c0_233 = arith.constant 0 : index
    %242 = vector.load %arg9[%c112_232, %c0_233] : memref<144x512xf32, #tpu.memory_space<vmem>>, vector<16x512xf32>
    tpu.vector_store %arg9[%c112_232, %c0_233], %241 {strides = array<i32>} : memref<144x512xf32, #tpu.memory_space<vmem>>, vector<16x512xf32>,
    %c0_234 = arith.constant 0 : index
    %c161 = arith.constant 161 : index
    %243 = vector.load %arg10[%c0_234, %c161] : memref<16x704xf32, #tpu.memory_space<vmem>>, vector<16x512xf32>
    %c128_235 = arith.constant 128 : index
    %c0_236 = arith.constant 0 : index
    %244 = vector.load %arg9[%c128_235, %c0_236] : memref<144x512xf32, #tpu.memory_space<vmem>>, vector<16x512xf32>
    tpu.vector_store %arg9[%c128_235, %c0_236], %243 {strides = array<i32>} : memref<144x512xf32, #tpu.memory_space<vmem>>, vector<16x512xf32>,
    %c0_237 = arith.constant 0 : index
    %c0_238 = arith.constant 0 : index
    %245 = vector.load %arg4[%c0_237, %c0_238] : memref<16x144xf32, #tpu.memory_space<vmem>>, vector<16x144xf32>
    %c0_239 = arith.constant 0 : index
    %c0_240 = arith.constant 0 : index
    %246 = vector.load %arg5[%c0_239, %c0_240] : memref<16x1xf32, #tpu.memory_space<vmem>>, vector<16x1xf32>
    %c0_241 = arith.constant 0 : index
    %c0_242 = arith.constant 0 : index
    %247 = vector.load %arg9[%c0_241, %c0_242] : memref<144x512xf32, #tpu.memory_space<vmem>>, vector<144x512xf32>
    %cst_243 = arith.constant dense<0.000000e+00> : vector<16x512xf32>
    %248 = tpu.matmul %245, %247, %cst_243 {dimension_numbers = #tpu.dot_dimension_numbers<[1], [0], [0], [1], [0, 0, 1, 1], [], []>} : vector<16x144xf32>, vector<144x512xf32>, vector<16x512xf32> -> vector<16x512xf32>
    %249 = vector.broadcast %246 : vector<16x1xf32> to vector<16x512xf32>
    %250 = arith.addf %248, %249 : vector<16x512xf32>
    %c0_244 = arith.constant 0 : index
    %c0_245 = arith.constant 0 : index
    %c264_246 = arith.constant 264 : index
    %251 = vector.load %arg1[%c0_244, %c0_245, %c264_246] : memref<1x16x1040xf32, #tpu.memory_space<vmem>>, vector<1x16x512xf32>
    %252 = vector.shape_cast %251 : vector<1x16x512xf32> to vector<16x512xf32>
    %cst_247 = arith.constant 1.000000e+00 : f32
    %253 = vector.broadcast %cst_247 : f32 to vector<16x512xf32>
    %254 = arith.subf %253, %91 : vector<16x512xf32>
    %255 = arith.mulf %252, %254 : vector<16x512xf32>
    %256 = arith.mulf %250, %91 : vector<16x512xf32>
    %257 = arith.addf %255, %256 : vector<16x512xf32>
    %c0_248 = arith.constant 0 : index
    %c0_249 = arith.constant 0 : index
    %c0_250 = arith.constant 0 : index
    %258 = vector.load %arg8[%c0_248, %c0_249, %c0_250] : memref<1x16x512xf32, #tpu.memory_space<vmem>>, vector<1x16x512xf32>
    %259 = vector.shape_cast %258 : vector<1x16x512xf32> to vector<16x512xf32>
    %260 = vector.shape_cast %257 : vector<16x512xf32> to vector<1x16x512xf32>
    tpu.vector_store %arg8[%c0_248, %c0_249, %c0_250], %260 {strides = array<i32>} : memref<1x16x512xf32, #tpu.memory_space<vmem>>, vector<1x16x512xf32>,
    return
  }
  func.func @transform_0(%arg0: i32) -> (i32, i32, i32) {
    %c0_i32 = arith.constant 0 : i32
    %c0_i32_0 = arith.constant 0 : i32
    %c0_i32_1 = arith.constant 0 : i32
    return %arg0, %c0_i32, %c0_i32_0 : i32, i32, i32
  }
  func.func @transform_1(%arg0: i32) -> (i32, i32, i32) {
    %c0_i32 = arith.constant 0 : i32
    %c0_i32_0 = arith.constant 0 : i32
    %c0_i32_1 = arith.constant 0 : i32
    %c0_i32_2 = arith.constant 0 : i32
    return %c0_i32, %c0_i32_0, %c0_i32_1 : i32, i32, i32
  }
  func.func @transform_2(%arg0: i32) -> (i32, i32, i32) {
    %c0_i32 = arith.constant 0 : i32
    %c0_i32_0 = arith.constant 0 : i32
    %c0_i32_1 = arith.constant 0 : i32
    %c0_i32_2 = arith.constant 0 : i32
    return %c0_i32, %c0_i32_0, %c0_i32_1 : i32, i32, i32
  }
  func.func @transform_3(%arg0: i32) -> (i32, i32) {
    %c0_i32 = arith.constant 0 : i32
    %c0_i32_0 = arith.constant 0 : i32
    %c0_i32_1 = arith.constant 0 : i32
    return %c0_i32, %c0_i32_0 : i32, i32
  }
  func.func @transform_4(%arg0: i32) -> (i32, i32) {
    %c0_i32 = arith.constant 0 : i32
    %c0_i32_0 = arith.constant 0 : i32
    %c0_i32_1 = arith.constant 0 : i32
    return %c0_i32, %c0_i32_0 : i32, i32
  }
  func.func @transform_5(%arg0: i32) -> (i32, i32) {
    %c0_i32 = arith.constant 0 : i32
    %c0_i32_0 = arith.constant 0 : i32
    %c0_i32_1 = arith.constant 0 : i32
    return %c0_i32, %c0_i32_0 : i32, i32
  }
  func.func @transform_6(%arg0: i32) -> (i32, i32) {
    %c0_i32 = arith.constant 0 : i32
    %c0_i32_0 = arith.constant 0 : i32
    %c0_i32_1 = arith.constant 0 : i32
    return %c0_i32, %c0_i32_0 : i32, i32
  }
  func.func @transform_7(%arg0: i32) -> (i32, i32, i32) {
    %c0_i32 = arith.constant 0 : i32
    %c0_i32_0 = arith.constant 0 : i32
    %c0_i32_1 = arith.constant 0 : i32
    return %arg0, %c0_i32, %c0_i32_0 : i32, i32, i32
  }
}

</mosaic_0001>

<llo_original>
// kernel: tpu_custom_call.1
$region0: #{tpu_custom_call.1}
  #allocation0 [shape = 'u32[]', space=smem, size = 0x4, offset = 0x4, fixed_abs, tag = 'smem constant byte address 0x4 - core index']
  #allocation1 [shape = 'u32[144,128]{1,0:T(1,128)}', space=vmem, size = 0x12000, scoped, tag = 'internal scratch']
  #allocation2 [shape = 'f32[144,512]{1,0:T(8,128)}', space=vmem, size = 0x48000, scoped, tag = 'scratch operand']
  #allocation3 [shape = 'f32[16,704]{1,0:T(8,128)}', space=vmem, size = 0xc000, scoped, tag = 'scratch operand']
  %s0 = inlined_call_operand.hbm [shape: f32[2,16,1040], index: 0, kind: input, shape index: {}]
  %s1 = inlined_call_operand.vmem [shape: f32[4,4,144], index: 1, kind: input, shape index: {}]
  %s2 = inlined_call_operand.vmem [shape: f32[4,4,1], index: 2, kind: input, shape index: {}]
  %s3 = inlined_call_operand.hbm [shape: f32[16,144], index: 3, kind: input, shape index: {}]
  %s4 = inlined_call_operand.vmem [shape: f32[16,1], index: 4, kind: input, shape index: {}]
  %s5 = inlined_call_operand.vmem [shape: f32[20,144], index: 5, kind: input, shape index: {}]
  %s6 = inlined_call_operand.vmem [shape: f32[20,1], index: 6, kind: input, shape index: {}]
  %s7 = inlined_call_operand.hbm [shape: f32[2,16,512], index: 7, kind: output, shape index: {}]
  %s8 = sld [smem:[#allocation0]]
  $region69: #{tpu_custom_call.1} parent=0
    _
  %s10 = ssub.s32 1, %s8
  %s11 = scalar_select 0, %s10, %s8
  $region1: #{tpu_custom_call.1} parent=0
    #allocation4 [shape = 'u8[147456]{0}', space=vmem, size = 0x24000, scoped, tag = 'input window, operand 0']
    #allocation5 [shape = 's32[2]{0}', space=sflag, size = 0x8, scoped, tag = 'scoped memory for tpu_custom_call.1']
    #allocation6 [shape = 's32[2]{0}', space=sflag, size = 0x8, scoped, tag = 'scoped memory for tpu_custom_call.1']
    #allocation7 [shape = 'u8[16384]{0}', space=vmem, size = 0x4000, scoped, tag = 'input window, operand 3, single buffered']
    #allocation8 [shape = 's32[1]{0}', space=sflag, size = 0x4, scoped, tag = 'scoped memory for tpu_custom_call.1']
    #allocation9 [shape = 'u8[65536]{0}', space=vmem, size = 0x10000, scoped, tag = 'output window, operand 0']
    %12 = vsyncpa [#allocation5], 0
    %s13 = scalar_lea.sflag [#allocation5], 1
    %14 = vsyncpa %s13, 0
    %15 = vsyncpa [#allocation8], 0
    %16 = vsyncpa [#allocation6], 0
    %s17 = scalar_lea.sflag [#allocation6], 1
    %18 = vsyncpa %s17, 0
    loop: start=0, step=1, limit=4
    $region2: #{tpu_custom_call.1} parent=1 // loop_pre_header
      _
    $region3: #{tpu_custom_call.1} parent=1 // loop_header
      %s20 = sphi 0, %s24
      %p21 = scmp.ge.s32.totalorder %s20, 4
      %s30 = sphi 0, %s32
      %s33 = sphi 0, %s30
      %s34 = sphi 0, %s33
      %s50 = sphi 0, %s34
      %s54 = sphi 0, %s54
      %s56 = sphi 0, %s54
      %s57 = sphi 0, %s56
      %s71 = sphi 0, %s57
      %s75 = sphi 0, %s75
      %s77 = sphi 0, %s75
      %s78 = sphi 0, %s77
      %s92 = sphi 0, %s78
      %s96 = sphi 0, %s96
      %s98 = sphi 0, %s96
      %s99 = sphi 0, %s98
      %s113 = sphi 0, %s99
      %s117 = sphi 0, %s117
      %s119 = sphi 0, %s117
      %s120 = sphi 0, %s119
      %s134 = sphi 0, %s120
      %s138 = sphi 0, %s138
      %s140 = sphi 0, %s138
      %s141 = sphi 0, %s140
      %s155 = sphi 0, %s141
      %s159 = sphi 0, %s159
      %s161 = sphi 0, %s159
      %s162 = sphi 0, %s161
      %s176 = sphi 0, %s162
      %s182 = sphi 0, %s184
      %s185 = sphi 0, %s182
      %s186 = sphi 0, %s185
      %s202 = sphi 0, %s186
    $region4: #{tpu_custom_call.1} parent=1 // loop_header_branch
      %23 = sbr.rel (%p21) target = $region8
    $region5: #{tpu_custom_call.1} parent=1 // loop_body
      %s25 = ssub.s32 %s20, 1
      %s26 = ssub.s32 %s20, 2
      %s27 = sadd.s32 %s20, 1
      %s28 = ssub.s32 %s20, %s27
      %p29 = scmp.eq.s32.totalorder %s28, 0
      %s31 = sadd.s32 %s30, 1
      %s32 = scalar_select %p29, %s30, %s31
      %p35 = pneg %p29
      %p36 = scmp.eq.s32.totalorder %s20, 1
      %p37 = por %p35, %p36
      %p38 = scmp.ne.s32.totalorder %s30, %s33
      %p39 = scmp.eq.s32.totalorder %s20, 0
      %p40 = por %p38, %p39
      %p41 = scmp.ne.s32.totalorder %s30, %s33
      %p42 = scmp.eq.s32.totalorder %s25, 1
      %p43 = por %p41, %p42
      %p44 = scmp.ne.s32.totalorder %s33, %s34
      %p45 = scmp.eq.s32.totalorder %s25, 0
      %p46 = por %p44, %p45
      %p47 = scmp.ne.s32.totalorder %s33, %s34
      %p48 = scmp.eq.s32.totalorder %s26, 1
      %p49 = por %p47, %p48
      %p51 = scmp.ne.s32.totalorder %s34, %s50
      %p52 = scmp.eq.s32.totalorder %s26, 0
      %p53 = por %p51, %p52
      %s55 = sadd.s32 %s54, 1
      %p58 = scmp.eq.s32.totalorder %s20, 1
      %p59 = scmp.ne.s32.totalorder %s54, %s56
      %p60 = scmp.eq.s32.totalorder %s20, 0
      %p61 = por %p59, %p60
      %p62 = scmp.ne.s32.totalorder %s54, %s56
      %p63 = scmp.eq.s32.totalorder %s25, 1
      %p64 = por %p62, %p63
      %p65 = scmp.ne.s32.totalorder %s56, %s57
      %p66 = scmp.eq.s32.totalorder %s25, 0
      %p67 = por %p65, %p66
      %p68 = scmp.ne.s32.totalorder %s56, %s57
      %p69 = scmp.eq.s32.totalorder %s26, 1
      %p70 = por %p68, %p69
      %p72 = scmp.ne.s32.totalorder %s57, %s71
      %p73 = scmp.eq.s32.totalorder %s26, 0
      %p74 = por %p72, %p73
      %s76 = sadd.s32 %s75, 1
      %p79 = scmp.eq.s32.totalorder %s20, 1
      %p80 = scmp.ne.s32.totalorder %s75, %s77
      %p81 = scmp.eq.s32.totalorder %s20, 0
      %p82 = por %p80, %p81
      %p83 = scmp.ne.s32.totalorder %s75, %s77
      %p84 = scmp.eq.s32.totalorder %s25, 1
      %p85 = por %p83, %p84
      %p86 = scmp.ne.s32.totalorder %s77, %s78
      %p87 = scmp.eq.s32.totalorder %s25, 0
      %p88 = por %p86, %p87
      %p89 = scmp.ne.s32.totalorder %s77, %s78
      %p90 = scmp.eq.s32.totalorder %s26, 1
      %p91 = por %p89, %p90
      %p93 = scmp.ne.s32.totalorder %s78, %s92
      %p94 = scmp.eq.s32.totalorder %s26, 0
      %p95 = por %p93, %p94
      %s97 = sadd.s32 %s96, 1
      %p100 = scmp.eq.s32.totalorder %s20, 1
      %p101 = scmp.ne.s32.totalorder %s96, %s98
      %p102 = scmp.eq.s32.totalorder %s20, 0
      %p103 = por %p101, %p102
      %p104 = scmp.ne.s32.totalorder %s96, %s98
      %p105 = scmp.eq.s32.totalorder %s25, 1
      %p106 = por %p104, %p105
      %p107 = scmp.ne.s32.totalorder %s98, %s99
      %p108 = scmp.eq.s32.totalorder %s25, 0
      %p109 = por %p107, %p108
      %p110 = scmp.ne.s32.totalorder %s98, %s99
      %p111 = scmp.eq.s32.totalorder %s26, 1
      %p112 = por %p110, %p111
      %p114 = scmp.ne.s32.totalorder %s99, %s113
      %p115 = scmp.eq.s32.totalorder %s26, 0
      %p116 = por %p114, %p115
      %s118 = sadd.s32 %s117, 1
      %p121 = scmp.eq.s32.totalorder %s20, 1
      %p122 = scmp.ne.s32.totalorder %s117, %s119
      %p123 = scmp.eq.s32.totalorder %s20, 0
      %p124 = por %p122, %p123
      %p125 = scmp.ne.s32.totalorder %s117, %s119
      %p126 = scmp.eq.s32.totalorder %s25, 1
      %p127 = por %p125, %p126
      %p128 = scmp.ne.s32.totalorder %s119, %s120
      %p129 = scmp.eq.s32.totalorder %s25, 0
      %p130 = por %p128, %p129
      %p131 = scmp.ne.s32.totalorder %s119, %s120
      %p132 = scmp.eq.s32.totalorder %s26, 1
      %p133 = por %p131, %p132
      %p135 = scmp.ne.s32.totalorder %s120, %s134
      %p136 = scmp.eq.s32.totalorder %s26, 0
      %p137 = por %p135, %p136
      %s139 = sadd.s32 %s138, 1
      %p142 = scmp.eq.s32.totalorder %s20, 1
      %p143 = scmp.ne.s32.totalorder %s138, %s140
      %p144 = scmp.eq.s32.totalorder %s20, 0
      %p145 = por %p143, %p144
      %p146 = scmp.ne.s32.totalorder %s138, %s140
      %p147 = scmp.eq.s32.totalorder %s25, 1
      %p148 = por %p146, %p147
      %p149 = scmp.ne.s32.totalorder %s140, %s141
      %p150 = scmp.eq.s32.totalorder %s25, 0
      %p151 = por %p149, %p150
      %p152 = scmp.ne.s32.totalorder %s140, %s141
      %p153 = scmp.eq.s32.totalorder %s26, 1
      %p154 = por %p152, %p153
      %p156 = scmp.ne.s32.totalorder %s141, %s155
      %p157 = scmp.eq.s32.totalorder %s26, 0
      %p158 = por %p156, %p157
      %s160 = sadd.s32 %s159, 1
      %p163 = scmp.eq.s32.totalorder %s20, 1
      %p164 = scmp.ne.s32.totalorder %s159, %s161
      %p165 = scmp.eq.s32.totalorder %s20, 0
      %p166 = por %p164, %p165
      %p167 = scmp.ne.s32.totalorder %s159, %s161
      %p168 = scmp.eq.s32.totalorder %s25, 1
      %p169 = por %p167, %p168
      %p170 = scmp.ne.s32.totalorder %s161, %s162
      %p171 = scmp.eq.s32.totalorder %s25, 0
      %p172 = por %p170, %p171
      %p173 = scmp.ne.s32.totalorder %s161, %s162
      %p174 = scmp.eq.s32.totalorder %s26, 1
      %p175 = por %p173, %p174
      %p177 = scmp.ne.s32.totalorder %s162, %s176
      %p178 = scmp.eq.s32.totalorder %s26, 0
      %p179 = por %p177, %p178
      %s180 = ssub.s32 %s20, %s27
      %p181 = scmp.eq.s32.totalorder %s180, 0
      %s183 = sadd.s32 %s182, 1
      %s184 = scalar_select %p181, %s182, %s183
      %p187 = pneg %p181
      %p188 = scmp.eq.s32.totalorder %s20, 1
      %p189 = por %p187, %p188
      %p190 = scmp.ne.s32.totalorder %s182, %s185
      %p191 = scmp.eq.s32.totalorder %s20, 0
      %p192 = por %p190, %p191
      %p193 = scmp.ne.s32.totalorder %s182, %s185
      %p194 = scmp.eq.s32.totalorder %s25, 1
      %p195 = por %p193, %p194
      %p196 = scmp.ne.s32.totalorder %s185, %s186
      %p197 = scmp.eq.s32.totalorder %s25, 0
      %p198 = por %p196, %p197
      %p199 = scmp.ne.s32.totalorder %s185, %s186
      %p200 = scmp.eq.s32.totalorder %s26, 1
      %p201 = por %p199, %p200
      %p203 = scmp.ne.s32.totalorder %s186, %s202
      %p204 = scmp.eq.s32.totalorder %s26, 0
      %p205 = por %p203, %p204
      %p206 = scmp.le.s32.totalorder 1, %s20
      %p207 = scmp.lt.s32.totalorder %s20, 3
      %p208 = pnand %p206, %p207
      %p209 = pneg %p208
      // Predicated region
      $region9: #{tpu_custom_call.1} parent=5 // pred_check
        _
      $region10: #{tpu_custom_call.1} parent=5 // pred_check_branch
        %211 = sbr.rel (%p208) target = $region12
      $region11: #{tpu_custom_call.1} parent=5 // pred_region
        %s212 = ssub.s32 %s20, 1
        // Predicated region
        $region13: #{tpu_custom_call.1} parent=11 // pred_check
          %p213 = pneg %p67
        $region14: #{tpu_custom_call.1} parent=11 // pred_check_branch
          %215 = sbr.rel (%p213) target = $region16
        $region15: #{tpu_custom_call.1} parent=11 // pred_region
          _
        $region16: #{tpu_custom_call.1} parent=11 // pred_fallthru
          _
        // Predicated region
        $region17: #{tpu_custom_call.1} parent=11 // pred_check
          %p216 = pneg %p88
        $region18: #{tpu_custom_call.1} parent=11 // pred_check_branch
          %218 = sbr.rel (%p216) target = $region20
        $region19: #{tpu_custom_call.1} parent=11 // pred_region
          _
        $region20: #{tpu_custom_call.1} parent=11 // pred_fallthru
          _
        // Predicated region
        $region21: #{tpu_custom_call.1} parent=11 // pred_check
          %p219 = pneg %p109
        $region22: #{tpu_custom_call.1} parent=11 // pred_check_branch
          %221 = sbr.rel (%p219) target = $region24
        $region23: #{tpu_custom_call.1} parent=11 // pred_region
          %s223 = ssub.s32 512, 512
          %224 = vsyncadd [#allocation8], %s223
          %s225 = sshll.u32 [#allocation7], 4
          %s226 = int_to_ptr.vmem [resolvable:$true] %s225
          %231 = dma.hbm_to_vmem [thread:$0]  %s3, 512, %s226, [#allocation8], 256, 256, 16
        $region24: #{tpu_custom_call.1} parent=11 // pred_fallthru
          _
        // Predicated region
        $region25: #{tpu_custom_call.1} parent=11 // pred_check
          %p232 = pneg %p130
        $region26: #{tpu_custom_call.1} parent=11 // pred_check_branch
          %234 = sbr.rel (%p232) target = $region28
        $region27: #{tpu_custom_call.1} parent=11 // pred_region
          _
        $region28: #{tpu_custom_call.1} parent=11 // pred_fallthru
          _
        // Predicated region
        $region29: #{tpu_custom_call.1} parent=11 // pred_check
          %p235 = pneg %p151
        $region30: #{tpu_custom_call.1} parent=11 // pred_check_branch
          %237 = sbr.rel (%p235) target = $region32
        $region31: #{tpu_custom_call.1} parent=11 // pred_region
          _
        $region32: #{tpu_custom_call.1} parent=11 // pred_fallthru
          _
        // Predicated region
        $region33: #{tpu_custom_call.1} parent=11 // pred_check
          %p238 = pneg %p172
        $region34: #{tpu_custom_call.1} parent=11 // pred_check_branch
          %240 = sbr.rel (%p238) target = $region36
        $region35: #{tpu_custom_call.1} parent=11 // pred_region
          _
        $region36: #{tpu_custom_call.1} parent=11 // pred_fallthru
          _
      $region12: #{tpu_custom_call.1} parent=5 // pred_fallthru
        _
      %p241 = scmp.lt.s32.totalorder %s20, 2
      // Predicated region
      $region37: #{tpu_custom_call.1} parent=5 // pred_check
        %p242 = pneg %p241
      $region38: #{tpu_custom_call.1} parent=5 // pred_check_branch
        %244 = sbr.rel (%p242) target = $region40
      $region39: #{tpu_custom_call.1} parent=5 // pred_region
        // Predicated region
        $region41: #{tpu_custom_call.1} parent=39 // pred_check
          %p245 = pneg %p40
        $region42: #{tpu_custom_call.1} parent=39 // pred_check_branch
          %247 = sbr.rel (%p245) target = $region44
        $region43: #{tpu_custom_call.1} parent=39 // pred_region
          %s248 = sand.u32 %s30, 1
          %s249 = scalar_lea.sflag [#allocation5], %s248
          %s250 = sand.u32 %s30, 1
          %s251 = smul.addr %s250, 144
          %s252 = scalar_lea.vmem [#allocation4], %s251
          %s254 = ssub.s32 2304, 2304
          %255 = vsyncadd %s249, %s254
          %s256 = smul.addr %s20, 18
          %s257 = smul.addr %s256, 128
          %s258 = scalar_lea.hbm %s0, %s257
          %s259 = sshll.u32 %s252, 4
          %s260 = int_to_ptr.vmem [resolvable:$true] %s259
          %265 = dma.hbm_to_vmem [thread:$0]  %s258, 2304, %s260, %s249, 1152, 1152, 72
        $region44: #{tpu_custom_call.1} parent=39 // pred_fallthru
          _
      $region40: #{tpu_custom_call.1} parent=5 // pred_fallthru
        _
      %p266 = scmp.le.s32.totalorder 1, %s20
      %p267 = scmp.lt.s32.totalorder %s20, 3
      %p268 = pnand %p266, %p267
      %p269 = pneg %p268
      // Predicated region
      $region45: #{tpu_custom_call.1} parent=5 // pred_check
        _
      $region46: #{tpu_custom_call.1} parent=5 // pred_check_branch
        %271 = sbr.rel (%p268) target = $region48
      $region47: #{tpu_custom_call.1} parent=5 // pred_region
        %s272 = ssub.s32 %s20, 1
        %s273 = sand.u32 %s33, 1
        %s274 = scalar_lea.sflag [#allocation5], %s273
        %s275 = sand.u32 %s33, 1
        %s276 = smul.addr %s275, 144
        %s277 = scalar_lea.vmem [#allocation4], %s276
        // Predicated region
        $region49: #{tpu_custom_call.1} parent=47 // pred_check
          %p278 = pneg %p46
        $region50: #{tpu_custom_call.1} parent=47 // pred_check_branch
          %280 = sbr.rel (%p278) target = $region52
        $region51: #{tpu_custom_call.1} parent=47 // pred_region
          %281 = dma.done %s274, 2304
        $region52: #{tpu_custom_call.1} parent=47 // pred_fallthru
          _
        // Predicated region
        $region53: #{tpu_custom_call.1} parent=47 // pred_check
          %p282 = pneg %p109
        $region54: #{tpu_custom_call.1} parent=47 // pred_check_branch
          %284 = sbr.rel (%p282) target = $region56
        $region55: #{tpu_custom_call.1} parent=47 // pred_region
          %285 = dma.done [#allocation8], 512
        $region56: #{tpu_custom_call.1} parent=47 // pred_fallthru
          _
        %s286 = sand.u32 %s33, 1
        %s287 = scalar_lea.sflag [#allocation5], %s286
        %s288 = sand.u32 %s33, 1
        %s289 = smul.addr %s288, 144
        %s290 = scalar_lea.vmem [#allocation4], %s289
        %p291 = pneg %p46
        %p292 = pneg %p43
        %p293 = pneg %p67
        %p294 = pneg %p64
        %p295 = pneg %p88
        %p296 = pneg %p85
        %p297 = pneg %p109
        %p298 = pneg %p106
        %p299 = pneg %p130
        %p300 = pneg %p127
        %p301 = pneg %p151
        %p302 = pneg %p148
        %p303 = pneg %p172
        %p304 = pneg %p169
        %p305 = pneg %p198
        %p306 = pneg %p195
        %s307 = sand.u32 %s185, 1
        %s308 = scalar_lea.sflag [#allocation6], %s307
        %s309 = sand.u32 %s185, 1
        %s310 = smul.addr %s309, 64
        %s311 = scalar_lea.vmem [#allocation9], %s310
        %v312 = vlaneseq
        %v313 = vand.u32 %v312, 127
        %v314 = vadd.s32 %v313, 128
        %v315 = vadd.s32 %v313, 256
        %v316 = vadd.s32 %v313, 384
        %vm317 = vcmp.lt.s32.totalorder %v313, 0
        %v318 = vsub.s32 0, %v313
        %v319 = vsel %vm317, %v318, %v313
        %v320 = vshrl.u32 %v319, 5
        %v321 = vand.u32 %v319, 31
        %v322 = vsub.s32 0, %v321
        %v323 = vsel %vm317, %v322, %v321
        %vm324 = vcmp.lt.s32.totalorder %v314, 0
        %v325 = vsub.s32 0, %v314
        %v326 = vsel %vm324, %v325, %v314
        %v327 = vshrl.u32 %v326, 5
        %v328 = vand.u32 %v326, 31
        %v329 = vsub.s32 0, %v328
        %v330 = vsel %vm324, %v329, %v328
        %vm331 = vcmp.lt.s32.totalorder %v315, 0
        %v332 = vsub.s32 0, %v315
        %v333 = vsel %vm331, %v332, %v315
        %v334 = vshrl.u32 %v333, 5
        %v335 = vand.u32 %v333, 31
        %v336 = vsub.s32 0, %v335
        %v337 = vsel %vm331, %v336, %v335
        %vm338 = vcmp.lt.s32.totalorder %v316, 0
        %v339 = vsub.s32 0, %v316
        %v340 = vsel %vm338, %v339, %v316
        %v341 = vshrl.u32 %v340, 5
        %v342 = vand.u32 %v340, 31
        %v343 = vsub.s32 0, %v342
        %v344 = vsel %vm338, %v343, %v342
        %vm345 = vcmp.ne.s32.totalorder %v323, 0
        %vm346 = vcmp.ne.s32.totalorder %v330, 0
        %vm347 = vcmp.ne.s32.totalorder %v337, 0
        %vm348 = vcmp.ne.s32.totalorder %v344, 0
        %vm349 = vcmp.lt.s32.totalorder %v323, 0
        %vm350 = vcmp.lt.s32.totalorder %v330, 0
        %vm351 = vcmp.lt.s32.totalorder %v337, 0
        %vm352 = vcmp.lt.s32.totalorder %v344, 0
        %vm353 = vmand %vm349, %vm345
        %vm354 = vmand %vm350, %vm346
        %vm355 = vmand %vm351, %vm347
        %vm356 = vmand %vm352, %vm348
        %v357 = vadd.s32 %v323, 32
        %v358 = vadd.s32 %v330, 32
        %v359 = vadd.s32 %v337, 32
        %v360 = vadd.s32 %v344, 32
        %v361 = vsel %vm353, %v357, %v323
        %v362 = vsel %vm354, %v358, %v330
        %v363 = vsel %vm355, %v359, %v337
        %v364 = vsel %vm356, %v360, %v344
        %vm365 = vcmp.lt.s32.totalorder %v361, 16
        %vm366 = vcmp.lt.s32.totalorder %v362, 16
        %vm367 = vcmp.lt.s32.totalorder %v363, 16
        %vm368 = vcmp.lt.s32.totalorder %v364, 16
        %v369 = vld [vmem:[%s277 + $0x8] sm:$0xff]
        %v370 = vld [vmem:[%s277 + $0x10] sm:$0xff]
        %v371 = vld [vmem:[%s277 + $0x18] sm:$0xff]
        %v372 = vld [vmem:[%s277 + $0x20] sm:$0xff]
        %v373 = vld [vmem:[%s277 + $0x28] sm:$0xff]
        %v374 = vld [vmem:[%s277 + $0x50] sm:$0xff]
        %v375 = vld [vmem:[%s277 + $0x58] sm:$0xff]
        %v376 = vld [vmem:[%s277 + $0x60] sm:$0xff]
        %v377 = vld [vmem:[%s277 + $0x68] sm:$0xff]
        %v378 = vld [vmem:[%s277 + $0x70] sm:$0xff]
        %389 = vrot.lane.b32.xlu0 %v369, 25
        %v390 = vpop.permute.xlu0 %389
        %391 = vrot.lane.b32.xlu0 %v370, 25
        %v392 = vpop.permute.xlu0 %391
        %393 = vrot.lane.b32.xlu0 %v371, 25
        %v394 = vpop.permute.xlu0 %393
        %395 = vrot.lane.b32.xlu0 %v372, 25
        %v396 = vpop.permute.xlu0 %395
        %397 = vrot.lane.b32.xlu0 %v373, 25
        %v398 = vpop.permute.xlu0 %397
        %399 = vrot.lane.b32.xlu0 %v374, 25
        %v400 = vpop.permute.xlu0 %399
        %401 = vrot.lane.b32.xlu0 %v375, 25
        %v402 = vpop.permute.xlu0 %401
        %403 = vrot.lane.b32.xlu0 %v376, 25
        %v404 = vpop.permute.xlu0 %403
        %405 = vrot.lane.b32.xlu0 %v377, 25
        %v406 = vpop.permute.xlu0 %405
        %407 = vrot.lane.b32.xlu0 %v378, 25
        %v408 = vpop.permute.xlu0 %407
        %vm409 = vcmask 203776
        %v410 = vsel %vm409, %v390, %v392
        %v411 = vsel %vm409, %v392, %v394
        %v412 = vsel %vm409, %v394, %v396
        %v413 = vsel %vm409, %v396, %v398
        %v414 = vsel %vm409, %v400, %v402
        %v415 = vsel %vm409, %v402, %v404
        %v416 = vsel %vm409, %v404, %v406
        %v417 = vsel %vm409, %v406, %v408
        %426 = vst [vmem:[#allocation2] sm:$0xff] %v410
        %427 = vst [vmem:[#allocation2 + $0x8] sm:$0xff] %v411
        %428 = vst [vmem:[#allocation2 + $0x10] sm:$0xff] %v412
        %429 = vst [vmem:[#allocation2 + $0x18] sm:$0xff] %v413
        %430 = vst [vmem:[#allocation2 + $0x20] sm:$0xff] %v414
        %431 = vst [vmem:[#allocation2 + $0x28] sm:$0xff] %v415
        %432 = vst [vmem:[#allocation2 + $0x30] sm:$0xff] %v416
        %433 = vst [vmem:[#allocation2 + $0x38] sm:$0xff] %v417
        %v434 = vld [vmem:[%s277 + $0x8] sm:$0xff]
        %v435 = vld [vmem:[%s277 + $0x10] sm:$0xff]
        %v436 = vld [vmem:[%s277 + $0x18] sm:$0xff]
        %v437 = vld [vmem:[%s277 + $0x20] sm:$0xff]
        %v438 = vld [vmem:[%s277 + $0x28] sm:$0xff]
        %v439 = vld [vmem:[%s277 + $0x50] sm:$0xff]
        %v440 = vld [vmem:[%s277 + $0x58] sm:$0xff]
        %v441 = vld [vmem:[%s277 + $0x60] sm:$0xff]
        %v442 = vld [vmem:[%s277 + $0x68] sm:$0xff]
        %v443 = vld [vmem:[%s277 + $0x70] sm:$0xff]
        %454 = vrot.lane.b32.xlu0 %v434, 24
        %v455 = vpop.permute.xlu0 %454
        %456 = vrot.lane.b32.xlu0 %v435, 24
        %v457 = vpop.permute.xlu0 %456
        %458 = vrot.lane.b32.xlu0 %v436, 24
        %v459 = vpop.permute.xlu0 %458
        %460 = vrot.lane.b32.xlu0 %v437, 24
        %v461 = vpop.permute.xlu0 %460
        %462 = vrot.lane.b32.xlu0 %v438, 24
        %v463 = vpop.permute.xlu0 %462
        %464 = vrot.lane.b32.xlu0 %v439, 24
        %v465 = vpop.permute.xlu0 %464
        %466 = vrot.lane.b32.xlu0 %v440, 24
        %v467 = vpop.permute.xlu0 %466
        %468 = vrot.lane.b32.xlu0 %v441, 24
        %v469 = vpop.permute.xlu0 %468
        %470 = vrot.lane.b32.xlu0 %v442, 24
        %v471 = vpop.permute.xlu0 %470
        %472 = vrot.lane.b32.xlu0 %v443, 24
        %v473 = vpop.permute.xlu0 %472
        %vm474 = vcmask 195584
        %v475 = vsel %vm474, %v455, %v457
        %v476 = vsel %vm474, %v457, %v459
        %v477 = vsel %vm474, %v459, %v461
        %v478 = vsel %vm474, %v461, %v463
        %v479 = vsel %vm474, %v465, %v467
        %v480 = vsel %vm474, %v467, %v469
        %v481 = vsel %vm474, %v469, %v471
        %v482 = vsel %vm474, %v471, %v473
        %491 = vst [vmem:[#allocation2 + $0x40] sm:$0xff] %v475
        %492 = vst [vmem:[#allocation2 + $0x48] sm:$0xff] %v476
        %493 = vst [vmem:[#allocation2 + $0x50] sm:$0xff] %v477
        %494 = vst [vmem:[#allocation2 + $0x58] sm:$0xff] %v478
        %495 = vst [vmem:[#allocation2 + $0x60] sm:$0xff] %v479
        %496 = vst [vmem:[#allocation2 + $0x68] sm:$0xff] %v480
        %497 = vst [vmem:[#allocation2 + $0x70] sm:$0xff] %v481
        %498 = vst [vmem:[#allocation2 + $0x78] sm:$0xff] %v482
        %v499 = vld [vmem:[%s277 + $0x8] sm:$0xff]
        %v500 = vld [vmem:[%s277 + $0x10] sm:$0xff]
        %v501 = vld [vmem:[%s277 + $0x18] sm:$0xff]
        %v502 = vld [vmem:[%s277 + $0x20] sm:$0xff]
        %v503 = vld [vmem:[%s277 + $0x28] sm:$0xff]
        %v504 = vld [vmem:[%s277 + $0x50] sm:$0xff]
        %v505 = vld [vmem:[%s277 + $0x58] sm:$0xff]
        %v506 = vld [vmem:[%s277 + $0x60] sm:$0xff]
        %v507 = vld [vmem:[%s277 + $0x68] sm:$0xff]
        %v508 = vld [vmem:[%s277 + $0x70] sm:$0xff]
        %519 = vrot.lane.b32.xlu0 %v499, 23
        %v520 = vpop.permute.xlu0 %519
        %521 = vrot.lane.b32.xlu0 %v500, 23
        %v522 = vpop.permute.xlu0 %521
        %523 = vrot.lane.b32.xlu0 %v501, 23
        %v524 = vpop.permute.xlu0 %523
        %525 = vrot.lane.b32.xlu0 %v502, 23
        %v526 = vpop.permute.xlu0 %525
        %527 = vrot.lane.b32.xlu0 %v503, 23
        %v528 = vpop.permute.xlu0 %527
        %529 = vrot.lane.b32.xlu0 %v504, 23
        %v530 = vpop.permute.xlu0 %529
        %531 = vrot.lane.b32.xlu0 %v505, 23
        %v532 = vpop.permute.xlu0 %531
        %533 = vrot.lane.b32.xlu0 %v506, 23
        %v534 = vpop.permute.xlu0 %533
        %535 = vrot.lane.b32.xlu0 %v507, 23
        %v536 = vpop.permute.xlu0 %535
        %537 = vrot.lane.b32.xlu0 %v508, 23
        %v538 = vpop.permute.xlu0 %537
        %vm539 = vcmask 187392
        %v540 = vsel %vm539, %v520, %v522
        %v541 = vsel %vm539, %v522, %v524
        %v542 = vsel %vm539, %v524, %v526
        %v543 = vsel %vm539, %v526, %v528
        %v544 = vsel %vm539, %v530, %v532
        %v545 = vsel %vm539, %v532, %v534
        %v546 = vsel %vm539, %v534, %v536
        %v547 = vsel %vm539, %v536, %v538
        %556 = vst [vmem:[#allocation2 + $0x80] sm:$0xff] %v540
        %557 = vst [vmem:[#allocation2 + $0x88] sm:$0xff] %v541
        %558 = vst [vmem:[#allocation2 + $0x90] sm:$0xff] %v542
        %559 = vst [vmem:[#allocation2 + $0x98] sm:$0xff] %v543
        %560 = vst [vmem:[#allocation2 + $0xa0] sm:$0xff] %v544
        %561 = vst [vmem:[#allocation2 + $0xa8] sm:$0xff] %v545
        %562 = vst [vmem:[#allocation2 + $0xb0] sm:$0xff] %v546
        %563 = vst [vmem:[#allocation2 + $0xb8] sm:$0xff] %v547
        %v564 = vld [vmem:[%s277 + $0x10] sm:$0xff]
        %v565 = vld [vmem:[%s277 + $0x18] sm:$0xff]
        %v566 = vld [vmem:[%s277 + $0x20] sm:$0xff]
        %v567 = vld [vmem:[%s277 + $0x28] sm:$0xff]
        %v568 = vld [vmem:[%s277 + $0x30] sm:$0xff]
        %v569 = vld [vmem:[%s277 + $0x58] sm:$0xff]
        %v570 = vld [vmem:[%s277 + $0x60] sm:$0xff]
        %v571 = vld [vmem:[%s277 + $0x68] sm:$0xff]
        %v572 = vld [vmem:[%s277 + $0x70] sm:$0xff]
        %v573 = vld [vmem:[%s277 + $0x78] sm:$0xff]
        %584 = vrot.lane.b32.xlu0 %v564, 121
        %v585 = vpop.permute.xlu0 %584
        %586 = vrot.lane.b32.xlu0 %v565, 121
        %v587 = vpop.permute.xlu0 %586
        %588 = vrot.lane.b32.xlu0 %v566, 121
        %v589 = vpop.permute.xlu0 %588
        %590 = vrot.lane.b32.xlu0 %v567, 121
        %v591 = vpop.permute.xlu0 %590
        %592 = vrot.lane.b32.xlu0 %v568, 121
        %v593 = vpop.permute.xlu0 %592
        %594 = vrot.lane.b32.xlu0 %v569, 121
        %v595 = vpop.permute.xlu0 %594
        %596 = vrot.lane.b32.xlu0 %v570, 121
        %v597 = vpop.permute.xlu0 %596
        %598 = vrot.lane.b32.xlu0 %v571, 121
        %v599 = vpop.permute.xlu0 %598
        %600 = vrot.lane.b32.xlu0 %v572, 121
        %v601 = vpop.permute.xlu0 %600
        %602 = vrot.lane.b32.xlu0 %v573, 121
        %v603 = vpop.permute.xlu0 %602
        %vm604 = vcmask 990208
        %v605 = vsel %vm604, %v585, %v587
        %v606 = vsel %vm604, %v587, %v589
        %v607 = vsel %vm604, %v589, %v591
        %v608 = vsel %vm604, %v591, %v593
        %v609 = vsel %vm604, %v595, %v597
        %v610 = vsel %vm604, %v597, %v599
        %v611 = vsel %vm604, %v599, %v601
        %v612 = vsel %vm604, %v601, %v603
        %621 = vst [vmem:[#allocation2 + $0xc0] sm:$0xff] %v605
        %622 = vst [vmem:[#allocation2 + $0xc8] sm:$0xff] %v606
        %623 = vst [vmem:[#allocation2 + $0xd0] sm:$0xff] %v607
        %624 = vst [vmem:[#allocation2 + $0xd8] sm:$0xff] %v608
        %625 = vst [vmem:[#allocation2 + $0xe0] sm:$0xff] %v609
        %626 = vst [vmem:[#allocation2 + $0xe8] sm:$0xff] %v610
        %627 = vst [vmem:[#allocation2 + $0xf0] sm:$0xff] %v611
        %628 = vst [vmem:[#allocation2 + $0xf8] sm:$0xff] %v612
        %v629 = vld [vmem:[%s277 + $0x10] sm:$0xff]
        %v630 = vld [vmem:[%s277 + $0x18] sm:$0xff]
        %v631 = vld [vmem:[%s277 + $0x20] sm:$0xff]
        %v632 = vld [vmem:[%s277 + $0x28] sm:$0xff]
        %v633 = vld [vmem:[%s277 + $0x30] sm:$0xff]
        %v634 = vld [vmem:[%s277 + $0x58] sm:$0xff]
        %v635 = vld [vmem:[%s277 + $0x60] sm:$0xff]
        %v636 = vld [vmem:[%s277 + $0x68] sm:$0xff]
        %v637 = vld [vmem:[%s277 + $0x70] sm:$0xff]
        %v638 = vld [vmem:[%s277 + $0x78] sm:$0xff]
        %649 = vrot.lane.b32.xlu0 %v629, 120
        %v650 = vpop.permute.xlu0 %649
        %651 = vrot.lane.b32.xlu0 %v630, 120
        %v652 = vpop.permute.xlu0 %651
        %653 = vrot.lane.b32.xlu0 %v631, 120
        %v654 = vpop.permute.xlu0 %653
        %655 = vrot.lane.b32.xlu0 %v632, 120
        %v656 = vpop.permute.xlu0 %655
        %657 = vrot.lane.b32.xlu0 %v633, 120
        %v658 = vpop.permute.xlu0 %657
        %659 = vrot.lane.b32.xlu0 %v634, 120
        %v660 = vpop.permute.xlu0 %659
        %661 = vrot.lane.b32.xlu0 %v635, 120
        %v662 = vpop.permute.xlu0 %661
        %663 = vrot.lane.b32.xlu0 %v636, 120
        %v664 = vpop.permute.xlu0 %663
        %665 = vrot.lane.b32.xlu0 %v637, 120
        %v666 = vpop.permute.xlu0 %665
        %667 = vrot.lane.b32.xlu0 %v638, 120
        %v668 = vpop.permute.xlu0 %667
        %vm669 = vcmask 982016
        %v670 = vsel %vm669, %v650, %v652
        %v671 = vsel %vm669, %v652, %v654
        %v672 = vsel %vm669, %v654, %v656
        %v673 = vsel %vm669, %v656, %v658
        %v674 = vsel %vm669, %v660, %v662
        %v675 = vsel %vm669, %v662, %v664
        %v676 = vsel %vm669, %v664, %v666
        %v677 = vsel %vm669, %v666, %v668
        %686 = vst [vmem:[#allocation2 + $0x100] sm:$0xff] %v670
        %687 = vst [vmem:[#allocation2 + $0x108] sm:$0xff] %v671
        %688 = vst [vmem:[#allocation2 + $0x110] sm:$0xff] %v672
        %689 = vst [vmem:[#allocation2 + $0x118] sm:$0xff] %v673
        %690 = vst [vmem:[#allocation2 + $0x120] sm:$0xff] %v674
        %691 = vst [vmem:[#allocation2 + $0x128] sm:$0xff] %v675
        %692 = vst [vmem:[#allocation2 + $0x130] sm:$0xff] %v676
        %693 = vst [vmem:[#allocation2 + $0x138] sm:$0xff] %v677
        %v694 = vld [vmem:[%s277 + $0x10] sm:$0xff]
        %v695 = vld [vmem:[%s277 + $0x18] sm:$0xff]
        %v696 = vld [vmem:[%s277 + $0x20] sm:$0xff]
        %v697 = vld [vmem:[%s277 + $0x28] sm:$0xff]
        %v698 = vld [vmem:[%s277 + $0x30] sm:$0xff]
        %v699 = vld [vmem:[%s277 + $0x58] sm:$0xff]
        %v700 = vld [vmem:[%s277 + $0x60] sm:$0xff]
        %v701 = vld [vmem:[%s277 + $0x68] sm:$0xff]
        %v702 = vld [vmem:[%s277 + $0x70] sm:$0xff]
        %v703 = vld [vmem:[%s277 + $0x78] sm:$0xff]
        %714 = vrot.lane.b32.xlu0 %v694, 119
        %v715 = vpop.permute.xlu0 %714
        %716 = vrot.lane.b32.xlu0 %v695, 119
        %v717 = vpop.permute.xlu0 %716
        %718 = vrot.lane.b32.xlu0 %v696, 119
        %v719 = vpop.permute.xlu0 %718
        %720 = vrot.lane.b32.xlu0 %v697, 119
        %v721 = vpop.permute.xlu0 %720
        %722 = vrot.lane.b32.xlu0 %v698, 119
        %v723 = vpop.permute.xlu0 %722
        %724 = vrot.lane.b32.xlu0 %v699, 119
        %v725 = vpop.permute.xlu0 %724
        %726 = vrot.lane.b32.xlu0 %v700, 119
        %v727 = vpop.permute.xlu0 %726
        %728 = vrot.lane.b32.xlu0 %v701, 119
        %v729 = vpop.permute.xlu0 %728
        %730 = vrot.lane.b32.xlu0 %v702, 119
        %v731 = vpop.permute.xlu0 %730
        %732 = vrot.lane.b32.xlu0 %v703, 119
        %v733 = vpop.permute.xlu0 %732
        %vm734 = vcmask 973824
        %v735 = vsel %vm734, %v715, %v717
        %v736 = vsel %vm734, %v717, %v719
        %v737 = vsel %vm734, %v719, %v721
        %v738 = vsel %vm734, %v721, %v723
        %v739 = vsel %vm734, %v725, %v727
        %v740 = vsel %vm734, %v727, %v729
        %v741 = vsel %vm734, %v729, %v731
        %v742 = vsel %vm734, %v731, %v733
        %751 = vst [vmem:[#allocation2 + $0x140] sm:$0xff] %v735
        %752 = vst [vmem:[#allocation2 + $0x148] sm:$0xff] %v736
        %753 = vst [vmem:[#allocation2 + $0x150] sm:$0xff] %v737
        %754 = vst [vmem:[#allocation2 + $0x158] sm:$0xff] %v738
        %755 = vst [vmem:[#allocation2 + $0x160] sm:$0xff] %v739
        %756 = vst [vmem:[#allocation2 + $0x168] sm:$0xff] %v740
        %757 = vst [vmem:[#allocation2 + $0x170] sm:$0xff] %v741
        %758 = vst [vmem:[#allocation2 + $0x178] sm:$0xff] %v742
        %v759 = vld [vmem:[%s277 + $0x10] sm:$0xff]
        %v760 = vld [vmem:[%s277 + $0x18] sm:$0xff]
        %v761 = vld [vmem:[%s277 + $0x20] sm:$0xff]
        %v762 = vld [vmem:[%s277 + $0x28] sm:$0xff]
        %v763 = vld [vmem:[%s277 + $0x30] sm:$0xff]
        %v764 = vld [vmem:[%s277 + $0x58] sm:$0xff]
        %v765 = vld [vmem:[%s277 + $0x60] sm:$0xff]
        %v766 = vld [vmem:[%s277 + $0x68] sm:$0xff]
        %v767 = vld [vmem:[%s277 + $0x70] sm:$0xff]
        %v768 = vld [vmem:[%s277 + $0x78] sm:$0xff]
        %779 = vrot.lane.b32.xlu0 %v759, 89
        %v780 = vpop.permute.xlu0 %779
        %781 = vrot.lane.b32.xlu0 %v760, 89
        %v782 = vpop.permute.xlu0 %781
        %783 = vrot.lane.b32.xlu0 %v761, 89
        %v784 = vpop.permute.xlu0 %783
        %785 = vrot.lane.b32.xlu0 %v762, 89
        %v786 = vpop.permute.xlu0 %785
        %787 = vrot.lane.b32.xlu0 %v763, 89
        %v788 = vpop.permute.xlu0 %787
        %789 = vrot.lane.b32.xlu0 %v764, 89
        %v790 = vpop.permute.xlu0 %789
        %791 = vrot.lane.b32.xlu0 %v765, 89
        %v792 = vpop.permute.xlu0 %791
        %793 = vrot.lane.b32.xlu0 %v766, 89
        %v794 = vpop.permute.xlu0 %793
        %795 = vrot.lane.b32.xlu0 %v767, 89
        %v796 = vpop.permute.xlu0 %795
        %797 = vrot.lane.b32.xlu0 %v768, 89
        %v798 = vpop.permute.xlu0 %797
        %vm799 = vcmask 728064
        %v800 = vsel %vm799, %v780, %v782
        %v801 = vsel %vm799, %v782, %v784
        %v802 = vsel %vm799, %v784, %v786
        %v803 = vsel %vm799, %v786, %v788
        %v804 = vsel %vm799, %v790, %v792
        %v805 = vsel %vm799, %v792, %v794
        %v806 = vsel %vm799, %v794, %v796
        %v807 = vsel %vm799, %v796, %v798
        %816 = vst [vmem:[#allocation2 + $0x180] sm:$0xff] %v800
        %817 = vst [vmem:[#allocation2 + $0x188] sm:$0xff] %v801
        %818 = vst [vmem:[#allocation2 + $0x190] sm:$0xff] %v802
        %819 = vst [vmem:[#allocation2 + $0x198] sm:$0xff] %v803
        %820 = vst [vmem:[#allocation2 + $0x1a0] sm:$0xff] %v804
        %821 = vst [vmem:[#allocation2 + $0x1a8] sm:$0xff] %v805
        %822 = vst [vmem:[#allocation2 + $0x1b0] sm:$0xff] %v806
        %823 = vst [vmem:[#allocation2 + $0x1b8] sm:$0xff] %v807
        %v824 = vld [vmem:[%s277 + $0x10] sm:$0xff]
        %v825 = vld [vmem:[%s277 + $0x18] sm:$0xff]
        %v826 = vld [vmem:[%s277 + $0x20] sm:$0xff]
        %v827 = vld [vmem:[%s277 + $0x28] sm:$0xff]
        %v828 = vld [vmem:[%s277 + $0x30] sm:$0xff]
        %v829 = vld [vmem:[%s277 + $0x58] sm:$0xff]
        %v830 = vld [vmem:[%s277 + $0x60] sm:$0xff]
        %v831 = vld [vmem:[%s277 + $0x68] sm:$0xff]
        %v832 = vld [vmem:[%s277 + $0x70] sm:$0xff]
        %v833 = vld [vmem:[%s277 + $0x78] sm:$0xff]
        %844 = vrot.lane.b32.xlu0 %v824, 88
        %v845 = vpop.permute.xlu0 %844
        %846 = vrot.lane.b32.xlu0 %v825, 88
        %v847 = vpop.permute.xlu0 %846
        %848 = vrot.lane.b32.xlu0 %v826, 88
        %v849 = vpop.permute.xlu0 %848
        %850 = vrot.lane.b32.xlu0 %v827, 88
        %v851 = vpop.permute.xlu0 %850
        %852 = vrot.lane.b32.xlu0 %v828, 88
        %v853 = vpop.permute.xlu0 %852
        %854 = vrot.lane.b32.xlu0 %v829, 88
        %v855 = vpop.permute.xlu0 %854
        %856 = vrot.lane.b32.xlu0 %v830, 88
        %v857 = vpop.permute.xlu0 %856
        %858 = vrot.lane.b32.xlu0 %v831, 88
        %v859 = vpop.permute.xlu0 %858
        %860 = vrot.lane.b32.xlu0 %v832, 88
        %v861 = vpop.permute.xlu0 %860
        %862 = vrot.lane.b32.xlu0 %v833, 88
        %v863 = vpop.permute.xlu0 %862
        %vm864 = vcmask 719872
        %v865 = vsel %vm864, %v845, %v847
        %v866 = vsel %vm864, %v847, %v849
        %v867 = vsel %vm864, %v849, %v851
        %v868 = vsel %vm864, %v851, %v853
        %v869 = vsel %vm864, %v855, %v857
        %v870 = vsel %vm864, %v857, %v859
        %v871 = vsel %vm864, %v859, %v861
        %v872 = vsel %vm864, %v861, %v863
        %881 = vst [vmem:[#allocation2 + $0x1c0] sm:$0xff] %v865
        %882 = vst [vmem:[#allocation2 + $0x1c8] sm:$0xff] %v866
        %883 = vst [vmem:[#allocation2 + $0x1d0] sm:$0xff] %v867
        %884 = vst [vmem:[#allocation2 + $0x1d8] sm:$0xff] %v868
        %885 = vst [vmem:[#allocation2 + $0x1e0] sm:$0xff] %v869
        %886 = vst [vmem:[#allocation2 + $0x1e8] sm:$0xff] %v870
        %887 = vst [vmem:[#allocation2 + $0x1f0] sm:$0xff] %v871
        %888 = vst [vmem:[#allocation2 + $0x1f8] sm:$0xff] %v872
        %v889 = vld [vmem:[%s277 + $0x10] sm:$0xff]
        %v890 = vld [vmem:[%s277 + $0x18] sm:$0xff]
        %v891 = vld [vmem:[%s277 + $0x20] sm:$0xff]
        %v892 = vld [vmem:[%s277 + $0x28] sm:$0xff]
        %v893 = vld [vmem:[%s277 + $0x30] sm:$0xff]
        %v894 = vld [vmem:[%s277 + $0x58] sm:$0xff]
        %v895 = vld [vmem:[%s277 + $0x60] sm:$0xff]
        %v896 = vld [vmem:[%s277 + $0x68] sm:$0xff]
        %v897 = vld [vmem:[%s277 + $0x70] sm:$0xff]
        %v898 = vld [vmem:[%s277 + $0x78] sm:$0xff]
        %909 = vrot.lane.b32.xlu0 %v889, 87
        %v910 = vpop.permute.xlu0 %909
        %911 = vrot.lane.b32.xlu0 %v890, 87
        %v912 = vpop.permute.xlu0 %911
        %913 = vrot.lane.b32.xlu0 %v891, 87
        %v914 = vpop.permute.xlu0 %913
        %915 = vrot.lane.b32.xlu0 %v892, 87
        %v916 = vpop.permute.xlu0 %915
        %917 = vrot.lane.b32.xlu0 %v893, 87
        %v918 = vpop.permute.xlu0 %917
        %919 = vrot.lane.b32.xlu0 %v894, 87
        %v920 = vpop.permute.xlu0 %919
        %921 = vrot.lane.b32.xlu0 %v895, 87
        %v922 = vpop.permute.xlu0 %921
        %923 = vrot.lane.b32.xlu0 %v896, 87
        %v924 = vpop.permute.xlu0 %923
        %925 = vrot.lane.b32.xlu0 %v897, 87
        %v926 = vpop.permute.xlu0 %925
        %927 = vrot.lane.b32.xlu0 %v898, 87
        %v928 = vpop.permute.xlu0 %927
        %vm929 = vcmask 711680
        %v930 = vsel %vm929, %v910, %v912
        %v931 = vsel %vm929, %v912, %v914
        %v932 = vsel %vm929, %v914, %v916
        %v933 = vsel %vm929, %v916, %v918
        %v934 = vsel %vm929, %v920, %v922
        %v935 = vsel %vm929, %v922, %v924
        %v936 = vsel %vm929, %v924, %v926
        %v937 = vsel %vm929, %v926, %v928
        %946 = vst [vmem:[#allocation2 + $0x200] sm:$0xff] %v930
        %947 = vst [vmem:[#allocation2 + $0x208] sm:$0xff] %v931
        %948 = vst [vmem:[#allocation2 + $0x210] sm:$0xff] %v932
        %949 = vst [vmem:[#allocation2 + $0x218] sm:$0xff] %v933
        %950 = vst [vmem:[#allocation2 + $0x220] sm:$0xff] %v934
        %951 = vst [vmem:[#allocation2 + $0x228] sm:$0xff] %v935
        %952 = vst [vmem:[#allocation2 + $0x230] sm:$0xff] %v936
        %953 = vst [vmem:[#allocation2 + $0x238] sm:$0xff] %v937
        %v954 = vld [vmem:[%s5] sm:$0xff]
        %v955 = vld [vmem:[%s5 + $0x8] sm:$0xff]
        %v956 = vld [vmem:[%s5 + $0x10] sm:$0xff]
        %v957 = vld [vmem:[%s5 + $0x18] sm:$0xff]
        %v958 = vld [vmem:[%s5 + $0x20] sm:$0xf]
        %v959 = vld [vmem:[%s5 + $0x28] sm:$0xf]
        %v960 = vld [vmem:[%s6] sm:$0xff]
        %v961 = vld [vmem:[%s6 + $0x8] sm:$0xff]
        %v962 = vld [vmem:[%s6 + $0x10] sm:$0xf]
        %v963 = vld [vmem:[#allocation2] sm:$0xff]
        %v964 = vld [vmem:[#allocation2 + $0x8] sm:$0xff]
        %v965 = vld [vmem:[#allocation2 + $0x10] sm:$0xff]
        %v966 = vld [vmem:[#allocation2 + $0x18] sm:$0xff]
        %v967 = vld [vmem:[#allocation2 + $0x20] sm:$0xff]
        %v968 = vld [vmem:[#allocation2 + $0x28] sm:$0xff]
        %v969 = vld [vmem:[#allocation2 + $0x30] sm:$0xff]
        %v970 = vld [vmem:[#allocation2 + $0x38] sm:$0xff]
        %v971 = vld [vmem:[#allocation2 + $0x40] sm:$0xff]
        %v972 = vld [vmem:[#allocation2 + $0x48] sm:$0xff]
        %v973 = vld [vmem:[#allocation2 + $0x50] sm:$0xff]
        %v974 = vld [vmem:[#allocation2 + $0x58] sm:$0xff]
        %v975 = vld [vmem:[#allocation2 + $0x60] sm:$0xff]
        %v976 = vld [vmem:[#allocation2 + $0x68] sm:$0xff]
        %v977 = vld [vmem:[#allocation2 + $0x70] sm:$0xff]
        %v978 = vld [vmem:[#allocation2 + $0x78] sm:$0xff]
        %v979 = vld [vmem:[#allocation2 + $0x80] sm:$0xff]
        %v980 = vld [vmem:[#allocation2 + $0x88] sm:$0xff]
        %v981 = vld [vmem:[#allocation2 + $0x90] sm:$0xff]
        %v982 = vld [vmem:[#allocation2 + $0x98] sm:$0xff]
        %v983 = vld [vmem:[#allocation2 + $0xa0] sm:$0xff]
        %v984 = vld [vmem:[#allocation2 + $0xa8] sm:$0xff]
        %v985 = vld [vmem:[#allocation2 + $0xb0] sm:$0xff]
        %v986 = vld [vmem:[#allocation2 + $0xb8] sm:$0xff]
        %v987 = vld [vmem:[#allocation2 + $0xc0] sm:$0xff]
        %v988 = vld [vmem:[#allocation2 + $0xc8] sm:$0xff]
        %v989 = vld [vmem:[#allocation2 + $0xd0] sm:$0xff]
        %v990 = vld [vmem:[#allocation2 + $0xd8] sm:$0xff]
        %v991 = vld [vmem:[#allocation2 + $0xe0] sm:$0xff]
        %v992 = vld [vmem:[#allocation2 + $0xe8] sm:$0xff]
        %v993 = vld [vmem:[#allocation2 + $0xf0] sm:$0xff]
        %v994 = vld [vmem:[#allocation2 + $0xf8] sm:$0xff]
        %v995 = vld [vmem:[#allocation2 + $0x100] sm:$0xff]
        %v996 = vld [vmem:[#allocation2 + $0x108] sm:$0xff]
        %v997 = vld [vmem:[#allocation2 + $0x110] sm:$0xff]
        %v998 = vld [vmem:[#allocation2 + $0x118] sm:$0xff]
        %v999 = vld [vmem:[#allocation2 + $0x120] sm:$0xff]
        %v1000 = vld [vmem:[#allocation2 + $0x128] sm:$0xff]
        %v1001 = vld [vmem:[#allocation2 + $0x130] sm:$0xff]
        %v1002 = vld [vmem:[#allocation2 + $0x138] sm:$0xff]
        %v1003 = vld [vmem:[#allocation2 + $0x140] sm:$0xff]
        %v1004 = vld [vmem:[#allocation2 + $0x148] sm:$0xff]
        %v1005 = vld [vmem:[#allocation2 + $0x150] sm:$0xff]
        %v1006 = vld [vmem:[#allocation2 + $0x158] sm:$0xff]
        %v1007 = vld [vmem:[#allocation2 + $0x160] sm:$0xff]
        %v1008 = vld [vmem:[#allocation2 + $0x168] sm:$0xff]
        %v1009 = vld [vmem:[#allocation2 + $0x170] sm:$0xff]
        %v1010 = vld [vmem:[#allocation2 + $0x178] sm:$0xff]
        %v1011 = vld [vmem:[#allocation2 + $0x180] sm:$0xff]
        %v1012 = vld [vmem:[#allocation2 + $0x188] sm:$0xff]
        %v1013 = vld [vmem:[#allocation2 + $0x190] sm:$0xff]
        %v1014 = vld [vmem:[#allocation2 + $0x198] sm:$0xff]
        %v1015 = vld [vmem:[#allocation2 + $0x1a0] sm:$0xff]
        %v1016 = vld [vmem:[#allocation2 + $0x1a8] sm:$0xff]
        %v1017 = vld [vmem:[#allocation2 + $0x1b0] sm:$0xff]
        %v1018 = vld [vmem:[#allocation2 + $0x1b8] sm:$0xff]
        %v1019 = vld [vmem:[#allocation2 + $0x1c0] sm:$0xff]
        %v1020 = vld [vmem:[#allocation2 + $0x1c8] sm:$0xff]
        %v1021 = vld [vmem:[#allocation2 + $0x1d0] sm:$0xff]
        %v1022 = vld [vmem:[#allocation2 + $0x1d8] sm:$0xff]
        %v1023 = vld [vmem:[#allocation2 + $0x1e0] sm:$0xff]
        %v1024 = vld [vmem:[#allocation2 + $0x1e8] sm:$0xff]
        %v1025 = vld [vmem:[#allocation2 + $0x1f0] sm:$0xff]
        %v1026 = vld [vmem:[#allocation2 + $0x1f8] sm:$0xff]
        %v1027 = vld [vmem:[#allocation2 + $0x200] sm:$0xff]
        %v1028 = vld [vmem:[#allocation2 + $0x208] sm:$0xff]
        %v1029 = vld [vmem:[#allocation2 + $0x210] sm:$0xff]
        %v1030 = vld [vmem:[#allocation2 + $0x218] sm:$0xff]
        %v1031 = vld [vmem:[#allocation2 + $0x220] sm:$0xff]
        %v1032 = vld [vmem:[#allocation2 + $0x228] sm:$0xff]
        %v1033 = vld [vmem:[#allocation2 + $0x230] sm:$0xff]
        %v1034 = vld [vmem:[#allocation2 + $0x238] sm:$0xff]
        %1036 = vset.pattern.permute.xlu0 0
        %1037 = vperm.xlu0 %1036, %v960
        %v1038 = vpop.permute.xlu0 %1037
        %1041 = vset.pattern.permute.xlu0 0
        %1042 = vperm.xlu0 %1041, %v961
        %v1043 = vpop.permute.xlu0 %1042
        %1046 = vset.pattern.permute.xlu0 0
        %1047 = vperm.xlu0 %1046, %v962
        %v1048 = vpop.permute.xlu0 %1047
        %vm1050 = vcmask 130048
        %v1052 = vsel %vm1050, %v955, 0
        %v1055 = vsel %vm1050, %v957, 0
        %v1058 = vsel %vm1050, %v959, 0
        %1060 = vmatprep.subr.mxu0 %v964
        %1061 = vmatpush1.msra.mxu0 %v963
        %1062 = vmatprep.subr.mxu0 %v968
        %1063 = vmatpush1.msra.mxu0 %v967
        %1064 = vmatprep.subr.mxu0 %v972
        %1065 = vmatpush1.msra.mxu0 %v971
        %1066 = vmatprep.subr.mxu0 %v976
        %1067 = vmatpush1.msra.mxu0 %v975
        %1068 = vmatprep.subr.mxu0 %v980
        %1069 = vmatpush1.msra.mxu0 %v979
        %1070 = vmatprep.subr.mxu0 %v984
        %1071 = vmatpush1.msra.mxu0 %v983
        %1072 = vmatprep.subr.mxu0 %v988
        %1073 = vmatpush1.msra.mxu0 %v987
        %1074 = vmatprep.subr.mxu0 %v992
        %1075 = vmatpush1.msra.mxu0 %v991
        %1076 = vmatprep.subr.mxu0 %v996
        %1077 = vmatpush1.msra.mxu0 %v995
        %1078 = vmatprep.subr.mxu0 %v1000
        %1079 = vmatpush1.msra.mxu0 %v999
        %1080 = vmatprep.subr.mxu0 %v1004
        %1081 = vmatpush1.msra.mxu0 %v1003
        %1082 = vmatprep.subr.mxu0 %v1008
        %1083 = vmatpush1.msra.mxu0 %v1007
        %1084 = vmatprep.subr.mxu0 %v1012
        %1085 = vmatpush1.msra.mxu0 %v1011
        %1086 = vmatprep.subr.mxu0 %v1016
        %1087 = vmatpush1.msra.mxu0 %v1015
        %1088 = vmatprep.subr.mxu0 %v1020
        %1089 = vmatpush1.msra.mxu0 %v1019
        %1090 = vmatprep.subr.mxu0 %v1024
        %1091 = vmatpush1.msra.mxu0 %v1023
        %1092 = vmatprep.subr.mxu0 %v1028
        %1093 = vmatpush1.msra.mxu0 %v1027
        %1094 = vmatprep.subr.mxu0 %v1032
        %1095 = vmatpush1.msra.mxu0 %v1031
        %1096 = vmatprep.subr.mxu0 0.0
        %1097 = vmatpush1.msra.mxu0 0.0
        %1098 = vmatprep.subr.mxu0 0.0
        %1099 = vmatpush1.msra.mxu0 0.0
        %1100 = vmatprep.subr.mxu0 0.0
        %1101 = vmatpush1.msra.mxu0 0.0
        %1102 = vmatprep.subr.mxu0 0.0
        %1103 = vmatpush1.msra.mxu0 0.0
        %1104 = vmatprep.subr.mxu0 0.0
        %1105 = vmatpush1.msra.mxu0 0.0
        %1106 = vmatprep.subr.mxu0 0.0
        %1107 = vmatpush1.msra.mxu0 0.0
        %1108 = vmatprep.subr.mxu0 0.0
        %1109 = vmatpush1.msra.mxu0 0.0
        %1110 = vmatprep.subr.mxu0 0.0
        %1111 = vmatpush1.msra.mxu0 0.0
        %1112 = vmatprep.subr.mxu0 0.0
        %1113 = vmatpush1.msra.mxu0 0.0
        %1114 = vmatprep.subr.mxu0 0.0
        %1115 = vmatpush1.msra.mxu0 0.0
        %1116 = vmatprep.subr.mxu0 0.0
        %1117 = vmatpush1.msra.mxu0 0.0
        %1118 = vmatprep.subr.mxu0 0.0
        %1119 = vmatpush1.msra.mxu0 0.0
        %1120 = vmatprep.subr.mxu0 0.0
        %1121 = vmatpush1.msra.mxu0 0.0
        %1122 = vmatprep.subr.mxu0 0.0
        %1123 = vmatpush1.msra.mxu0 0.0
        %1124 = vmatprep.mubr.f32.mxu0 %v1052
        %1125 = vmatmul.mubr.f32.gmra.mrb[0].mxu0 %v954
        %v1126 = vpop.f32.mrb[0].mxu0
        %v1127 = vadd.f32 %v1038, %v1126
        %v1128 = vpop.f32.mrb[0].mxu0
        %v1129 = vadd.f32 %v1038, %v1128
        %1130 = vmatprep.mubr.f32.mxu0 %v1055
        %1131 = vmatmul.mubr.f32.gmra.mrb[0].mxu0 %v956
        %v1132 = vpop.f32.mrb[0].mxu0
        %v1133 = vadd.f32 %v1043, %v1132
        %v1134 = vpop.f32.mrb[0].mxu0
        %v1135 = vadd.f32 %v1043, %v1134
        %1136 = vmatprep.mubr.f32.mxu0 %v1058
        %1137 = vmatmul.mubr.f32.gmra.mrb[0].mxu0 %v958
        %v1138 = vpop.f32.mrb[0].mxu0
        %v1139 = vadd.f32 %v1048, %v1138
        %v1140 = vpop.f32.mrb[0].mxu0
        %v1141 = vadd.f32 %v1048, %v1140
        %1142 = vdwg.mxu0
        %1143 = vmatprep.subr.mxu0 %v966
        %1144 = vmatpush1.msra.mxu0 %v965
        %1145 = vmatprep.subr.mxu0 %v970
        %1146 = vmatpush1.msra.mxu0 %v969
        %1147 = vmatprep.subr.mxu0 %v974
        %1148 = vmatpush1.msra.mxu0 %v973
        %1149 = vmatprep.subr.mxu0 %v978
        %1150 = vmatpush1.msra.mxu0 %v977
        %1151 = vmatprep.subr.mxu0 %v982
        %1152 = vmatpush1.msra.mxu0 %v981
        %1153 = vmatprep.subr.mxu0 %v986
        %1154 = vmatpush1.msra.mxu0 %v985
        %1155 = vmatprep.subr.mxu0 %v990
        %1156 = vmatpush1.msra.mxu0 %v989
        %1157 = vmatprep.subr.mxu0 %v994
        %1158 = vmatpush1.msra.mxu0 %v993
        %1159 = vmatprep.subr.mxu0 %v998
        %1160 = vmatpush1.msra.mxu0 %v997
        %1161 = vmatprep.subr.mxu0 %v1002
        %1162 = vmatpush1.msra.mxu0 %v1001
        %1163 = vmatprep.subr.mxu0 %v1006
        %1164 = vmatpush1.msra.mxu0 %v1005
        %1165 = vmatprep.subr.mxu0 %v1010
        %1166 = vmatpush1.msra.mxu0 %v1009
        %1167 = vmatprep.subr.mxu0 %v1014
        %1168 = vmatpush1.msra.mxu0 %v1013
        %1169 = vmatprep.subr.mxu0 %v1018
        %1170 = vmatpush1.msra.mxu0 %v1017
        %1171 = vmatprep.subr.mxu0 %v1022
        %1172 = vmatpush1.msra.mxu0 %v1021
        %1173 = vmatprep.subr.mxu0 %v1026
        %1174 = vmatpush1.msra.mxu0 %v1025
        %1175 = vmatprep.subr.mxu0 %v1030
        %1176 = vmatpush1.msra.mxu0 %v1029
        %1177 = vmatprep.subr.mxu0 %v1034
        %1178 = vmatpush1.msra.mxu0 %v1033
        %1179 = vmatprep.subr.mxu0 0.0
        %1180 = vmatpush1.msra.mxu0 0.0
        %1181 = vmatprep.subr.mxu0 0.0
        %1182 = vmatpush1.msra.mxu0 0.0
        %1183 = vmatprep.subr.mxu0 0.0
        %1184 = vmatpush1.msra.mxu0 0.0
        %1185 = vmatprep.subr.mxu0 0.0
        %1186 = vmatpush1.msra.mxu0 0.0
        %1187 = vmatprep.subr.mxu0 0.0
        %1188 = vmatpush1.msra.mxu0 0.0
        %1189 = vmatprep.subr.mxu0 0.0
        %1190 = vmatpush1.msra.mxu0 0.0
        %1191 = vmatprep.subr.mxu0 0.0
        %1192 = vmatpush1.msra.mxu0 0.0
        %1193 = vmatprep.subr.mxu0 0.0
        %1194 = vmatpush1.msra.mxu0 0.0
        %1195 = vmatprep.subr.mxu0 0.0
        %1196 = vmatpush1.msra.mxu0 0.0
        %1197 = vmatprep.subr.mxu0 0.0
        %1198 = vmatpush1.msra.mxu0 0.0
        %1199 = vmatprep.subr.mxu0 0.0
        %1200 = vmatpush1.msra.mxu0 0.0
        %1201 = vmatprep.subr.mxu0 0.0
        %1202 = vmatpush1.msra.mxu0 0.0
        %1203 = vmatprep.subr.mxu0 0.0
        %1204 = vmatpush1.msra.mxu0 0.0
        %1205 = vmatprep.subr.mxu0 0.0
        %1206 = vmatpush1.msra.mxu0 0.0
        %1207 = vmatprep.mubr.f32.mxu0 %v1052
        %1208 = vmatmul.mubr.f32.gmra.mrb[0].mxu0 %v954
        %v1209 = vpop.f32.mrb[0].mxu0
        %v1210 = vadd.f32 %v1038, %v1209
        %v1211 = vpop.f32.mrb[0].mxu0
        %v1212 = vadd.f32 %v1038, %v1211
        %1213 = vmatprep.mubr.f32.mxu0 %v1055
        %1214 = vmatmul.mubr.f32.gmra.mrb[0].mxu0 %v956
        %v1215 = vpop.f32.mrb[0].mxu0
        %v1216 = vadd.f32 %v1043, %v1215
        %v1217 = vpop.f32.mrb[0].mxu0
        %v1218 = vadd.f32 %v1043, %v1217
        %1219 = vmatprep.mubr.f32.mxu0 %v1058
        %1220 = vmatmul.mubr.f32.gmra.mrb[0].mxu0 %v958
        %v1221 = vpop.f32.mrb[0].mxu0
        %v1222 = vadd.f32 %v1048, %v1221
        %v1223 = vpop.f32.mrb[0].mxu0
        %v1224 = vadd.f32 %v1048, %v1223
        %1225 = vdwg.mxu0
        %v1226 = vsel %vm365, 1, 0
        %v1227 = vsel %vm366, 1, 0
        %v1228 = vsel %vm367, 1, 0
        %v1229 = vsel %vm368, 1, 0
        %vm1230 = vcmp.eq.s32.totalorder %v1226, 1
        %vm1231 = vcmp.eq.s32.totalorder %v1227, 1
        %vm1232 = vcmp.eq.s32.totalorder %v1228, 1
        %vm1233 = vcmp.eq.s32.totalorder %v1229, 1
        %v1234 = vsel %vm1230, %v1127, 0.0
        %v1235 = vsel %vm1231, %v1129, 0.0
        %v1236 = vsel %vm1232, %v1210, 0.0
        %v1237 = vsel %vm1233, %v1212, 0.0
        %v1238 = vsel %vm1230, %v1133, 0.0
        %v1239 = vsel %vm1231, %v1135, 0.0
        %v1240 = vsel %vm1232, %v1216, 0.0
        %v1241 = vsel %vm1233, %v1218, 0.0
        %v1242 = vadd.f32 %v1234, %v1235
        %v1243 = vadd.f32 %v1242, %v1236
        %v1244 = vadd.f32 %v1243, %v1237
        %1245 = vadd.xlane.f32.xlu0 %v1244
        %v1246 = vpop.xlane.xlu0 %1245
        %v1247 = vadd.f32 %v1238, %v1239
        %v1248 = vadd.f32 %v1247, %v1240
        %v1249 = vadd.f32 %v1248, %v1241
        %1250 = vadd.xlane.f32.xlu0 %v1249
        %v1251 = vpop.xlane.xlu0 %1250
        %v1252 = vmul.f32 %v1246, 0.00390625
        %v1253 = vmul.f32 %v1251, 0.00390625
        %v1254 = vsub.f32 %v1127, %v1252
        %v1255 = vsub.f32 %v1129, %v1252
        %v1256 = vsub.f32 %v1210, %v1252
        %v1257 = vsub.f32 %v1212, %v1252
        %v1258 = vsub.f32 %v1133, %v1253
        %v1259 = vsub.f32 %v1135, %v1253
        %v1260 = vsub.f32 %v1216, %v1253
        %v1261 = vsub.f32 %v1218, %v1253
        %v1262 = vmul.f32 %v1254, %v1254
        %v1263 = vmul.f32 %v1255, %v1255
        %v1264 = vmul.f32 %v1256, %v1256
        %v1265 = vmul.f32 %v1257, %v1257
        %v1266 = vmul.f32 %v1258, %v1258
        %v1267 = vmul.f32 %v1259, %v1259
        %v1268 = vmul.f32 %v1260, %v1260
        %v1269 = vmul.f32 %v1261, %v1261
        %v1270 = vsel %vm1230, %v1262, 0.0
        %v1271 = vsel %vm1231, %v1263, 0.0
        %v1272 = vsel %vm1232, %v1264, 0.0
        %v1273 = vsel %vm1233, %v1265, 0.0
        %v1274 = vsel %vm1230, %v1266, 0.0
        %v1275 = vsel %vm1231, %v1267, 0.0
        %v1276 = vsel %vm1232, %v1268, 0.0
        %v1277 = vsel %vm1233, %v1269, 0.0
        %v1278 = vadd.f32 %v1270, %v1271
        %v1279 = vadd.f32 %v1278, %v1272
        %v1280 = vadd.f32 %v1279, %v1273
        %1281 = vadd.xlane.f32.xlu0 %v1280
        %v1282 = vpop.xlane.xlu0 %1281
        %v1283 = vadd.f32 %v1274, %v1275
        %v1284 = vadd.f32 %v1283, %v1276
        %v1285 = vadd.f32 %v1284, %v1277
        %1286 = vadd.xlane.f32.xlu0 %v1285
        %v1287 = vpop.xlane.xlu0 %1286
        %v1288 = vmul.f32 %v1282, 0.003921569
        %v1289 = vmul.f32 %v1287, 0.003921569
        %v1290 = vrsqrt.pop %v1288
        %v1291 = vmul.f32 %v1288, %v1290
        %vm1292 = vcmp.eq.f32.partialorder %v1288, inf
        %v1293 = vsel %vm1292, %v1288, %v1291
        %vm1294 = vcmp.eq.f32.partialorder %v1288, 0.0
        %v1295 = vand.u32 %v1288, 2147483648
        %v1296 = vsel %vm1294, %v1295, %v1293
        %v1297 = vrsqrt.pop %v1289
        %v1298 = vmul.f32 %v1289, %v1297
        %vm1299 = vcmp.eq.f32.partialorder %v1289, inf
        %v1300 = vsel %vm1299, %v1289, %v1298
        %vm1301 = vcmp.eq.f32.partialorder %v1289, 0.0
        %v1302 = vand.u32 %v1289, 2147483648
        %v1303 = vsel %vm1301, %v1302, %v1300
        %v1304 = vadd.f32 %v1296, 1e-09
        %v1305 = vadd.f32 %v1303, 1e-09
        %v1306 = vrcp.pop %v1304
        %v1307 = vmul.f32 1.0, %v1306
        %v1308 = vrcp.pop %v1305
        %v1309 = vmul.f32 1.0, %v1308
        %v1310 = vmul.f32 %v1254, 2.0
        %v1311 = vmul.f32 %v1255, 2.0
        %v1312 = vmul.f32 %v1256, 2.0
        %v1313 = vmul.f32 %v1257, 2.0
        %v1314 = vmul.f32 %v1258, 2.0
        %v1315 = vmul.f32 %v1259, 2.0
        %v1316 = vmul.f32 %v1260, 2.0
        %v1317 = vmul.f32 %v1261, 2.0
        %v1318 = vmul.f32 %v1310, %v1307
        %v1319 = vmul.f32 %v1311, %v1307
        %v1320 = vmul.f32 %v1312, %v1307
        %v1321 = vmul.f32 %v1313, %v1307
        %v1322 = vmul.f32 %v1314, %v1309
        %v1323 = vmul.f32 %v1315, %v1309
        %v1324 = vmul.f32 %v1316, %v1309
        %v1325 = vmul.f32 %v1317, %v1309
        %v1326 = vsub.f32 %v1318, 1.0
        %v1327 = vsub.f32 %v1319, 1.0
        %v1328 = vsub.f32 %v1320, 1.0
        %v1329 = vsub.f32 %v1321, 1.0
        %v1330 = vsub.f32 %v1322, 1.0
        %v1331 = vsub.f32 %v1323, 1.0
        %v1332 = vsub.f32 %v1324, 1.0
        %v1333 = vsub.f32 %v1325, 1.0
        %v1334 = vmul.f32 %v1326, 5.0
        %v1335 = vmul.f32 %v1327, 5.0
        %v1336 = vmul.f32 %v1328, 5.0
        %v1337 = vmul.f32 %v1329, 5.0
        %v1338 = vmul.f32 %v1330, 5.0
        %v1339 = vmul.f32 %v1331, 5.0
        %v1340 = vmul.f32 %v1332, 5.0
        %v1341 = vmul.f32 %v1333, 5.0
        %v1342 = vmul.f32 %v1334, 0.5
        %v1343 = vmul.f32 %v1335, 0.5
        %v1344 = vmul.f32 %v1336, 0.5
        %v1345 = vmul.f32 %v1337, 0.5
        %v1346 = vmul.f32 %v1338, 0.5
        %v1347 = vmul.f32 %v1339, 0.5
        %v1348 = vmul.f32 %v1340, 0.5
        %v1349 = vmul.f32 %v1341, 0.5
        %v1350 = vtanh.pop %v1342
        %v1351 = vtanh.pop %v1343
        %v1352 = vtanh.pop %v1344
        %v1353 = vtanh.pop %v1345
        %v1354 = vtanh.pop %v1346
        %v1355 = vtanh.pop %v1347
        %v1356 = vtanh.pop %v1348
        %v1357 = vtanh.pop %v1349
        %v1358 = vadd.f32 %v1350, 1.0
        %v1359 = vadd.f32 %v1351, 1.0
        %v1360 = vadd.f32 %v1352, 1.0
        %v1361 = vadd.f32 %v1353, 1.0
        %v1362 = vadd.f32 %v1354, 1.0
        %v1363 = vadd.f32 %v1355, 1.0
        %v1364 = vadd.f32 %v1356, 1.0
        %v1365 = vadd.f32 %v1357, 1.0
        %v1366 = vmul.f32 %v1358, 0.5
        %v1367 = vmul.f32 %v1359, 0.5
        %v1368 = vmul.f32 %v1360, 0.5
        %v1369 = vmul.f32 %v1361, 0.5
        %v1370 = vmul.f32 %v1362, 0.5
        %v1371 = vmul.f32 %v1363, 0.5
        %v1372 = vmul.f32 %v1364, 0.5
        %v1373 = vmul.f32 %v1365, 0.5
        %v1374 = vmax.f32 %v1139, 0.0
        %v1375 = vmax.f32 %v1141, 0.0
        %v1376 = vmax.f32 %v1222, 0.0
        %v1377 = vmax.f32 %v1224, 0.0
        %v1378 = vld [vmem:[%s277 + $0x8] sm:$0xff]
        %v1379 = vld [vmem:[%s277 + $0x10] sm:$0xff]
        %v1380 = vld [vmem:[%s277 + $0x18] sm:$0xff]
        %v1381 = vld [vmem:[%s277 + $0x20] sm:$0xff]
        %v1382 = vld [vmem:[%s277 + $0x28] sm:$0xff]
        %v1383 = vld [vmem:[%s277 + $0x50] sm:$0xff]
        %v1384 = vld [vmem:[%s277 + $0x58] sm:$0xff]
        %v1385 = vld [vmem:[%s277 + $0x60] sm:$0xff]
        %v1386 = vld [vmem:[%s277 + $0x68] sm:$0xff]
        %v1387 = vld [vmem:[%s277 + $0x70] sm:$0xff]
        %1398 = vrot.lane.b32.xlu0 %v1378, 58
        %v1399 = vpop.permute.xlu0 %1398
        %1400 = vrot.lane.b32.xlu0 %v1379, 58
        %v1401 = vpop.permute.xlu0 %1400
        %1402 = vrot.lane.b32.xlu0 %v1380, 58
        %v1403 = vpop.permute.xlu0 %1402
        %1404 = vrot.lane.b32.xlu0 %v1381, 58
        %v1405 = vpop.permute.xlu0 %1404
        %1406 = vrot.lane.b32.xlu0 %v1382, 58
        %v1407 = vpop.permute.xlu0 %1406
        %1408 = vrot.lane.b32.xlu0 %v1383, 58
        %v1409 = vpop.permute.xlu0 %1408
        %1410 = vrot.lane.b32.xlu0 %v1384, 58
        %v1411 = vpop.permute.xlu0 %1410
        %1412 = vrot.lane.b32.xlu0 %v1385, 58
        %v1413 = vpop.permute.xlu0 %1412
        %1414 = vrot.lane.b32.xlu0 %v1386, 58
        %v1415 = vpop.permute.xlu0 %1414
        %1416 = vrot.lane.b32.xlu0 %v1387, 58
        %v1417 = vpop.permute.xlu0 %1416
        %vm1418 = vcmask 474112
        %v1419 = vsel %vm1418, %v1399, %v1401
        %v1420 = vsel %vm1418, %v1401, %v1403
        %v1421 = vsel %vm1418, %v1403, %v1405
        %v1422 = vsel %vm1418, %v1405, %v1407
        %v1423 = vsel %vm1418, %v1409, %v1411
        %v1424 = vsel %vm1418, %v1411, %v1413
        %v1425 = vsel %vm1418, %v1413, %v1415
        %v1426 = vsel %vm1418, %v1415, %v1417
        %1435 = vst [vmem:[#allocation2] sm:$0xff] %v1419
        %1436 = vst [vmem:[#allocation2 + $0x8] sm:$0xff] %v1420
        %1437 = vst [vmem:[#allocation2 + $0x10] sm:$0xff] %v1421
        %1438 = vst [vmem:[#allocation2 + $0x18] sm:$0xff] %v1422
        %1439 = vst [vmem:[#allocation2 + $0x20] sm:$0xff] %v1423
        %1440 = vst [vmem:[#allocation2 + $0x28] sm:$0xff] %v1424
        %1441 = vst [vmem:[#allocation2 + $0x30] sm:$0xff] %v1425
        %1442 = vst [vmem:[#allocation2 + $0x38] sm:$0xff] %v1426
        %v1443 = vld [vmem:[%s277 + $0x8] sm:$0xff]
        %v1444 = vld [vmem:[%s277 + $0x10] sm:$0xff]
        %v1445 = vld [vmem:[%s277 + $0x18] sm:$0xff]
        %v1446 = vld [vmem:[%s277 + $0x20] sm:$0xff]
        %v1447 = vld [vmem:[%s277 + $0x28] sm:$0xff]
        %v1448 = vld [vmem:[%s277 + $0x50] sm:$0xff]
        %v1449 = vld [vmem:[%s277 + $0x58] sm:$0xff]
        %v1450 = vld [vmem:[%s277 + $0x60] sm:$0xff]
        %v1451 = vld [vmem:[%s277 + $0x68] sm:$0xff]
        %v1452 = vld [vmem:[%s277 + $0x70] sm:$0xff]
        %1463 = vrot.lane.b32.xlu0 %v1443, 56
        %v1464 = vpop.permute.xlu0 %1463
        %1465 = vrot.lane.b32.xlu0 %v1444, 56
        %v1466 = vpop.permute.xlu0 %1465
        %1467 = vrot.lane.b32.xlu0 %v1445, 56
        %v1468 = vpop.permute.xlu0 %1467
        %1469 = vrot.lane.b32.xlu0 %v1446, 56
        %v1470 = vpop.permute.xlu0 %1469
        %1471 = vrot.lane.b32.xlu0 %v1447, 56
        %v1472 = vpop.permute.xlu0 %1471
        %1473 = vrot.lane.b32.xlu0 %v1448, 56
        %v1474 = vpop.permute.xlu0 %1473
        %1475 = vrot.lane.b32.xlu0 %v1449, 56
        %v1476 = vpop.permute.xlu0 %1475
        %1477 = vrot.lane.b32.xlu0 %v1450, 56
        %v1478 = vpop.permute.xlu0 %1477
        %1479 = vrot.lane.b32.xlu0 %v1451, 56
        %v1480 = vpop.permute.xlu0 %1479
        %1481 = vrot.lane.b32.xlu0 %v1452, 56
        %v1482 = vpop.permute.xlu0 %1481
        %vm1483 = vcmask 457728
        %v1484 = vsel %vm1483, %v1464, %v1466
        %v1485 = vsel %vm1483, %v1466, %v1468
        %v1486 = vsel %vm1483, %v1468, %v1470
        %v1487 = vsel %vm1483, %v1470, %v1472
        %v1488 = vsel %vm1483, %v1474, %v1476
        %v1489 = vsel %vm1483, %v1476, %v1478
        %v1490 = vsel %vm1483, %v1478, %v1480
        %v1491 = vsel %vm1483, %v1480, %v1482
        %1500 = vst [vmem:[#allocation2 + $0x40] sm:$0xff] %v1484
        %1501 = vst [vmem:[#allocation2 + $0x48] sm:$0xff] %v1485
        %1502 = vst [vmem:[#allocation2 + $0x50] sm:$0xff] %v1486
        %1503 = vst [vmem:[#allocation2 + $0x58] sm:$0xff] %v1487
        %1504 = vst [vmem:[#allocation2 + $0x60] sm:$0xff] %v1488
        %1505 = vst [vmem:[#allocation2 + $0x68] sm:$0xff] %v1489
        %1506 = vst [vmem:[#allocation2 + $0x70] sm:$0xff] %v1490
        %1507 = vst [vmem:[#allocation2 + $0x78] sm:$0xff] %v1491
        %v1508 = vld [vmem:[%s277 + $0x8] sm:$0xff]
        %v1509 = vld [vmem:[%s277 + $0x10] sm:$0xff]
        %v1510 = vld [vmem:[%s277 + $0x18] sm:$0xff]
        %v1511 = vld [vmem:[%s277 + $0x20] sm:$0xff]
        %v1512 = vld [vmem:[%s277 + $0x28] sm:$0xff]
        %v1513 = vld [vmem:[%s277 + $0x50] sm:$0xff]
        %v1514 = vld [vmem:[%s277 + $0x58] sm:$0xff]
        %v1515 = vld [vmem:[%s277 + $0x60] sm:$0xff]
        %v1516 = vld [vmem:[%s277 + $0x68] sm:$0xff]
        %v1517 = vld [vmem:[%s277 + $0x70] sm:$0xff]
        %1528 = vrot.lane.b32.xlu0 %v1508, 54
        %v1529 = vpop.permute.xlu0 %1528
        %1530 = vrot.lane.b32.xlu0 %v1509, 54
        %v1531 = vpop.permute.xlu0 %1530
        %1532 = vrot.lane.b32.xlu0 %v1510, 54
        %v1533 = vpop.permute.xlu0 %1532
        %1534 = vrot.lane.b32.xlu0 %v1511, 54
        %v1535 = vpop.permute.xlu0 %1534
        %1536 = vrot.lane.b32.xlu0 %v1512, 54
        %v1537 = vpop.permute.xlu0 %1536
        %1538 = vrot.lane.b32.xlu0 %v1513, 54
        %v1539 = vpop.permute.xlu0 %1538
        %1540 = vrot.lane.b32.xlu0 %v1514, 54
        %v1541 = vpop.permute.xlu0 %1540
        %1542 = vrot.lane.b32.xlu0 %v1515, 54
        %v1543 = vpop.permute.xlu0 %1542
        %1544 = vrot.lane.b32.xlu0 %v1516, 54
        %v1545 = vpop.permute.xlu0 %1544
        %1546 = vrot.lane.b32.xlu0 %v1517, 54
        %v1547 = vpop.permute.xlu0 %1546
        %vm1548 = vcmask 441344
        %v1549 = vsel %vm1548, %v1529, %v1531
        %v1550 = vsel %vm1548, %v1531, %v1533
        %v1551 = vsel %vm1548, %v1533, %v1535
        %v1552 = vsel %vm1548, %v1535, %v1537
        %v1553 = vsel %vm1548, %v1539, %v1541
        %v1554 = vsel %vm1548, %v1541, %v1543
        %v1555 = vsel %vm1548, %v1543, %v1545
        %v1556 = vsel %vm1548, %v1545, %v1547
        %1565 = vst [vmem:[#allocation2 + $0x80] sm:$0xff] %v1549
        %1566 = vst [vmem:[#allocation2 + $0x88] sm:$0xff] %v1550
        %1567 = vst [vmem:[#allocation2 + $0x90] sm:$0xff] %v1551
        %1568 = vst [vmem:[#allocation2 + $0x98] sm:$0xff] %v1552
        %1569 = vst [vmem:[#allocation2 + $0xa0] sm:$0xff] %v1553
        %1570 = vst [vmem:[#allocation2 + $0xa8] sm:$0xff] %v1554
        %1571 = vst [vmem:[#allocation2 + $0xb0] sm:$0xff] %v1555
        %1572 = vst [vmem:[#allocation2 + $0xb8] sm:$0xff] %v1556
        %v1573 = vld [vmem:[%s277 + $0x10] sm:$0xff]
        %v1574 = vld [vmem:[%s277 + $0x18] sm:$0xff]
        %v1575 = vld [vmem:[%s277 + $0x20] sm:$0xff]
        %v1576 = vld [vmem:[%s277 + $0x28] sm:$0xff]
        %v1577 = vld [vmem:[%s277 + $0x30] sm:$0xff]
        %v1578 = vld [vmem:[%s277 + $0x58] sm:$0xff]
        %v1579 = vld [vmem:[%s277 + $0x60] sm:$0xff]
        %v1580 = vld [vmem:[%s277 + $0x68] sm:$0xff]
        %v1581 = vld [vmem:[%s277 + $0x70] sm:$0xff]
        %v1582 = vld [vmem:[%s277 + $0x78] sm:$0xff]
        %1593 = vrot.lane.b32.xlu0 %v1573, 122
        %v1594 = vpop.permute.xlu0 %1593
        %1595 = vrot.lane.b32.xlu0 %v1574, 122
        %v1596 = vpop.permute.xlu0 %1595
        %1597 = vrot.lane.b32.xlu0 %v1575, 122
        %v1598 = vpop.permute.xlu0 %1597
        %1599 = vrot.lane.b32.xlu0 %v1576, 122
        %v1600 = vpop.permute.xlu0 %1599
        %1601 = vrot.lane.b32.xlu0 %v1577, 122
        %v1602 = vpop.permute.xlu0 %1601
        %1603 = vrot.lane.b32.xlu0 %v1578, 122
        %v1604 = vpop.permute.xlu0 %1603
        %1605 = vrot.lane.b32.xlu0 %v1579, 122
        %v1606 = vpop.permute.xlu0 %1605
        %1607 = vrot.lane.b32.xlu0 %v1580, 122
        %v1608 = vpop.permute.xlu0 %1607
        %1609 = vrot.lane.b32.xlu0 %v1581, 122
        %v1610 = vpop.permute.xlu0 %1609
        %1611 = vrot.lane.b32.xlu0 %v1582, 122
        %v1612 = vpop.permute.xlu0 %1611
        %vm1613 = vcmask 998400
        %v1614 = vsel %vm1613, %v1594, %v1596
        %v1615 = vsel %vm1613, %v1596, %v1598
        %v1616 = vsel %vm1613, %v1598, %v1600
        %v1617 = vsel %vm1613, %v1600, %v1602
        %v1618 = vsel %vm1613, %v1604, %v1606
        %v1619 = vsel %vm1613, %v1606, %v1608
        %v1620 = vsel %vm1613, %v1608, %v1610
        %v1621 = vsel %vm1613, %v1610, %v1612
        %1630 = vst [vmem:[#allocation2 + $0xc0] sm:$0xff] %v1614
        %1631 = vst [vmem:[#allocation2 + $0xc8] sm:$0xff] %v1615
        %1632 = vst [vmem:[#allocation2 + $0xd0] sm:$0xff] %v1616
        %1633 = vst [vmem:[#allocation2 + $0xd8] sm:$0xff] %v1617
        %1634 = vst [vmem:[#allocation2 + $0xe0] sm:$0xff] %v1618
        %1635 = vst [vmem:[#allocation2 + $0xe8] sm:$0xff] %v1619
        %1636 = vst [vmem:[#allocation2 + $0xf0] sm:$0xff] %v1620
        %1637 = vst [vmem:[#allocation2 + $0xf8] sm:$0xff] %v1621
        %v1638 = vld [vmem:[%s277 + $0x10] sm:$0xff]
        %v1639 = vld [vmem:[%s277 + $0x18] sm:$0xff]
        %v1640 = vld [vmem:[%s277 + $0x20] sm:$0xff]
        %v1641 = vld [vmem:[%s277 + $0x28] sm:$0xff]
        %v1642 = vld [vmem:[%s277 + $0x30] sm:$0xff]
        %v1643 = vld [vmem:[%s277 + $0x58] sm:$0xff]
        %v1644 = vld [vmem:[%s277 + $0x60] sm:$0xff]
        %v1645 = vld [vmem:[%s277 + $0x68] sm:$0xff]
        %v1646 = vld [vmem:[%s277 + $0x70] sm:$0xff]
        %v1647 = vld [vmem:[%s277 + $0x78] sm:$0xff]
        %1658 = vrot.lane.b32.xlu0 %v1638, 120
        %v1659 = vpop.permute.xlu0 %1658
        %1660 = vrot.lane.b32.xlu0 %v1639, 120
        %v1661 = vpop.permute.xlu0 %1660
        %1662 = vrot.lane.b32.xlu0 %v1640, 120
        %v1663 = vpop.permute.xlu0 %1662
        %1664 = vrot.lane.b32.xlu0 %v1641, 120
        %v1665 = vpop.permute.xlu0 %1664
        %1666 = vrot.lane.b32.xlu0 %v1642, 120
        %v1667 = vpop.permute.xlu0 %1666
        %1668 = vrot.lane.b32.xlu0 %v1643, 120
        %v1669 = vpop.permute.xlu0 %1668
        %1670 = vrot.lane.b32.xlu0 %v1644, 120
        %v1671 = vpop.permute.xlu0 %1670
        %1672 = vrot.lane.b32.xlu0 %v1645, 120
        %v1673 = vpop.permute.xlu0 %1672
        %1674 = vrot.lane.b32.xlu0 %v1646, 120
        %v1675 = vpop.permute.xlu0 %1674
        %1676 = vrot.lane.b32.xlu0 %v1647, 120
        %v1677 = vpop.permute.xlu0 %1676
        %v1678 = vsel %vm669, %v1659, %v1661
        %v1679 = vsel %vm669, %v1661, %v1663
        %v1680 = vsel %vm669, %v1663, %v1665
        %v1681 = vsel %vm669, %v1665, %v1667
        %v1682 = vsel %vm669, %v1669, %v1671
        %v1683 = vsel %vm669, %v1671, %v1673
        %v1684 = vsel %vm669, %v1673, %v1675
        %v1685 = vsel %vm669, %v1675, %v1677
        %1694 = vst [vmem:[#allocation2 + $0x100] sm:$0xff] %v1678
        %1695 = vst [vmem:[#allocation2 + $0x108] sm:$0xff] %v1679
        %1696 = vst [vmem:[#allocation2 + $0x110] sm:$0xff] %v1680
        %1697 = vst [vmem:[#allocation2 + $0x118] sm:$0xff] %v1681
        %1698 = vst [vmem:[#allocation2 + $0x120] sm:$0xff] %v1682
        %1699 = vst [vmem:[#allocation2 + $0x128] sm:$0xff] %v1683
        %1700 = vst [vmem:[#allocation2 + $0x130] sm:$0xff] %v1684
        %1701 = vst [vmem:[#allocation2 + $0x138] sm:$0xff] %v1685
        %v1702 = vld [vmem:[%s277 + $0x10] sm:$0xff]
        %v1703 = vld [vmem:[%s277 + $0x18] sm:$0xff]
        %v1704 = vld [vmem:[%s277 + $0x20] sm:$0xff]
        %v1705 = vld [vmem:[%s277 + $0x28] sm:$0xff]
        %v1706 = vld [vmem:[%s277 + $0x30] sm:$0xff]
        %v1707 = vld [vmem:[%s277 + $0x58] sm:$0xff]
        %v1708 = vld [vmem:[%s277 + $0x60] sm:$0xff]
        %v1709 = vld [vmem:[%s277 + $0x68] sm:$0xff]
        %v1710 = vld [vmem:[%s277 + $0x70] sm:$0xff]
        %v1711 = vld [vmem:[%s277 + $0x78] sm:$0xff]
        %1722 = vrot.lane.b32.xlu0 %v1702, 118
        %v1723 = vpop.permute.xlu0 %1722
        %1724 = vrot.lane.b32.xlu0 %v1703, 118
        %v1725 = vpop.permute.xlu0 %1724
        %1726 = vrot.lane.b32.xlu0 %v1704, 118
        %v1727 = vpop.permute.xlu0 %1726
        %1728 = vrot.lane.b32.xlu0 %v1705, 118
        %v1729 = vpop.permute.xlu0 %1728
        %1730 = vrot.lane.b32.xlu0 %v1706, 118
        %v1731 = vpop.permute.xlu0 %1730
        %1732 = vrot.lane.b32.xlu0 %v1707, 118
        %v1733 = vpop.permute.xlu0 %1732
        %1734 = vrot.lane.b32.xlu0 %v1708, 118
        %v1735 = vpop.permute.xlu0 %1734
        %1736 = vrot.lane.b32.xlu0 %v1709, 118
        %v1737 = vpop.permute.xlu0 %1736
        %1738 = vrot.lane.b32.xlu0 %v1710, 118
        %v1739 = vpop.permute.xlu0 %1738
        %1740 = vrot.lane.b32.xlu0 %v1711, 118
        %v1741 = vpop.permute.xlu0 %1740
        %vm1742 = vcmask 965632
        %v1743 = vsel %vm1742, %v1723, %v1725
        %v1744 = vsel %vm1742, %v1725, %v1727
        %v1745 = vsel %vm1742, %v1727, %v1729
        %v1746 = vsel %vm1742, %v1729, %v1731
        %v1747 = vsel %vm1742, %v1733, %v1735
        %v1748 = vsel %vm1742, %v1735, %v1737
        %v1749 = vsel %vm1742, %v1737, %v1739
        %v1750 = vsel %vm1742, %v1739, %v1741
        %1759 = vst [vmem:[#allocation2 + $0x140] sm:$0xff] %v1743
        %1760 = vst [vmem:[#allocation2 + $0x148] sm:$0xff] %v1744
        %1761 = vst [vmem:[#allocation2 + $0x150] sm:$0xff] %v1745
        %1762 = vst [vmem:[#allocation2 + $0x158] sm:$0xff] %v1746
        %1763 = vst [vmem:[#allocation2 + $0x160] sm:$0xff] %v1747
        %1764 = vst [vmem:[#allocation2 + $0x168] sm:$0xff] %v1748
        %1765 = vst [vmem:[#allocation2 + $0x170] sm:$0xff] %v1749
        %1766 = vst [vmem:[#allocation2 + $0x178] sm:$0xff] %v1750
        %v1767 = vld [vmem:[%s277 + $0x10] sm:$0xff]
        %v1768 = vld [vmem:[%s277 + $0x18] sm:$0xff]
        %v1769 = vld [vmem:[%s277 + $0x20] sm:$0xff]
        %v1770 = vld [vmem:[%s277 + $0x28] sm:$0xff]
        %v1771 = vld [vmem:[%s277 + $0x30] sm:$0xff]
        %v1772 = vld [vmem:[%s277 + $0x58] sm:$0xff]
        %v1773 = vld [vmem:[%s277 + $0x60] sm:$0xff]
        %v1774 = vld [vmem:[%s277 + $0x68] sm:$0xff]
        %v1775 = vld [vmem:[%s277 + $0x70] sm:$0xff]
        %v1776 = vld [vmem:[%s277 + $0x78] sm:$0xff]
        %1787 = vrot.lane.b32.xlu0 %v1767, 58
        %v1788 = vpop.permute.xlu0 %1787
        %1789 = vrot.lane.b32.xlu0 %v1768, 58
        %v1790 = vpop.permute.xlu0 %1789
        %1791 = vrot.lane.b32.xlu0 %v1769, 58
        %v1792 = vpop.permute.xlu0 %1791
        %1793 = vrot.lane.b32.xlu0 %v1770, 58
        %v1794 = vpop.permute.xlu0 %1793
        %1795 = vrot.lane.b32.xlu0 %v1771, 58
        %v1796 = vpop.permute.xlu0 %1795
        %1797 = vrot.lane.b32.xlu0 %v1772, 58
        %v1798 = vpop.permute.xlu0 %1797
        %1799 = vrot.lane.b32.xlu0 %v1773, 58
        %v1800 = vpop.permute.xlu0 %1799
        %1801 = vrot.lane.b32.xlu0 %v1774, 58
        %v1802 = vpop.permute.xlu0 %1801
        %1803 = vrot.lane.b32.xlu0 %v1775, 58
        %v1804 = vpop.permute.xlu0 %1803
        %1805 = vrot.lane.b32.xlu0 %v1776, 58
        %v1806 = vpop.permute.xlu0 %1805
        %v1807 = vsel %vm1418, %v1788, %v1790
        %v1808 = vsel %vm1418, %v1790, %v1792
        %v1809 = vsel %vm1418, %v1792, %v1794
        %v1810 = vsel %vm1418, %v1794, %v1796
        %v1811 = vsel %vm1418, %v1798, %v1800
        %v1812 = vsel %vm1418, %v1800, %v1802
        %v1813 = vsel %vm1418, %v1802, %v1804
        %v1814 = vsel %vm1418, %v1804, %v1806
        %1823 = vst [vmem:[#allocation2 + $0x180] sm:$0xff] %v1807
        %1824 = vst [vmem:[#allocation2 + $0x188] sm:$0xff] %v1808
        %1825 = vst [vmem:[#allocation2 + $0x190] sm:$0xff] %v1809
        %1826 = vst [vmem:[#allocation2 + $0x198] sm:$0xff] %v1810
        %1827 = vst [vmem:[#allocation2 + $0x1a0] sm:$0xff] %v1811
        %1828 = vst [vmem:[#allocation2 + $0x1a8] sm:$0xff] %v1812
        %1829 = vst [vmem:[#allocation2 + $0x1b0] sm:$0xff] %v1813
        %1830 = vst [vmem:[#allocation2 + $0x1b8] sm:$0xff] %v1814
        %v1831 = vld [vmem:[%s277 + $0x10] sm:$0xff]
        %v1832 = vld [vmem:[%s277 + $0x18] sm:$0xff]
        %v1833 = vld [vmem:[%s277 + $0x20] sm:$0xff]
        %v1834 = vld [vmem:[%s277 + $0x28] sm:$0xff]
        %v1835 = vld [vmem:[%s277 + $0x30] sm:$0xff]
        %v1836 = vld [vmem:[%s277 + $0x58] sm:$0xff]
        %v1837 = vld [vmem:[%s277 + $0x60] sm:$0xff]
        %v1838 = vld [vmem:[%s277 + $0x68] sm:$0xff]
        %v1839 = vld [vmem:[%s277 + $0x70] sm:$0xff]
        %v1840 = vld [vmem:[%s277 + $0x78] sm:$0xff]
        %1851 = vrot.lane.b32.xlu0 %v1831, 56
        %v1852 = vpop.permute.xlu0 %1851
        %1853 = vrot.lane.b32.xlu0 %v1832, 56
        %v1854 = vpop.permute.xlu0 %1853
        %1855 = vrot.lane.b32.xlu0 %v1833, 56
        %v1856 = vpop.permute.xlu0 %1855
        %1857 = vrot.lane.b32.xlu0 %v1834, 56
        %v1858 = vpop.permute.xlu0 %1857
        %1859 = vrot.lane.b32.xlu0 %v1835, 56
        %v1860 = vpop.permute.xlu0 %1859
        %1861 = vrot.lane.b32.xlu0 %v1836, 56
        %v1862 = vpop.permute.xlu0 %1861
        %1863 = vrot.lane.b32.xlu0 %v1837, 56
        %v1864 = vpop.permute.xlu0 %1863
        %1865 = vrot.lane.b32.xlu0 %v1838, 56
        %v1866 = vpop.permute.xlu0 %1865
        %1867 = vrot.lane.b32.xlu0 %v1839, 56
        %v1868 = vpop.permute.xlu0 %1867
        %1869 = vrot.lane.b32.xlu0 %v1840, 56
        %v1870 = vpop.permute.xlu0 %1869
        %v1871 = vsel %vm1483, %v1852, %v1854
        %v1872 = vsel %vm1483, %v1854, %v1856
        %v1873 = vsel %vm1483, %v1856, %v1858
        %v1874 = vsel %vm1483, %v1858, %v1860
        %v1875 = vsel %vm1483, %v1862, %v1864
        %v1876 = vsel %vm1483, %v1864, %v1866
        %v1877 = vsel %vm1483, %v1866, %v1868
        %v1878 = vsel %vm1483, %v1868, %v1870
        %1887 = vst [vmem:[#allocation2 + $0x1c0] sm:$0xff] %v1871
        %1888 = vst [vmem:[#allocation2 + $0x1c8] sm:$0xff] %v1872
        %1889 = vst [vmem:[#allocation2 + $0x1d0] sm:$0xff] %v1873
        %1890 = vst [vmem:[#allocation2 + $0x1d8] sm:$0xff] %v1874
        %1891 = vst [vmem:[#allocation2 + $0x1e0] sm:$0xff] %v1875
        %1892 = vst [vmem:[#allocation2 + $0x1e8] sm:$0xff] %v1876
        %1893 = vst [vmem:[#allocation2 + $0x1f0] sm:$0xff] %v1877
        %1894 = vst [vmem:[#allocation2 + $0x1f8] sm:$0xff] %v1878
        %v1895 = vld [vmem:[%s277 + $0x10] sm:$0xff]
        %v1896 = vld [vmem:[%s277 + $0x18] sm:$0xff]
        %v1897 = vld [vmem:[%s277 + $0x20] sm:$0xff]
        %v1898 = vld [vmem:[%s277 + $0x28] sm:$0xff]
        %v1899 = vld [vmem:[%s277 + $0x30] sm:$0xff]
        %v1900 = vld [vmem:[%s277 + $0x58] sm:$0xff]
        %v1901 = vld [vmem:[%s277 + $0x60] sm:$0xff]
        %v1902 = vld [vmem:[%s277 + $0x68] sm:$0xff]
        %v1903 = vld [vmem:[%s277 + $0x70] sm:$0xff]
        %v1904 = vld [vmem:[%s277 + $0x78] sm:$0xff]
        %1915 = vrot.lane.b32.xlu0 %v1895, 54
        %v1916 = vpop.permute.xlu0 %1915
        %1917 = vrot.lane.b32.xlu0 %v1896, 54
        %v1918 = vpop.permute.xlu0 %1917
        %1919 = vrot.lane.b32.xlu0 %v1897, 54
        %v1920 = vpop.permute.xlu0 %1919
        %1921 = vrot.lane.b32.xlu0 %v1898, 54
        %v1922 = vpop.permute.xlu0 %1921
        %1923 = vrot.lane.b32.xlu0 %v1899, 54
        %v1924 = vpop.permute.xlu0 %1923
        %1925 = vrot.lane.b32.xlu0 %v1900, 54
        %v1926 = vpop.permute.xlu0 %1925
        %1927 = vrot.lane.b32.xlu0 %v1901, 54
        %v1928 = vpop.permute.xlu0 %1927
        %1929 = vrot.lane.b32.xlu0 %v1902, 54
        %v1930 = vpop.permute.xlu0 %1929
        %1931 = vrot.lane.b32.xlu0 %v1903, 54
        %v1932 = vpop.permute.xlu0 %1931
        %1933 = vrot.lane.b32.xlu0 %v1904, 54
        %v1934 = vpop.permute.xlu0 %1933
        %v1935 = vsel %vm1548, %v1916, %v1918
        %v1936 = vsel %vm1548, %v1918, %v1920
        %v1937 = vsel %vm1548, %v1920, %v1922
        %v1938 = vsel %vm1548, %v1922, %v1924
        %v1939 = vsel %vm1548, %v1926, %v1928
        %v1940 = vsel %vm1548, %v1928, %v1930
        %v1941 = vsel %vm1548, %v1930, %v1932
        %v1942 = vsel %vm1548, %v1932, %v1934
        %1951 = vst [vmem:[#allocation2 + $0x200] sm:$0xff] %v1935
        %1952 = vst [vmem:[#allocation2 + $0x208] sm:$0xff] %v1936
        %1953 = vst [vmem:[#allocation2 + $0x210] sm:$0xff] %v1937
        %1954 = vst [vmem:[#allocation2 + $0x218] sm:$0xff] %v1938
        %1955 = vst [vmem:[#allocation2 + $0x220] sm:$0xff] %v1939
        %1956 = vst [vmem:[#allocation2 + $0x228] sm:$0xff] %v1940
        %1957 = vst [vmem:[#allocation2 + $0x230] sm:$0xff] %v1941
        %1958 = vst [vmem:[#allocation2 + $0x238] sm:$0xff] %v1942
        %s1959 = scalar_lea.vmem %s1, 8
        %v1960 = vld [vmem:[%s1959] sm:$0xff]
        %s1961 = scalar_lea.vmem %s2, 4
        %v1962 = vld [vmem:[%s1961] sm:$0xf]
        %v1963 = vld [vmem:[#allocation2] sm:$0xff]
        %v1964 = vld [vmem:[#allocation2 + $0x8] sm:$0xff]
        %v1965 = vld [vmem:[#allocation2 + $0x10] sm:$0xff]
        %v1966 = vld [vmem:[#allocation2 + $0x18] sm:$0xff]
        %v1967 = vld [vmem:[#allocation2 + $0x20] sm:$0xff]
        %v1968 = vld [vmem:[#allocation2 + $0x28] sm:$0xff]
        %v1969 = vld [vmem:[#allocation2 + $0x30] sm:$0xff]
        %v1970 = vld [vmem:[#allocation2 + $0x38] sm:$0xff]
        %v1971 = vld [vmem:[#allocation2 + $0x40] sm:$0xff]
        %v1972 = vld [vmem:[#allocation2 + $0x48] sm:$0xff]
        %v1973 = vld [vmem:[#allocation2 + $0x50] sm:$0xff]
        %v1974 = vld [vmem:[#allocation2 + $0x58] sm:$0xff]
        %v1975 = vld [vmem:[#allocation2 + $0x60] sm:$0xff]
        %v1976 = vld [vmem:[#allocation2 + $0x68] sm:$0xff]
        %v1977 = vld [vmem:[#allocation2 + $0x70] sm:$0xff]
        %v1978 = vld [vmem:[#allocation2 + $0x78] sm:$0xff]
        %v1979 = vld [vmem:[#allocation2 + $0x80] sm:$0xff]
        %v1980 = vld [vmem:[#allocation2 + $0x88] sm:$0xff]
        %v1981 = vld [vmem:[#allocation2 + $0x90] sm:$0xff]
        %v1982 = vld [vmem:[#allocation2 + $0x98] sm:$0xff]
        %v1983 = vld [vmem:[#allocation2 + $0xa0] sm:$0xff]
        %v1984 = vld [vmem:[#allocation2 + $0xa8] sm:$0xff]
        %v1985 = vld [vmem:[#allocation2 + $0xb0] sm:$0xff]
        %v1986 = vld [vmem:[#allocation2 + $0xb8] sm:$0xff]
        %v1987 = vld [vmem:[#allocation2 + $0xc0] sm:$0xff]
        %v1988 = vld [vmem:[#allocation2 + $0xc8] sm:$0xff]
        %v1989 = vld [vmem:[#allocation2 + $0xd0] sm:$0xff]
        %v1990 = vld [vmem:[#allocation2 + $0xd8] sm:$0xff]
        %v1991 = vld [vmem:[#allocation2 + $0xe0] sm:$0xff]
        %v1992 = vld [vmem:[#allocation2 + $0xe8] sm:$0xff]
        %v1993 = vld [vmem:[#allocation2 + $0xf0] sm:$0xff]
        %v1994 = vld [vmem:[#allocation2 + $0xf8] sm:$0xff]
        %v1995 = vld [vmem:[#allocation2 + $0x100] sm:$0xff]
        %v1996 = vld [vmem:[#allocation2 + $0x108] sm:$0xff]
        %v1997 = vld [vmem:[#allocation2 + $0x110] sm:$0xff]
        %v1998 = vld [vmem:[#allocation2 + $0x118] sm:$0xff]
        %v1999 = vld [vmem:[#allocation2 + $0x120] sm:$0xff]
        %v2000 = vld [vmem:[#allocation2 + $0x128] sm:$0xff]
        %v2001 = vld [vmem:[#allocation2 + $0x130] sm:$0xff]
        %v2002 = vld [vmem:[#allocation2 + $0x138] sm:$0xff]
        %v2003 = vld [vmem:[#allocation2 + $0x140] sm:$0xff]
        %v2004 = vld [vmem:[#allocation2 + $0x148] sm:$0xff]
        %v2005 = vld [vmem:[#allocation2 + $0x150] sm:$0xff]
        %v2006 = vld [vmem:[#allocation2 + $0x158] sm:$0xff]
        %v2007 = vld [vmem:[#allocation2 + $0x160] sm:$0xff]
        %v2008 = vld [vmem:[#allocation2 + $0x168] sm:$0xff]
        %v2009 = vld [vmem:[#allocation2 + $0x170] sm:$0xff]
        %v2010 = vld [vmem:[#allocation2 + $0x178] sm:$0xff]
        %v2011 = vld [vmem:[#allocation2 + $0x180] sm:$0xff]
        %v2012 = vld [vmem:[#allocation2 + $0x188] sm:$0xff]
        %v2013 = vld [vmem:[#allocation2 + $0x190] sm:$0xff]
        %v2014 = vld [vmem:[#allocation2 + $0x198] sm:$0xff]
        %v2015 = vld [vmem:[#allocation2 + $0x1a0] sm:$0xff]
        %v2016 = vld [vmem:[#allocation2 + $0x1a8] sm:$0xff]
        %v2017 = vld [vmem:[#allocation2 + $0x1b0] sm:$0xff]
        %v2018 = vld [vmem:[#allocation2 + $0x1b8] sm:$0xff]
        %v2019 = vld [vmem:[#allocation2 + $0x1c0] sm:$0xff]
        %v2020 = vld [vmem:[#allocation2 + $0x1c8] sm:$0xff]
        %v2021 = vld [vmem:[#allocation2 + $0x1d0] sm:$0xff]
        %v2022 = vld [vmem:[#allocation2 + $0x1d8] sm:$0xff]
        %v2023 = vld [vmem:[#allocation2 + $0x1e0] sm:$0xff]
        %v2024 = vld [vmem:[#allocation2 + $0x1e8] sm:$0xff]
        %v2025 = vld [vmem:[#allocation2 + $0x1f0] sm:$0xff]
        %v2026 = vld [vmem:[#allocation2 + $0x1f8] sm:$0xff]
        %v2027 = vld [vmem:[#allocation2 + $0x200] sm:$0xff]
        %v2028 = vld [vmem:[#allocation2 + $0x208] sm:$0xff]
        %v2029 = vld [vmem:[#allocation2 + $0x210] sm:$0xff]
        %v2030 = vld [vmem:[#allocation2 + $0x218] sm:$0xff]
        %v2031 = vld [vmem:[#allocation2 + $0x220] sm:$0xff]
        %v2032 = vld [vmem:[#allocation2 + $0x228] sm:$0xff]
        %v2033 = vld [vmem:[#allocation2 + $0x230] sm:$0xff]
        %v2034 = vld [vmem:[#allocation2 + $0x238] sm:$0xff]
        %2036 = vset.pattern.permute.xlu0 0
        %2037 = vperm.xlu0 %2036, %v1962
        %v2038 = vpop.permute.xlu0 %2037
        %v2041 = vcombine.high %v1960, %v1960
        %v2042 = vsel %vm1050, %v2041, 0
        %2044 = vmatprep.subr.mxu0 %v1964
        %2045 = vmatpush1.msra.mxu0 %v1963
        %2046 = vmatprep.subr.mxu0 %v1968
        %2047 = vmatpush1.msra.mxu0 %v1967
        %2048 = vmatprep.subr.mxu0 %v1972
        %2049 = vmatpush1.msra.mxu0 %v1971
        %2050 = vmatprep.subr.mxu0 %v1976
        %2051 = vmatpush1.msra.mxu0 %v1975
        %2052 = vmatprep.subr.mxu0 %v1980
        %2053 = vmatpush1.msra.mxu0 %v1979
        %2054 = vmatprep.subr.mxu0 %v1984
        %2055 = vmatpush1.msra.mxu0 %v1983
        %2056 = vmatprep.subr.mxu0 %v1988
        %2057 = vmatpush1.msra.mxu0 %v1987
        %2058 = vmatprep.subr.mxu0 %v1992
        %2059 = vmatpush1.msra.mxu0 %v1991
        %2060 = vmatprep.subr.mxu0 %v1996
        %2061 = vmatpush1.msra.mxu0 %v1995
        %2062 = vmatprep.subr.mxu0 %v2000
        %2063 = vmatpush1.msra.mxu0 %v1999
        %2064 = vmatprep.subr.mxu0 %v2004
        %2065 = vmatpush1.msra.mxu0 %v2003
        %2066 = vmatprep.subr.mxu0 %v2008
        %2067 = vmatpush1.msra.mxu0 %v2007
        %2068 = vmatprep.subr.mxu0 %v2012
        %2069 = vmatpush1.msra.mxu0 %v2011
        %2070 = vmatprep.subr.mxu0 %v2016
        %2071 = vmatpush1.msra.mxu0 %v2015
        %2072 = vmatprep.subr.mxu0 %v2020
        %2073 = vmatpush1.msra.mxu0 %v2019
        %2074 = vmatprep.subr.mxu0 %v2024
        %2075 = vmatpush1.msra.mxu0 %v2023
        %2076 = vmatprep.subr.mxu0 %v2028
        %2077 = vmatpush1.msra.mxu0 %v2027
        %2078 = vmatprep.subr.mxu0 %v2032
        %2079 = vmatpush1.msra.mxu0 %v2031
        %2080 = vmatprep.subr.mxu0 0.0
        %2081 = vmatpush1.msra.mxu0 0.0
        %2082 = vmatprep.subr.mxu0 0.0
        %2083 = vmatpush1.msra.mxu0 0.0
        %2084 = vmatprep.subr.mxu0 0.0
        %2085 = vmatpush1.msra.mxu0 0.0
        %2086 = vmatprep.subr.mxu0 0.0
        %2087 = vmatpush1.msra.mxu0 0.0
        %2088 = vmatprep.subr.mxu0 0.0
        %2089 = vmatpush1.msra.mxu0 0.0
        %2090 = vmatprep.subr.mxu0 0.0
        %2091 = vmatpush1.msra.mxu0 0.0
        %2092 = vmatprep.subr.mxu0 0.0
        %2093 = vmatpush1.msra.mxu0 0.0
        %2094 = vmatprep.subr.mxu0 0.0
        %2095 = vmatpush1.msra.mxu0 0.0
        %2096 = vmatprep.subr.mxu0 0.0
        %2097 = vmatpush1.msra.mxu0 0.0
        %2098 = vmatprep.subr.mxu0 0.0
        %2099 = vmatpush1.msra.mxu0 0.0
        %2100 = vmatprep.subr.mxu0 0.0
        %2101 = vmatpush1.msra.mxu0 0.0
        %2102 = vmatprep.subr.mxu0 0.0
        %2103 = vmatpush1.msra.mxu0 0.0
        %2104 = vmatprep.subr.mxu0 0.0
        %2105 = vmatpush1.msra.mxu0 0.0
        %2106 = vmatprep.subr.mxu0 0.0
        %2107 = vmatpush1.msra.mxu0 0.0
        %2108 = vmatprep.mubr.f32.mxu0 %v2042
        %2109 = vmatmul.mubr.f32.gmra.mrb[0].mxu0 %v1960
        %v2110 = vpop.f32.mrb[0].mxu0
        %v2111 = vadd.f32 %v2038, %v2110
        %v2112 = vpop.f32.mrb[0].mxu0
        %v2113 = vadd.f32 %v2038, %v2112
        %2114 = vdwg.mxu0
        %2115 = vmatprep.subr.mxu0 %v1966
        %2116 = vmatpush1.msra.mxu0 %v1965
        %2117 = vmatprep.subr.mxu0 %v1970
        %2118 = vmatpush1.msra.mxu0 %v1969
        %2119 = vmatprep.subr.mxu0 %v1974
        %2120 = vmatpush1.msra.mxu0 %v1973
        %2121 = vmatprep.subr.mxu0 %v1978
        %2122 = vmatpush1.msra.mxu0 %v1977
        %2123 = vmatprep.subr.mxu0 %v1982
        %2124 = vmatpush1.msra.mxu0 %v1981
        %2125 = vmatprep.subr.mxu0 %v1986
        %2126 = vmatpush1.msra.mxu0 %v1985
        %2127 = vmatprep.subr.mxu0 %v1990
        %2128 = vmatpush1.msra.mxu0 %v1989
        %2129 = vmatprep.subr.mxu0 %v1994
        %2130 = vmatpush1.msra.mxu0 %v1993
        %2131 = vmatprep.subr.mxu0 %v1998
        %2132 = vmatpush1.msra.mxu0 %v1997
        %2133 = vmatprep.subr.mxu0 %v2002
        %2134 = vmatpush1.msra.mxu0 %v2001
        %2135 = vmatprep.subr.mxu0 %v2006
        %2136 = vmatpush1.msra.mxu0 %v2005
        %2137 = vmatprep.subr.mxu0 %v2010
        %2138 = vmatpush1.msra.mxu0 %v2009
        %2139 = vmatprep.subr.mxu0 %v2014
        %2140 = vmatpush1.msra.mxu0 %v2013
        %2141 = vmatprep.subr.mxu0 %v2018
        %2142 = vmatpush1.msra.mxu0 %v2017
        %2143 = vmatprep.subr.mxu0 %v2022
        %2144 = vmatpush1.msra.mxu0 %v2021
        %2145 = vmatprep.subr.mxu0 %v2026
        %2146 = vmatpush1.msra.mxu0 %v2025
        %2147 = vmatprep.subr.mxu0 %v2030
        %2148 = vmatpush1.msra.mxu0 %v2029
        %2149 = vmatprep.subr.mxu0 %v2034
        %2150 = vmatpush1.msra.mxu0 %v2033
        %2151 = vmatprep.subr.mxu0 0.0
        %2152 = vmatpush1.msra.mxu0 0.0
        %2153 = vmatprep.subr.mxu0 0.0
        %2154 = vmatpush1.msra.mxu0 0.0
        %2155 = vmatprep.subr.mxu0 0.0
        %2156 = vmatpush1.msra.mxu0 0.0
        %2157 = vmatprep.subr.mxu0 0.0
        %2158 = vmatpush1.msra.mxu0 0.0
        %2159 = vmatprep.subr.mxu0 0.0
        %2160 = vmatpush1.msra.mxu0 0.0
        %2161 = vmatprep.subr.mxu0 0.0
        %2162 = vmatpush1.msra.mxu0 0.0
        %2163 = vmatprep.subr.mxu0 0.0
        %2164 = vmatpush1.msra.mxu0 0.0
        %2165 = vmatprep.subr.mxu0 0.0
        %2166 = vmatpush1.msra.mxu0 0.0
        %2167 = vmatprep.subr.mxu0 0.0
        %2168 = vmatpush1.msra.mxu0 0.0
        %2169 = vmatprep.subr.mxu0 0.0
        %2170 = vmatpush1.msra.mxu0 0.0
        %2171 = vmatprep.subr.mxu0 0.0
        %2172 = vmatpush1.msra.mxu0 0.0
        %2173 = vmatprep.subr.mxu0 0.0
        %2174 = vmatpush1.msra.mxu0 0.0
        %2175 = vmatprep.subr.mxu0 0.0
        %2176 = vmatpush1.msra.mxu0 0.0
        %2177 = vmatprep.subr.mxu0 0.0
        %2178 = vmatpush1.msra.mxu0 0.0
        %2179 = vmatprep.mubr.f32.mxu0 %v2042
        %2180 = vmatmul.mubr.f32.gmra.mrb[0].mxu0 %v1960
        %v2181 = vpop.f32.mrb[0].mxu0
        %v2182 = vadd.f32 %v2038, %v2181
        %v2183 = vpop.f32.mrb[0].mxu0
        %v2184 = vadd.f32 %v2038, %v2183
        %2185 = vdwg.mxu0
        %v2186 = vmax.f32 %v2111, 0.0
        %v2187 = vmax.f32 %v2113, 0.0
        %v2188 = vmax.f32 %v2182, 0.0
        %v2189 = vmax.f32 %v2184, 0.0
        %v2190 = vld [vmem:[%s277 + $0x8] sm:$0xff]
        %v2191 = vld [vmem:[%s277 + $0x10] sm:$0xff]
        %v2192 = vld [vmem:[%s277 + $0x18] sm:$0xff]
        %v2193 = vld [vmem:[%s277 + $0x20] sm:$0xff]
        %v2194 = vld [vmem:[%s277 + $0x28] sm:$0xff]
        %v2195 = vld [vmem:[%s277 + $0x50] sm:$0xff]
        %v2196 = vld [vmem:[%s277 + $0x58] sm:$0xff]
        %v2197 = vld [vmem:[%s277 + $0x60] sm:$0xff]
        %v2198 = vld [vmem:[%s277 + $0x68] sm:$0xff]
        %v2199 = vld [vmem:[%s277 + $0x70] sm:$0xff]
        %2210 = vrot.lane.b32.xlu0 %v2190, 124
        %v2211 = vpop.permute.xlu0 %2210
        %2212 = vrot.lane.b32.xlu0 %v2191, 124
        %v2213 = vpop.permute.xlu0 %2212
        %2214 = vrot.lane.b32.xlu0 %v2192, 124
        %v2215 = vpop.permute.xlu0 %2214
        %2216 = vrot.lane.b32.xlu0 %v2193, 124
        %v2217 = vpop.permute.xlu0 %2216
        %2218 = vrot.lane.b32.xlu0 %v2194, 124
        %v2219 = vpop.permute.xlu0 %2218
        %2220 = vrot.lane.b32.xlu0 %v2195, 124
        %v2221 = vpop.permute.xlu0 %2220
        %2222 = vrot.lane.b32.xlu0 %v2196, 124
        %v2223 = vpop.permute.xlu0 %2222
        %2224 = vrot.lane.b32.xlu0 %v2197, 124
        %v2225 = vpop.permute.xlu0 %2224
        %2226 = vrot.lane.b32.xlu0 %v2198, 124
        %v2227 = vpop.permute.xlu0 %2226
        %2228 = vrot.lane.b32.xlu0 %v2199, 124
        %v2229 = vpop.permute.xlu0 %2228
        %vm2230 = vcmask 1014784
        %v2231 = vsel %vm2230, %v2211, %v2213
        %v2232 = vsel %vm2230, %v2213, %v2215
        %v2233 = vsel %vm2230, %v2215, %v2217
        %v2234 = vsel %vm2230, %v2217, %v2219
        %v2235 = vsel %vm2230, %v2221, %v2223
        %v2236 = vsel %vm2230, %v2223, %v2225
        %v2237 = vsel %vm2230, %v2225, %v2227
        %v2238 = vsel %vm2230, %v2227, %v2229
        %2247 = vst [vmem:[#allocation2] sm:$0xff] %v2231
        %2248 = vst [vmem:[#allocation2 + $0x8] sm:$0xff] %v2232
        %2249 = vst [vmem:[#allocation2 + $0x10] sm:$0xff] %v2233
        %2250 = vst [vmem:[#allocation2 + $0x18] sm:$0xff] %v2234
        %2251 = vst [vmem:[#allocation2 + $0x20] sm:$0xff] %v2235
        %2252 = vst [vmem:[#allocation2 + $0x28] sm:$0xff] %v2236
        %2253 = vst [vmem:[#allocation2 + $0x30] sm:$0xff] %v2237
        %2254 = vst [vmem:[#allocation2 + $0x38] sm:$0xff] %v2238
        %v2255 = vld [vmem:[%s277 + $0x8] sm:$0xff]
        %v2256 = vld [vmem:[%s277 + $0x10] sm:$0xff]
        %v2257 = vld [vmem:[%s277 + $0x18] sm:$0xff]
        %v2258 = vld [vmem:[%s277 + $0x20] sm:$0xff]
        %v2259 = vld [vmem:[%s277 + $0x28] sm:$0xff]
        %v2260 = vld [vmem:[%s277 + $0x50] sm:$0xff]
        %v2261 = vld [vmem:[%s277 + $0x58] sm:$0xff]
        %v2262 = vld [vmem:[%s277 + $0x60] sm:$0xff]
        %v2263 = vld [vmem:[%s277 + $0x68] sm:$0xff]
        %v2264 = vld [vmem:[%s277 + $0x70] sm:$0xff]
        %2275 = vrot.lane.b32.xlu0 %v2255, 120
        %v2276 = vpop.permute.xlu0 %2275
        %2277 = vrot.lane.b32.xlu0 %v2256, 120
        %v2278 = vpop.permute.xlu0 %2277
        %2279 = vrot.lane.b32.xlu0 %v2257, 120
        %v2280 = vpop.permute.xlu0 %2279
        %2281 = vrot.lane.b32.xlu0 %v2258, 120
        %v2282 = vpop.permute.xlu0 %2281
        %2283 = vrot.lane.b32.xlu0 %v2259, 120
        %v2284 = vpop.permute.xlu0 %2283
        %2285 = vrot.lane.b32.xlu0 %v2260, 120
        %v2286 = vpop.permute.xlu0 %2285
        %2287 = vrot.lane.b32.xlu0 %v2261, 120
        %v2288 = vpop.permute.xlu0 %2287
        %2289 = vrot.lane.b32.xlu0 %v2262, 120
        %v2290 = vpop.permute.xlu0 %2289
        %2291 = vrot.lane.b32.xlu0 %v2263, 120
        %v2292 = vpop.permute.xlu0 %2291
        %2293 = vrot.lane.b32.xlu0 %v2264, 120
        %v2294 = vpop.permute.xlu0 %2293
        %v2295 = vsel %vm669, %v2276, %v2278
        %v2296 = vsel %vm669, %v2278, %v2280
        %v2297 = vsel %vm669, %v2280, %v2282
        %v2298 = vsel %vm669, %v2282, %v2284
        %v2299 = vsel %vm669, %v2286, %v2288
        %v2300 = vsel %vm669, %v2288, %v2290
        %v2301 = vsel %vm669, %v2290, %v2292
        %v2302 = vsel %vm669, %v2292, %v2294
        %2311 = vst [vmem:[#allocation2 + $0x40] sm:$0xff] %v2295
        %2312 = vst [vmem:[#allocation2 + $0x48] sm:$0xff] %v2296
        %2313 = vst [vmem:[#allocation2 + $0x50] sm:$0xff] %v2297
        %2314 = vst [vmem:[#allocation2 + $0x58] sm:$0xff] %v2298
        %2315 = vst [vmem:[#allocation2 + $0x60] sm:$0xff] %v2299
        %2316 = vst [vmem:[#allocation2 + $0x68] sm:$0xff] %v2300
        %2317 = vst [vmem:[#allocation2 + $0x70] sm:$0xff] %v2301
        %2318 = vst [vmem:[#allocation2 + $0x78] sm:$0xff] %v2302
        %v2319 = vld [vmem:[%s277 + $0x8] sm:$0xff]
        %v2320 = vld [vmem:[%s277 + $0x10] sm:$0xff]
        %v2321 = vld [vmem:[%s277 + $0x18] sm:$0xff]
        %v2322 = vld [vmem:[%s277 + $0x20] sm:$0xff]
        %v2323 = vld [vmem:[%s277 + $0x28] sm:$0xff]
        %v2324 = vld [vmem:[%s277 + $0x50] sm:$0xff]
        %v2325 = vld [vmem:[%s277 + $0x58] sm:$0xff]
        %v2326 = vld [vmem:[%s277 + $0x60] sm:$0xff]
        %v2327 = vld [vmem:[%s277 + $0x68] sm:$0xff]
        %v2328 = vld [vmem:[%s277 + $0x70] sm:$0xff]
        %2339 = vrot.lane.b32.xlu0 %v2319, 116
        %v2340 = vpop.permute.xlu0 %2339
        %2341 = vrot.lane.b32.xlu0 %v2320, 116
        %v2342 = vpop.permute.xlu0 %2341
        %2343 = vrot.lane.b32.xlu0 %v2321, 116
        %v2344 = vpop.permute.xlu0 %2343
        %2345 = vrot.lane.b32.xlu0 %v2322, 116
        %v2346 = vpop.permute.xlu0 %2345
        %2347 = vrot.lane.b32.xlu0 %v2323, 116
        %v2348 = vpop.permute.xlu0 %2347
        %2349 = vrot.lane.b32.xlu0 %v2324, 116
        %v2350 = vpop.permute.xlu0 %2349
        %2351 = vrot.lane.b32.xlu0 %v2325, 116
        %v2352 = vpop.permute.xlu0 %2351
        %2353 = vrot.lane.b32.xlu0 %v2326, 116
        %v2354 = vpop.permute.xlu0 %2353
        %2355 = vrot.lane.b32.xlu0 %v2327, 116
        %v2356 = vpop.permute.xlu0 %2355
        %2357 = vrot.lane.b32.xlu0 %v2328, 116
        %v2358 = vpop.permute.xlu0 %2357
        %vm2359 = vcmask 949248
        %v2360 = vsel %vm2359, %v2340, %v2342
        %v2361 = vsel %vm2359, %v2342, %v2344
        %v2362 = vsel %vm2359, %v2344, %v2346
        %v2363 = vsel %vm2359, %v2346, %v2348
        %v2364 = vsel %vm2359, %v2350, %v2352
        %v2365 = vsel %vm2359, %v2352, %v2354
        %v2366 = vsel %vm2359, %v2354, %v2356
        %v2367 = vsel %vm2359, %v2356, %v2358
        %2376 = vst [vmem:[#allocation2 + $0x80] sm:$0xff] %v2360
        %2377 = vst [vmem:[#allocation2 + $0x88] sm:$0xff] %v2361
        %2378 = vst [vmem:[#allocation2 + $0x90] sm:$0xff] %v2362
        %2379 = vst [vmem:[#allocation2 + $0x98] sm:$0xff] %v2363
        %2380 = vst [vmem:[#allocation2 + $0xa0] sm:$0xff] %v2364
        %2381 = vst [vmem:[#allocation2 + $0xa8] sm:$0xff] %v2365
        %2382 = vst [vmem:[#allocation2 + $0xb0] sm:$0xff] %v2366
        %2383 = vst [vmem:[#allocation2 + $0xb8] sm:$0xff] %v2367
        %v2384 = vld [vmem:[%s277 + $0x10] sm:$0xff]
        %v2385 = vld [vmem:[%s277 + $0x18] sm:$0xff]
        %v2386 = vld [vmem:[%s277 + $0x20] sm:$0xff]
        %v2387 = vld [vmem:[%s277 + $0x28] sm:$0xff]
        %v2388 = vld [vmem:[%s277 + $0x30] sm:$0xff]
        %v2389 = vld [vmem:[%s277 + $0x58] sm:$0xff]
        %v2390 = vld [vmem:[%s277 + $0x60] sm:$0xff]
        %v2391 = vld [vmem:[%s277 + $0x68] sm:$0xff]
        %v2392 = vld [vmem:[%s277 + $0x70] sm:$0xff]
        %v2393 = vld [vmem:[%s277 + $0x78] sm:$0xff]
        %2404 = vrot.lane.b32.xlu0 %v2384, 124
        %v2405 = vpop.permute.xlu0 %2404
        %2406 = vrot.lane.b32.xlu0 %v2385, 124
        %v2407 = vpop.permute.xlu0 %2406
        %2408 = vrot.lane.b32.xlu0 %v2386, 124
        %v2409 = vpop.permute.xlu0 %2408
        %2410 = vrot.lane.b32.xlu0 %v2387, 124
        %v2411 = vpop.permute.xlu0 %2410
        %2412 = vrot.lane.b32.xlu0 %v2388, 124
        %v2413 = vpop.permute.xlu0 %2412
        %2414 = vrot.lane.b32.xlu0 %v2389, 124
        %v2415 = vpop.permute.xlu0 %2414
        %2416 = vrot.lane.b32.xlu0 %v2390, 124
        %v2417 = vpop.permute.xlu0 %2416
        %2418 = vrot.lane.b32.xlu0 %v2391, 124
        %v2419 = vpop.permute.xlu0 %2418
        %2420 = vrot.lane.b32.xlu0 %v2392, 124
        %v2421 = vpop.permute.xlu0 %2420
        %2422 = vrot.lane.b32.xlu0 %v2393, 124
        %v2423 = vpop.permute.xlu0 %2422
        %v2424 = vsel %vm2230, %v2405, %v2407
        %v2425 = vsel %vm2230, %v2407, %v2409
        %v2426 = vsel %vm2230, %v2409, %v2411
        %v2427 = vsel %vm2230, %v2411, %v2413
        %v2428 = vsel %vm2230, %v2415, %v2417
        %v2429 = vsel %vm2230, %v2417, %v2419
        %v2430 = vsel %vm2230, %v2419, %v2421
        %v2431 = vsel %vm2230, %v2421, %v2423
        %2440 = vst [vmem:[#allocation2 + $0xc0] sm:$0xff] %v2424
        %2441 = vst [vmem:[#allocation2 + $0xc8] sm:$0xff] %v2425
        %2442 = vst [vmem:[#allocation2 + $0xd0] sm:$0xff] %v2426
        %2443 = vst [vmem:[#allocation2 + $0xd8] sm:$0xff] %v2427
        %2444 = vst [vmem:[#allocation2 + $0xe0] sm:$0xff] %v2428
        %2445 = vst [vmem:[#allocation2 + $0xe8] sm:$0xff] %v2429
        %2446 = vst [vmem:[#allocation2 + $0xf0] sm:$0xff] %v2430
        %2447 = vst [vmem:[#allocation2 + $0xf8] sm:$0xff] %v2431
        %v2448 = vld [vmem:[%s277 + $0x10] sm:$0xff]
        %v2449 = vld [vmem:[%s277 + $0x18] sm:$0xff]
        %v2450 = vld [vmem:[%s277 + $0x20] sm:$0xff]
        %v2451 = vld [vmem:[%s277 + $0x28] sm:$0xff]
        %v2452 = vld [vmem:[%s277 + $0x30] sm:$0xff]
        %v2453 = vld [vmem:[%s277 + $0x58] sm:$0xff]
        %v2454 = vld [vmem:[%s277 + $0x60] sm:$0xff]
        %v2455 = vld [vmem:[%s277 + $0x68] sm:$0xff]
        %v2456 = vld [vmem:[%s277 + $0x70] sm:$0xff]
        %v2457 = vld [vmem:[%s277 + $0x78] sm:$0xff]
        %2468 = vrot.lane.b32.xlu0 %v2448, 120
        %v2469 = vpop.permute.xlu0 %2468
        %2470 = vrot.lane.b32.xlu0 %v2449, 120
        %v2471 = vpop.permute.xlu0 %2470
        %2472 = vrot.lane.b32.xlu0 %v2450, 120
        %v2473 = vpop.permute.xlu0 %2472
        %2474 = vrot.lane.b32.xlu0 %v2451, 120
        %v2475 = vpop.permute.xlu0 %2474
        %2476 = vrot.lane.b32.xlu0 %v2452, 120
        %v2477 = vpop.permute.xlu0 %2476
        %2478 = vrot.lane.b32.xlu0 %v2453, 120
        %v2479 = vpop.permute.xlu0 %2478
        %2480 = vrot.lane.b32.xlu0 %v2454, 120
        %v2481 = vpop.permute.xlu0 %2480
        %2482 = vrot.lane.b32.xlu0 %v2455, 120
        %v2483 = vpop.permute.xlu0 %2482
        %2484 = vrot.lane.b32.xlu0 %v2456, 120
        %v2485 = vpop.permute.xlu0 %2484
        %2486 = vrot.lane.b32.xlu0 %v2457, 120
        %v2487 = vpop.permute.xlu0 %2486
        %v2488 = vsel %vm669, %v2469, %v2471
        %v2489 = vsel %vm669, %v2471, %v2473
        %v2490 = vsel %vm669, %v2473, %v2475
        %v2491 = vsel %vm669, %v2475, %v2477
        %v2492 = vsel %vm669, %v2479, %v2481
        %v2493 = vsel %vm669, %v2481, %v2483
        %v2494 = vsel %vm669, %v2483, %v2485
        %v2495 = vsel %vm669, %v2485, %v2487
        %2504 = vst [vmem:[#allocation2 + $0x100] sm:$0xff] %v2488
        %2505 = vst [vmem:[#allocation2 + $0x108] sm:$0xff] %v2489
        %2506 = vst [vmem:[#allocation2 + $0x110] sm:$0xff] %v2490
        %2507 = vst [vmem:[#allocation2 + $0x118] sm:$0xff] %v2491
        %2508 = vst [vmem:[#allocation2 + $0x120] sm:$0xff] %v2492
        %2509 = vst [vmem:[#allocation2 + $0x128] sm:$0xff] %v2493
        %2510 = vst [vmem:[#allocation2 + $0x130] sm:$0xff] %v2494
        %2511 = vst [vmem:[#allocation2 + $0x138] sm:$0xff] %v2495
        %v2512 = vld [vmem:[%s277 + $0x10] sm:$0xff]
        %v2513 = vld [vmem:[%s277 + $0x18] sm:$0xff]
        %v2514 = vld [vmem:[%s277 + $0x20] sm:$0xff]
        %v2515 = vld [vmem:[%s277 + $0x28] sm:$0xff]
        %v2516 = vld [vmem:[%s277 + $0x30] sm:$0xff]
        %v2517 = vld [vmem:[%s277 + $0x58] sm:$0xff]
        %v2518 = vld [vmem:[%s277 + $0x60] sm:$0xff]
        %v2519 = vld [vmem:[%s277 + $0x68] sm:$0xff]
        %v2520 = vld [vmem:[%s277 + $0x70] sm:$0xff]
        %v2521 = vld [vmem:[%s277 + $0x78] sm:$0xff]
        %2532 = vrot.lane.b32.xlu0 %v2512, 116
        %v2533 = vpop.permute.xlu0 %2532
        %2534 = vrot.lane.b32.xlu0 %v2513, 116
        %v2535 = vpop.permute.xlu0 %2534
        %2536 = vrot.lane.b32.xlu0 %v2514, 116
        %v2537 = vpop.permute.xlu0 %2536
        %2538 = vrot.lane.b32.xlu0 %v2515, 116
        %v2539 = vpop.permute.xlu0 %2538
        %2540 = vrot.lane.b32.xlu0 %v2516, 116
        %v2541 = vpop.permute.xlu0 %2540
        %2542 = vrot.lane.b32.xlu0 %v2517, 116
        %v2543 = vpop.permute.xlu0 %2542
        %2544 = vrot.lane.b32.xlu0 %v2518, 116
        %v2545 = vpop.permute.xlu0 %2544
        %2546 = vrot.lane.b32.xlu0 %v2519, 116
        %v2547 = vpop.permute.xlu0 %2546
        %2548 = vrot.lane.b32.xlu0 %v2520, 116
        %v2549 = vpop.permute.xlu0 %2548
        %2550 = vrot.lane.b32.xlu0 %v2521, 116
        %v2551 = vpop.permute.xlu0 %2550
        %v2552 = vsel %vm2359, %v2533, %v2535
        %v2553 = vsel %vm2359, %v2535, %v2537
        %v2554 = vsel %vm2359, %v2537, %v2539
        %v2555 = vsel %vm2359, %v2539, %v2541
        %v2556 = vsel %vm2359, %v2543, %v2545
        %v2557 = vsel %vm2359, %v2545, %v2547
        %v2558 = vsel %vm2359, %v2547, %v2549
        %v2559 = vsel %vm2359, %v2549, %v2551
        %2568 = vst [vmem:[#allocation2 + $0x140] sm:$0xff] %v2552
        %2569 = vst [vmem:[#allocation2 + $0x148] sm:$0xff] %v2553
        %2570 = vst [vmem:[#allocation2 + $0x150] sm:$0xff] %v2554
        %2571 = vst [vmem:[#allocation2 + $0x158] sm:$0xff] %v2555
        %2572 = vst [vmem:[#allocation2 + $0x160] sm:$0xff] %v2556
        %2573 = vst [vmem:[#allocation2 + $0x168] sm:$0xff] %v2557
        %2574 = vst [vmem:[#allocation2 + $0x170] sm:$0xff] %v2558
        %2575 = vst [vmem:[#allocation2 + $0x178] sm:$0xff] %v2559
        %v2576 = vld [vmem:[%s277 + $0x18] sm:$0xff]
        %v2577 = vld [vmem:[%s277 + $0x20] sm:$0xff]
        %v2578 = vld [vmem:[%s277 + $0x28] sm:$0xff]
        %v2579 = vld [vmem:[%s277 + $0x30] sm:$0xff]
        %v2580 = vld [vmem:[%s277 + $0x38] sm:$0xff]
        %v2581 = vld [vmem:[%s277 + $0x60] sm:$0xff]
        %v2582 = vld [vmem:[%s277 + $0x68] sm:$0xff]
        %v2583 = vld [vmem:[%s277 + $0x70] sm:$0xff]
        %v2584 = vld [vmem:[%s277 + $0x78] sm:$0xff]
        %v2585 = vld [vmem:[%s277 + $0x80] sm:$0xff]
        %2596 = vrot.lane.b32.xlu0 %v2576, 124
        %v2597 = vpop.permute.xlu0 %2596
        %2598 = vrot.lane.b32.xlu0 %v2577, 124
        %v2599 = vpop.permute.xlu0 %2598
        %2600 = vrot.lane.b32.xlu0 %v2578, 124
        %v2601 = vpop.permute.xlu0 %2600
        %2602 = vrot.lane.b32.xlu0 %v2579, 124
        %v2603 = vpop.permute.xlu0 %2602
        %2604 = vrot.lane.b32.xlu0 %v2580, 124
        %v2605 = vpop.permute.xlu0 %2604
        %2606 = vrot.lane.b32.xlu0 %v2581, 124
        %v2607 = vpop.permute.xlu0 %2606
        %2608 = vrot.lane.b32.xlu0 %v2582, 124
        %v2609 = vpop.permute.xlu0 %2608
        %2610 = vrot.lane.b32.xlu0 %v2583, 124
        %v2611 = vpop.permute.xlu0 %2610
        %2612 = vrot.lane.b32.xlu0 %v2584, 124
        %v2613 = vpop.permute.xlu0 %2612
        %2614 = vrot.lane.b32.xlu0 %v2585, 124
        %v2615 = vpop.permute.xlu0 %2614
        %v2616 = vsel %vm2230, %v2597, %v2599
        %v2617 = vsel %vm2230, %v2599, %v2601
        %v2618 = vsel %vm2230, %v2601, %v2603
        %v2619 = vsel %vm2230, %v2603, %v2605
        %v2620 = vsel %vm2230, %v2607, %v2609
        %v2621 = vsel %vm2230, %v2609, %v2611
        %v2622 = vsel %vm2230, %v2611, %v2613
        %v2623 = vsel %vm2230, %v2613, %v2615
        %2632 = vst [vmem:[#allocation2 + $0x180] sm:$0xff] %v2616
        %2633 = vst [vmem:[#allocation2 + $0x188] sm:$0xff] %v2617
        %2634 = vst [vmem:[#allocation2 + $0x190] sm:$0xff] %v2618
        %2635 = vst [vmem:[#allocation2 + $0x198] sm:$0xff] %v2619
        %2636 = vst [vmem:[#allocation2 + $0x1a0] sm:$0xff] %v2620
        %2637 = vst [vmem:[#allocation2 + $0x1a8] sm:$0xff] %v2621
        %2638 = vst [vmem:[#allocation2 + $0x1b0] sm:$0xff] %v2622
        %2639 = vst [vmem:[#allocation2 + $0x1b8] sm:$0xff] %v2623
        %v2640 = vld [vmem:[%s277 + $0x18] sm:$0xff]
        %v2641 = vld [vmem:[%s277 + $0x20] sm:$0xff]
        %v2642 = vld [vmem:[%s277 + $0x28] sm:$0xff]
        %v2643 = vld [vmem:[%s277 + $0x30] sm:$0xff]
        %v2644 = vld [vmem:[%s277 + $0x38] sm:$0xff]
        %v2645 = vld [vmem:[%s277 + $0x60] sm:$0xff]
        %v2646 = vld [vmem:[%s277 + $0x68] sm:$0xff]
        %v2647 = vld [vmem:[%s277 + $0x70] sm:$0xff]
        %v2648 = vld [vmem:[%s277 + $0x78] sm:$0xff]
        %v2649 = vld [vmem:[%s277 + $0x80] sm:$0xff]
        %2660 = vrot.lane.b32.xlu0 %v2640, 120
        %v2661 = vpop.permute.xlu0 %2660
        %2662 = vrot.lane.b32.xlu0 %v2641, 120
        %v2663 = vpop.permute.xlu0 %2662
        %2664 = vrot.lane.b32.xlu0 %v2642, 120
        %v2665 = vpop.permute.xlu0 %2664
        %2666 = vrot.lane.b32.xlu0 %v2643, 120
        %v2667 = vpop.permute.xlu0 %2666
        %2668 = vrot.lane.b32.xlu0 %v2644, 120
        %v2669 = vpop.permute.xlu0 %2668
        %2670 = vrot.lane.b32.xlu0 %v2645, 120
        %v2671 = vpop.permute.xlu0 %2670
        %2672 = vrot.lane.b32.xlu0 %v2646, 120
        %v2673 = vpop.permute.xlu0 %2672
        %2674 = vrot.lane.b32.xlu0 %v2647, 120
        %v2675 = vpop.permute.xlu0 %2674
        %2676 = vrot.lane.b32.xlu0 %v2648, 120
        %v2677 = vpop.permute.xlu0 %2676
        %2678 = vrot.lane.b32.xlu0 %v2649, 120
        %v2679 = vpop.permute.xlu0 %2678
        %v2680 = vsel %vm669, %v2661, %v2663
        %v2681 = vsel %vm669, %v2663, %v2665
        %v2682 = vsel %vm669, %v2665, %v2667
        %v2683 = vsel %vm669, %v2667, %v2669
        %v2684 = vsel %vm669, %v2671, %v2673
        %v2685 = vsel %vm669, %v2673, %v2675
        %v2686 = vsel %vm669, %v2675, %v2677
        %v2687 = vsel %vm669, %v2677, %v2679
        %2696 = vst [vmem:[#allocation2 + $0x1c0] sm:$0xff] %v2680
        %2697 = vst [vmem:[#allocation2 + $0x1c8] sm:$0xff] %v2681
        %2698 = vst [vmem:[#allocation2 + $0x1d0] sm:$0xff] %v2682
        %2699 = vst [vmem:[#allocation2 + $0x1d8] sm:$0xff] %v2683
        %2700 = vst [vmem:[#allocation2 + $0x1e0] sm:$0xff] %v2684
        %2701 = vst [vmem:[#allocation2 + $0x1e8] sm:$0xff] %v2685
        %2702 = vst [vmem:[#allocation2 + $0x1f0] sm:$0xff] %v2686
        %2703 = vst [vmem:[#allocation2 + $0x1f8] sm:$0xff] %v2687
        %v2704 = vld [vmem:[%s277 + $0x18] sm:$0xff]
        %v2705 = vld [vmem:[%s277 + $0x20] sm:$0xff]
        %v2706 = vld [vmem:[%s277 + $0x28] sm:$0xff]
        %v2707 = vld [vmem:[%s277 + $0x30] sm:$0xff]
        %v2708 = vld [vmem:[%s277 + $0x38] sm:$0xff]
        %v2709 = vld [vmem:[%s277 + $0x60] sm:$0xff]
        %v2710 = vld [vmem:[%s277 + $0x68] sm:$0xff]
        %v2711 = vld [vmem:[%s277 + $0x70] sm:$0xff]
        %v2712 = vld [vmem:[%s277 + $0x78] sm:$0xff]
        %v2713 = vld [vmem:[%s277 + $0x80] sm:$0xff]
        %2724 = vrot.lane.b32.xlu0 %v2704, 116
        %v2725 = vpop.permute.xlu0 %2724
        %2726 = vrot.lane.b32.xlu0 %v2705, 116
        %v2727 = vpop.permute.xlu0 %2726
        %2728 = vrot.lane.b32.xlu0 %v2706, 116
        %v2729 = vpop.permute.xlu0 %2728
        %2730 = vrot.lane.b32.xlu0 %v2707, 116
        %v2731 = vpop.permute.xlu0 %2730
        %2732 = vrot.lane.b32.xlu0 %v2708, 116
        %v2733 = vpop.permute.xlu0 %2732
        %2734 = vrot.lane.b32.xlu0 %v2709, 116
        %v2735 = vpop.permute.xlu0 %2734
        %2736 = vrot.lane.b32.xlu0 %v2710, 116
        %v2737 = vpop.permute.xlu0 %2736
        %2738 = vrot.lane.b32.xlu0 %v2711, 116
        %v2739 = vpop.permute.xlu0 %2738
        %2740 = vrot.lane.b32.xlu0 %v2712, 116
        %v2741 = vpop.permute.xlu0 %2740
        %2742 = vrot.lane.b32.xlu0 %v2713, 116
        %v2743 = vpop.permute.xlu0 %2742
        %v2744 = vsel %vm2359, %v2725, %v2727
        %v2745 = vsel %vm2359, %v2727, %v2729
        %v2746 = vsel %vm2359, %v2729, %v2731
        %v2747 = vsel %vm2359, %v2731, %v2733
        %v2748 = vsel %vm2359, %v2735, %v2737
        %v2749 = vsel %vm2359, %v2737, %v2739
        %v2750 = vsel %vm2359, %v2739, %v2741
        %v2751 = vsel %vm2359, %v2741, %v2743
        %2760 = vst [vmem:[#allocation2 + $0x200] sm:$0xff] %v2744
        %2761 = vst [vmem:[#allocation2 + $0x208] sm:$0xff] %v2745
        %2762 = vst [vmem:[#allocation2 + $0x210] sm:$0xff] %v2746
        %2763 = vst [vmem:[#allocation2 + $0x218] sm:$0xff] %v2747
        %2764 = vst [vmem:[#allocation2 + $0x220] sm:$0xff] %v2748
        %2765 = vst [vmem:[#allocation2 + $0x228] sm:$0xff] %v2749
        %2766 = vst [vmem:[#allocation2 + $0x230] sm:$0xff] %v2750
        %2767 = vst [vmem:[#allocation2 + $0x238] sm:$0xff] %v2751
        %s2768 = scalar_lea.vmem %s1, 16
        %v2769 = vld [vmem:[%s2768] sm:$0xff]
        %s2770 = scalar_lea.vmem %s2, 8
        %v2771 = vld [vmem:[%s2770] sm:$0xf]
        %v2772 = vld [vmem:[#allocation2] sm:$0xff]
        %v2773 = vld [vmem:[#allocation2 + $0x8] sm:$0xff]
        %v2774 = vld [vmem:[#allocation2 + $0x10] sm:$0xff]
        %v2775 = vld [vmem:[#allocation2 + $0x18] sm:$0xff]
        %v2776 = vld [vmem:[#allocation2 + $0x20] sm:$0xff]
        %v2777 = vld [vmem:[#allocation2 + $0x28] sm:$0xff]
        %v2778 = vld [vmem:[#allocation2 + $0x30] sm:$0xff]
        %v2779 = vld [vmem:[#allocation2 + $0x38] sm:$0xff]
        %v2780 = vld [vmem:[#allocation2 + $0x40] sm:$0xff]
        %v2781 = vld [vmem:[#allocation2 + $0x48] sm:$0xff]
        %v2782 = vld [vmem:[#allocation2 + $0x50] sm:$0xff]
        %v2783 = vld [vmem:[#allocation2 + $0x58] sm:$0xff]
        %v2784 = vld [vmem:[#allocation2 + $0x60] sm:$0xff]
        %v2785 = vld [vmem:[#allocation2 + $0x68] sm:$0xff]
        %v2786 = vld [vmem:[#allocation2 + $0x70] sm:$0xff]
        %v2787 = vld [vmem:[#allocation2 + $0x78] sm:$0xff]
        %v2788 = vld [vmem:[#allocation2 + $0x80] sm:$0xff]
        %v2789 = vld [vmem:[#allocation2 + $0x88] sm:$0xff]
        %v2790 = vld [vmem:[#allocation2 + $0x90] sm:$0xff]
        %v2791 = vld [vmem:[#allocation2 + $0x98] sm:$0xff]
        %v2792 = vld [vmem:[#allocation2 + $0xa0] sm:$0xff]
        %v2793 = vld [vmem:[#allocation2 + $0xa8] sm:$0xff]
        %v2794 = vld [vmem:[#allocation2 + $0xb0] sm:$0xff]
        %v2795 = vld [vmem:[#allocation2 + $0xb8] sm:$0xff]
        %v2796 = vld [vmem:[#allocation2 + $0xc0] sm:$0xff]
        %v2797 = vld [vmem:[#allocation2 + $0xc8] sm:$0xff]
        %v2798 = vld [vmem:[#allocation2 + $0xd0] sm:$0xff]
        %v2799 = vld [vmem:[#allocation2 + $0xd8] sm:$0xff]
        %v2800 = vld [vmem:[#allocation2 + $0xe0] sm:$0xff]
        %v2801 = vld [vmem:[#allocation2 + $0xe8] sm:$0xff]
        %v2802 = vld [vmem:[#allocation2 + $0xf0] sm:$0xff]
        %v2803 = vld [vmem:[#allocation2 + $0xf8] sm:$0xff]
        %v2804 = vld [vmem:[#allocation2 + $0x100] sm:$0xff]
        %v2805 = vld [vmem:[#allocation2 + $0x108] sm:$0xff]
        %v2806 = vld [vmem:[#allocation2 + $0x110] sm:$0xff]
        %v2807 = vld [vmem:[#allocation2 + $0x118] sm:$0xff]
        %v2808 = vld [vmem:[#allocation2 + $0x120] sm:$0xff]
        %v2809 = vld [vmem:[#allocation2 + $0x128] sm:$0xff]
        %v2810 = vld [vmem:[#allocation2 + $0x130] sm:$0xff]
        %v2811 = vld [vmem:[#allocation2 + $0x138] sm:$0xff]
        %v2812 = vld [vmem:[#allocation2 + $0x140] sm:$0xff]
        %v2813 = vld [vmem:[#allocation2 + $0x148] sm:$0xff]
        %v2814 = vld [vmem:[#allocation2 + $0x150] sm:$0xff]
        %v2815 = vld [vmem:[#allocation2 + $0x158] sm:$0xff]
        %v2816 = vld [vmem:[#allocation2 + $0x160] sm:$0xff]
        %v2817 = vld [vmem:[#allocation2 + $0x168] sm:$0xff]
        %v2818 = vld [vmem:[#allocation2 + $0x170] sm:$0xff]
        %v2819 = vld [vmem:[#allocation2 + $0x178] sm:$0xff]
        %v2820 = vld [vmem:[#allocation2 + $0x180] sm:$0xff]
        %v2821 = vld [vmem:[#allocation2 + $0x188] sm:$0xff]
        %v2822 = vld [vmem:[#allocation2 + $0x190] sm:$0xff]
        %v2823 = vld [vmem:[#allocation2 + $0x198] sm:$0xff]
        %v2824 = vld [vmem:[#allocation2 + $0x1a0] sm:$0xff]
        %v2825 = vld [vmem:[#allocation2 + $0x1a8] sm:$0xff]
        %v2826 = vld [vmem:[#allocation2 + $0x1b0] sm:$0xff]
        %v2827 = vld [vmem:[#allocation2 + $0x1b8] sm:$0xff]
        %v2828 = vld [vmem:[#allocation2 + $0x1c0] sm:$0xff]
        %v2829 = vld [vmem:[#allocation2 + $0x1c8] sm:$0xff]
        %v2830 = vld [vmem:[#allocation2 + $0x1d0] sm:$0xff]
        %v2831 = vld [vmem:[#allocation2 + $0x1d8] sm:$0xff]
        %v2832 = vld [vmem:[#allocation2 + $0x1e0] sm:$0xff]
        %v2833 = vld [vmem:[#allocation2 + $0x1e8] sm:$0xff]
        %v2834 = vld [vmem:[#allocation2 + $0x1f0] sm:$0xff]
        %v2835 = vld [vmem:[#allocation2 + $0x1f8] sm:$0xff]
        %v2836 = vld [vmem:[#allocation2 + $0x200] sm:$0xff]
        %v2837 = vld [vmem:[#allocation2 + $0x208] sm:$0xff]
        %v2838 = vld [vmem:[#allocation2 + $0x210] sm:$0xff]
        %v2839 = vld [vmem:[#allocation2 + $0x218] sm:$0xff]
        %v2840 = vld [vmem:[#allocation2 + $0x220] sm:$0xff]
        %v2841 = vld [vmem:[#allocation2 + $0x228] sm:$0xff]
        %v2842 = vld [vmem:[#allocation2 + $0x230] sm:$0xff]
        %v2843 = vld [vmem:[#allocation2 + $0x238] sm:$0xff]
        %2845 = vset.pattern.permute.xlu0 0
        %2846 = vperm.xlu0 %2845, %v2771
        %v2847 = vpop.permute.xlu0 %2846
        %v2850 = vcombine.high %v2769, %v2769
        %v2851 = vsel %vm1050, %v2850, 0
        %2853 = vmatprep.subr.mxu0 %v2773
        %2854 = vmatpush1.msra.mxu0 %v2772
        %2855 = vmatprep.subr.mxu0 %v2777
        %2856 = vmatpush1.msra.mxu0 %v2776
        %2857 = vmatprep.subr.mxu0 %v2781
        %2858 = vmatpush1.msra.mxu0 %v2780
        %2859 = vmatprep.subr.mxu0 %v2785
        %2860 = vmatpush1.msra.mxu0 %v2784
        %2861 = vmatprep.subr.mxu0 %v2789
        %2862 = vmatpush1.msra.mxu0 %v2788
        %2863 = vmatprep.subr.mxu0 %v2793
        %2864 = vmatpush1.msra.mxu0 %v2792
        %2865 = vmatprep.subr.mxu0 %v2797
        %2866 = vmatpush1.msra.mxu0 %v2796
        %2867 = vmatprep.subr.mxu0 %v2801
        %2868 = vmatpush1.msra.mxu0 %v2800
        %2869 = vmatprep.subr.mxu0 %v2805
        %2870 = vmatpush1.msra.mxu0 %v2804
        %2871 = vmatprep.subr.mxu0 %v2809
        %2872 = vmatpush1.msra.mxu0 %v2808
        %2873 = vmatprep.subr.mxu0 %v2813
        %2874 = vmatpush1.msra.mxu0 %v2812
        %2875 = vmatprep.subr.mxu0 %v2817
        %2876 = vmatpush1.msra.mxu0 %v2816
        %2877 = vmatprep.subr.mxu0 %v2821
        %2878 = vmatpush1.msra.mxu0 %v2820
        %2879 = vmatprep.subr.mxu0 %v2825
        %2880 = vmatpush1.msra.mxu0 %v2824
        %2881 = vmatprep.subr.mxu0 %v2829
        %2882 = vmatpush1.msra.mxu0 %v2828
        %2883 = vmatprep.subr.mxu0 %v2833
        %2884 = vmatpush1.msra.mxu0 %v2832
        %2885 = vmatprep.subr.mxu0 %v2837
        %2886 = vmatpush1.msra.mxu0 %v2836
        %2887 = vmatprep.subr.mxu0 %v2841
        %2888 = vmatpush1.msra.mxu0 %v2840
        %2889 = vmatprep.subr.mxu0 0.0
        %2890 = vmatpush1.msra.mxu0 0.0
        %2891 = vmatprep.subr.mxu0 0.0
        %2892 = vmatpush1.msra.mxu0 0.0
        %2893 = vmatprep.subr.mxu0 0.0
        %2894 = vmatpush1.msra.mxu0 0.0
        %2895 = vmatprep.subr.mxu0 0.0
        %2896 = vmatpush1.msra.mxu0 0.0
        %2897 = vmatprep.subr.mxu0 0.0
        %2898 = vmatpush1.msra.mxu0 0.0
        %2899 = vmatprep.subr.mxu0 0.0
        %2900 = vmatpush1.msra.mxu0 0.0
        %2901 = vmatprep.subr.mxu0 0.0
        %2902 = vmatpush1.msra.mxu0 0.0
        %2903 = vmatprep.subr.mxu0 0.0
        %2904 = vmatpush1.msra.mxu0 0.0
        %2905 = vmatprep.subr.mxu0 0.0
        %2906 = vmatpush1.msra.mxu0 0.0
        %2907 = vmatprep.subr.mxu0 0.0
        %2908 = vmatpush1.msra.mxu0 0.0
        %2909 = vmatprep.subr.mxu0 0.0
        %2910 = vmatpush1.msra.mxu0 0.0
        %2911 = vmatprep.subr.mxu0 0.0
        %2912 = vmatpush1.msra.mxu0 0.0
        %2913 = vmatprep.subr.mxu0 0.0
        %2914 = vmatpush1.msra.mxu0 0.0
        %2915 = vmatprep.subr.mxu0 0.0
        %2916 = vmatpush1.msra.mxu0 0.0
        %2917 = vmatprep.mubr.f32.mxu0 %v2851
        %2918 = vmatmul.mubr.f32.gmra.mrb[0].mxu0 %v2769
        %v2919 = vpop.f32.mrb[0].mxu0
        %v2920 = vadd.f32 %v2847, %v2919
        %v2921 = vpop.f32.mrb[0].mxu0
        %v2922 = vadd.f32 %v2847, %v2921
        %2923 = vdwg.mxu0
        %2924 = vmatprep.subr.mxu0 %v2775
        %2925 = vmatpush1.msra.mxu0 %v2774
        %2926 = vmatprep.subr.mxu0 %v2779
        %2927 = vmatpush1.msra.mxu0 %v2778
        %2928 = vmatprep.subr.mxu0 %v2783
        %2929 = vmatpush1.msra.mxu0 %v2782
        %2930 = vmatprep.subr.mxu0 %v2787
        %2931 = vmatpush1.msra.mxu0 %v2786
        %2932 = vmatprep.subr.mxu0 %v2791
        %2933 = vmatpush1.msra.mxu0 %v2790
        %2934 = vmatprep.subr.mxu0 %v2795
        %2935 = vmatpush1.msra.mxu0 %v2794
        %2936 = vmatprep.subr.mxu0 %v2799
        %2937 = vmatpush1.msra.mxu0 %v2798
        %2938 = vmatprep.subr.mxu0 %v2803
        %2939 = vmatpush1.msra.mxu0 %v2802
        %2940 = vmatprep.subr.mxu0 %v2807
        %2941 = vmatpush1.msra.mxu0 %v2806
        %2942 = vmatprep.subr.mxu0 %v2811
        %2943 = vmatpush1.msra.mxu0 %v2810
        %2944 = vmatprep.subr.mxu0 %v2815
        %2945 = vmatpush1.msra.mxu0 %v2814
        %2946 = vmatprep.subr.mxu0 %v2819
        %2947 = vmatpush1.msra.mxu0 %v2818
        %2948 = vmatprep.subr.mxu0 %v2823
        %2949 = vmatpush1.msra.mxu0 %v2822
        %2950 = vmatprep.subr.mxu0 %v2827
        %2951 = vmatpush1.msra.mxu0 %v2826
        %2952 = vmatprep.subr.mxu0 %v2831
        %2953 = vmatpush1.msra.mxu0 %v2830
        %2954 = vmatprep.subr.mxu0 %v2835
        %2955 = vmatpush1.msra.mxu0 %v2834
        %2956 = vmatprep.subr.mxu0 %v2839
        %2957 = vmatpush1.msra.mxu0 %v2838
        %2958 = vmatprep.subr.mxu0 %v2843
        %2959 = vmatpush1.msra.mxu0 %v2842
        %2960 = vmatprep.subr.mxu0 0.0
        %2961 = vmatpush1.msra.mxu0 0.0
        %2962 = vmatprep.subr.mxu0 0.0
        %2963 = vmatpush1.msra.mxu0 0.0
        %2964 = vmatprep.subr.mxu0 0.0
        %2965 = vmatpush1.msra.mxu0 0.0
        %2966 = vmatprep.subr.mxu0 0.0
        %2967 = vmatpush1.msra.mxu0 0.0
        %2968 = vmatprep.subr.mxu0 0.0
        %2969 = vmatpush1.msra.mxu0 0.0
        %2970 = vmatprep.subr.mxu0 0.0
        %2971 = vmatpush1.msra.mxu0 0.0
        %2972 = vmatprep.subr.mxu0 0.0
        %2973 = vmatpush1.msra.mxu0 0.0
        %2974 = vmatprep.subr.mxu0 0.0
        %2975 = vmatpush1.msra.mxu0 0.0
        %2976 = vmatprep.subr.mxu0 0.0
        %2977 = vmatpush1.msra.mxu0 0.0
        %2978 = vmatprep.subr.mxu0 0.0
        %2979 = vmatpush1.msra.mxu0 0.0
        %2980 = vmatprep.subr.mxu0 0.0
        %2981 = vmatpush1.msra.mxu0 0.0
        %2982 = vmatprep.subr.mxu0 0.0
        %2983 = vmatpush1.msra.mxu0 0.0
        %2984 = vmatprep.subr.mxu0 0.0
        %2985 = vmatpush1.msra.mxu0 0.0
        %2986 = vmatprep.subr.mxu0 0.0
        %2987 = vmatpush1.msra.mxu0 0.0
        %2988 = vmatprep.mubr.f32.mxu0 %v2851
        %2989 = vmatmul.mubr.f32.gmra.mrb[0].mxu0 %v2769
        %v2990 = vpop.f32.mrb[0].mxu0
        %v2991 = vadd.f32 %v2847, %v2990
        %v2992 = vpop.f32.mrb[0].mxu0
        %v2993 = vadd.f32 %v2847, %v2992
        %2994 = vdwg.mxu0
        %v2995 = vmax.f32 %v2920, 0.0
        %v2996 = vmax.f32 %v2922, 0.0
        %v2997 = vmax.f32 %v2991, 0.0
        %v2998 = vmax.f32 %v2993, 0.0
        %v2999 = vld [vmem:[%s277] sm:$0xff]
        %v3000 = vld [vmem:[%s277 + $0x8] sm:$0xff]
        %v3001 = vld [vmem:[%s277 + $0x10] sm:$0xff]
        %v3002 = vld [vmem:[%s277 + $0x18] sm:$0xff]
        %v3003 = vld [vmem:[%s277 + $0x48] sm:$0xff]
        %v3004 = vld [vmem:[%s277 + $0x50] sm:$0xff]
        %v3005 = vld [vmem:[%s277 + $0x58] sm:$0xff]
        %v3006 = vld [vmem:[%s277 + $0x60] sm:$0xff]
        %3007 = vst [vmem:[#allocation2] sm:$0xff] %v2999
        %3008 = vst [vmem:[#allocation2 + $0x8] sm:$0xff] %v3000
        %3009 = vst [vmem:[#allocation2 + $0x10] sm:$0xff] %v3001
        %3010 = vst [vmem:[#allocation2 + $0x18] sm:$0xff] %v3002
        %3011 = vst [vmem:[#allocation2 + $0x20] sm:$0xff] %v3003
        %3012 = vst [vmem:[#allocation2 + $0x28] sm:$0xff] %v3004
        %3013 = vst [vmem:[#allocation2 + $0x30] sm:$0xff] %v3005
        %3014 = vst [vmem:[#allocation2 + $0x38] sm:$0xff] %v3006
        %v3015 = vld [vmem:[%s277] sm:$0xff]
        %v3016 = vld [vmem:[%s277 + $0x8] sm:$0xff]
        %v3017 = vld [vmem:[%s277 + $0x10] sm:$0xff]
        %v3018 = vld [vmem:[%s277 + $0x18] sm:$0xff]
        %v3019 = vld [vmem:[%s277 + $0x20] sm:$0xff]
        %v3020 = vld [vmem:[%s277 + $0x48] sm:$0xff]
        %v3021 = vld [vmem:[%s277 + $0x50] sm:$0xff]
        %v3022 = vld [vmem:[%s277 + $0x58] sm:$0xff]
        %v3023 = vld [vmem:[%s277 + $0x60] sm:$0xff]
        %v3024 = vld [vmem:[%s277 + $0x68] sm:$0xff]
        %3035 = vrot.lane.b32.xlu0 %v3015, 120
        %v3036 = vpop.permute.xlu0 %3035
        %3037 = vrot.lane.b32.xlu0 %v3016, 120
        %v3038 = vpop.permute.xlu0 %3037
        %3039 = vrot.lane.b32.xlu0 %v3017, 120
        %v3040 = vpop.permute.xlu0 %3039
        %3041 = vrot.lane.b32.xlu0 %v3018, 120
        %v3042 = vpop.permute.xlu0 %3041
        %3043 = vrot.lane.b32.xlu0 %v3019, 120
        %v3044 = vpop.permute.xlu0 %3043
        %3045 = vrot.lane.b32.xlu0 %v3020, 120
        %v3046 = vpop.permute.xlu0 %3045
        %3047 = vrot.lane.b32.xlu0 %v3021, 120
        %v3048 = vpop.permute.xlu0 %3047
        %3049 = vrot.lane.b32.xlu0 %v3022, 120
        %v3050 = vpop.permute.xlu0 %3049
        %3051 = vrot.lane.b32.xlu0 %v3023, 120
        %v3052 = vpop.permute.xlu0 %3051
        %3053 = vrot.lane.b32.xlu0 %v3024, 120
        %v3054 = vpop.permute.xlu0 %3053
        %v3055 = vsel %vm669, %v3036, %v3038
        %v3056 = vsel %vm669, %v3038, %v3040
        %v3057 = vsel %vm669, %v3040, %v3042
        %v3058 = vsel %vm669, %v3042, %v3044
        %v3059 = vsel %vm669, %v3046, %v3048
        %v3060 = vsel %vm669, %v3048, %v3050
        %v3061 = vsel %vm669, %v3050, %v3052
        %v3062 = vsel %vm669, %v3052, %v3054
        %3071 = vst [vmem:[#allocation2 + $0x40] sm:$0xff] %v3055
        %3072 = vst [vmem:[#allocation2 + $0x48] sm:$0xff] %v3056
        %3073 = vst [vmem:[#allocation2 + $0x50] sm:$0xff] %v3057
        %3074 = vst [vmem:[#allocation2 + $0x58] sm:$0xff] %v3058
        %3075 = vst [vmem:[#allocation2 + $0x60] sm:$0xff] %v3059
        %3076 = vst [vmem:[#allocation2 + $0x68] sm:$0xff] %v3060
        %3077 = vst [vmem:[#allocation2 + $0x70] sm:$0xff] %v3061
        %3078 = vst [vmem:[#allocation2 + $0x78] sm:$0xff] %v3062
        %v3079 = vld [vmem:[%s277] sm:$0xff]
        %v3080 = vld [vmem:[%s277 + $0x8] sm:$0xff]
        %v3081 = vld [vmem:[%s277 + $0x10] sm:$0xff]
        %v3082 = vld [vmem:[%s277 + $0x18] sm:$0xff]
        %v3083 = vld [vmem:[%s277 + $0x20] sm:$0xff]
        %v3084 = vld [vmem:[%s277 + $0x48] sm:$0xff]
        %v3085 = vld [vmem:[%s277 + $0x50] sm:$0xff]
        %v3086 = vld [vmem:[%s277 + $0x58] sm:$0xff]
        %v3087 = vld [vmem:[%s277 + $0x60] sm:$0xff]
        %v3088 = vld [vmem:[%s277 + $0x68] sm:$0xff]
        %3099 = vrot.lane.b32.xlu0 %v3079, 112
        %v3100 = vpop.permute.xlu0 %3099
        %3101 = vrot.lane.b32.xlu0 %v3080, 112
        %v3102 = vpop.permute.xlu0 %3101
        %3103 = vrot.lane.b32.xlu0 %v3081, 112
        %v3104 = vpop.permute.xlu0 %3103
        %3105 = vrot.lane.b32.xlu0 %v3082, 112
        %v3106 = vpop.permute.xlu0 %3105
        %3107 = vrot.lane.b32.xlu0 %v3083, 112
        %v3108 = vpop.permute.xlu0 %3107
        %3109 = vrot.lane.b32.xlu0 %v3084, 112
        %v3110 = vpop.permute.xlu0 %3109
        %3111 = vrot.lane.b32.xlu0 %v3085, 112
        %v3112 = vpop.permute.xlu0 %3111
        %3113 = vrot.lane.b32.xlu0 %v3086, 112
        %v3114 = vpop.permute.xlu0 %3113
        %3115 = vrot.lane.b32.xlu0 %v3087, 112
        %v3116 = vpop.permute.xlu0 %3115
        %3117 = vrot.lane.b32.xlu0 %v3088, 112
        %v3118 = vpop.permute.xlu0 %3117
        %vm3119 = vcmask 916480
        %v3120 = vsel %vm3119, %v3100, %v3102
        %v3121 = vsel %vm3119, %v3102, %v3104
        %v3122 = vsel %vm3119, %v3104, %v3106
        %v3123 = vsel %vm3119, %v3106, %v3108
        %v3124 = vsel %vm3119, %v3110, %v3112
        %v3125 = vsel %vm3119, %v3112, %v3114
        %v3126 = vsel %vm3119, %v3114, %v3116
        %v3127 = vsel %vm3119, %v3116, %v3118
        %3136 = vst [vmem:[#allocation2 + $0x80] sm:$0xff] %v3120
        %3137 = vst [vmem:[#allocation2 + $0x88] sm:$0xff] %v3121
        %3138 = vst [vmem:[#allocation2 + $0x90] sm:$0xff] %v3122
        %3139 = vst [vmem:[#allocation2 + $0x98] sm:$0xff] %v3123
        %3140 = vst [vmem:[#allocation2 + $0xa0] sm:$0xff] %v3124
        %3141 = vst [vmem:[#allocation2 + $0xa8] sm:$0xff] %v3125
        %3142 = vst [vmem:[#allocation2 + $0xb0] sm:$0xff] %v3126
        %3143 = vst [vmem:[#allocation2 + $0xb8] sm:$0xff] %v3127
        %v3144 = vld [vmem:[%s277 + $0x10] sm:$0xff]
        %v3145 = vld [vmem:[%s277 + $0x18] sm:$0xff]
        %v3146 = vld [vmem:[%s277 + $0x20] sm:$0xff]
        %v3147 = vld [vmem:[%s277 + $0x28] sm:$0xff]
        %v3148 = vld [vmem:[%s277 + $0x58] sm:$0xff]
        %v3149 = vld [vmem:[%s277 + $0x60] sm:$0xff]
        %v3150 = vld [vmem:[%s277 + $0x68] sm:$0xff]
        %v3151 = vld [vmem:[%s277 + $0x70] sm:$0xff]
        %3152 = vst [vmem:[#allocation2 + $0xc0] sm:$0xff] %v3144
        %3153 = vst [vmem:[#allocation2 + $0xc8] sm:$0xff] %v3145
        %3154 = vst [vmem:[#allocation2 + $0xd0] sm:$0xff] %v3146
        %3155 = vst [vmem:[#allocation2 + $0xd8] sm:$0xff] %v3147
        %3156 = vst [vmem:[#allocation2 + $0xe0] sm:$0xff] %v3148
        %3157 = vst [vmem:[#allocation2 + $0xe8] sm:$0xff] %v3149
        %3158 = vst [vmem:[#allocation2 + $0xf0] sm:$0xff] %v3150
        %3159 = vst [vmem:[#allocation2 + $0xf8] sm:$0xff] %v3151
        %v3160 = vld [vmem:[%s277 + $0x10] sm:$0xff]
        %v3161 = vld [vmem:[%s277 + $0x18] sm:$0xff]
        %v3162 = vld [vmem:[%s277 + $0x20] sm:$0xff]
        %v3163 = vld [vmem:[%s277 + $0x28] sm:$0xff]
        %v3164 = vld [vmem:[%s277 + $0x30] sm:$0xff]
        %v3165 = vld [vmem:[%s277 + $0x58] sm:$0xff]
        %v3166 = vld [vmem:[%s277 + $0x60] sm:$0xff]
        %v3167 = vld [vmem:[%s277 + $0x68] sm:$0xff]
        %v3168 = vld [vmem:[%s277 + $0x70] sm:$0xff]
        %v3169 = vld [vmem:[%s277 + $0x78] sm:$0xff]
        %3180 = vrot.lane.b32.xlu0 %v3160, 120
        %v3181 = vpop.permute.xlu0 %3180
        %3182 = vrot.lane.b32.xlu0 %v3161, 120
        %v3183 = vpop.permute.xlu0 %3182
        %3184 = vrot.lane.b32.xlu0 %v3162, 120
        %v3185 = vpop.permute.xlu0 %3184
        %3186 = vrot.lane.b32.xlu0 %v3163, 120
        %v3187 = vpop.permute.xlu0 %3186
        %3188 = vrot.lane.b32.xlu0 %v3164, 120
        %v3189 = vpop.permute.xlu0 %3188
        %3190 = vrot.lane.b32.xlu0 %v3165, 120
        %v3191 = vpop.permute.xlu0 %3190
        %3192 = vrot.lane.b32.xlu0 %v3166, 120
        %v3193 = vpop.permute.xlu0 %3192
        %3194 = vrot.lane.b32.xlu0 %v3167, 120
        %v3195 = vpop.permute.xlu0 %3194
        %3196 = vrot.lane.b32.xlu0 %v3168, 120
        %v3197 = vpop.permute.xlu0 %3196
        %3198 = vrot.lane.b32.xlu0 %v3169, 120
        %v3199 = vpop.permute.xlu0 %3198
        %v3200 = vsel %vm669, %v3181, %v3183
        %v3201 = vsel %vm669, %v3183, %v3185
        %v3202 = vsel %vm669, %v3185, %v3187
        %v3203 = vsel %vm669, %v3187, %v3189
        %v3204 = vsel %vm669, %v3191, %v3193
        %v3205 = vsel %vm669, %v3193, %v3195
        %v3206 = vsel %vm669, %v3195, %v3197
        %v3207 = vsel %vm669, %v3197, %v3199
        %3216 = vst [vmem:[#allocation2 + $0x100] sm:$0xff] %v3200
        %3217 = vst [vmem:[#allocation2 + $0x108] sm:$0xff] %v3201
        %3218 = vst [vmem:[#allocation2 + $0x110] sm:$0xff] %v3202
        %3219 = vst [vmem:[#allocation2 + $0x118] sm:$0xff] %v3203
        %3220 = vst [vmem:[#allocation2 + $0x120] sm:$0xff] %v3204
        %3221 = vst [vmem:[#allocation2 + $0x128] sm:$0xff] %v3205
        %3222 = vst [vmem:[#allocation2 + $0x130] sm:$0xff] %v3206
        %3223 = vst [vmem:[#allocation2 + $0x138] sm:$0xff] %v3207
        %v3224 = vld [vmem:[%s277 + $0x10] sm:$0xff]
        %v3225 = vld [vmem:[%s277 + $0x18] sm:$0xff]
        %v3226 = vld [vmem:[%s277 + $0x20] sm:$0xff]
        %v3227 = vld [vmem:[%s277 + $0x28] sm:$0xff]
        %v3228 = vld [vmem:[%s277 + $0x30] sm:$0xff]
        %v3229 = vld [vmem:[%s277 + $0x58] sm:$0xff]
        %v3230 = vld [vmem:[%s277 + $0x60] sm:$0xff]
        %v3231 = vld [vmem:[%s277 + $0x68] sm:$0xff]
        %v3232 = vld [vmem:[%s277 + $0x70] sm:$0xff]
        %v3233 = vld [vmem:[%s277 + $0x78] sm:$0xff]
        %3244 = vrot.lane.b32.xlu0 %v3224, 112
        %v3245 = vpop.permute.xlu0 %3244
        %3246 = vrot.lane.b32.xlu0 %v3225, 112
        %v3247 = vpop.permute.xlu0 %3246
        %3248 = vrot.lane.b32.xlu0 %v3226, 112
        %v3249 = vpop.permute.xlu0 %3248
        %3250 = vrot.lane.b32.xlu0 %v3227, 112
        %v3251 = vpop.permute.xlu0 %3250
        %3252 = vrot.lane.b32.xlu0 %v3228, 112
        %v3253 = vpop.permute.xlu0 %3252
        %3254 = vrot.lane.b32.xlu0 %v3229, 112
        %v3255 = vpop.permute.xlu0 %3254
        %3256 = vrot.lane.b32.xlu0 %v3230, 112
        %v3257 = vpop.permute.xlu0 %3256
        %3258 = vrot.lane.b32.xlu0 %v3231, 112
        %v3259 = vpop.permute.xlu0 %3258
        %3260 = vrot.lane.b32.xlu0 %v3232, 112
        %v3261 = vpop.permute.xlu0 %3260
        %3262 = vrot.lane.b32.xlu0 %v3233, 112
        %v3263 = vpop.permute.xlu0 %3262
        %v3264 = vsel %vm3119, %v3245, %v3247
        %v3265 = vsel %vm3119, %v3247, %v3249
        %v3266 = vsel %vm3119, %v3249, %v3251
        %v3267 = vsel %vm3119, %v3251, %v3253
        %v3268 = vsel %vm3119, %v3255, %v3257
        %v3269 = vsel %vm3119, %v3257, %v3259
        %v3270 = vsel %vm3119, %v3259, %v3261
        %v3271 = vsel %vm3119, %v3261, %v3263
        %3280 = vst [vmem:[#allocation2 + $0x140] sm:$0xff] %v3264
        %3281 = vst [vmem:[#allocation2 + $0x148] sm:$0xff] %v3265
        %3282 = vst [vmem:[#allocation2 + $0x150] sm:$0xff] %v3266
        %3283 = vst [vmem:[#allocation2 + $0x158] sm:$0xff] %v3267
        %3284 = vst [vmem:[#allocation2 + $0x160] sm:$0xff] %v3268
        %3285 = vst [vmem:[#allocation2 + $0x168] sm:$0xff] %v3269
        %3286 = vst [vmem:[#allocation2 + $0x170] sm:$0xff] %v3270
        %3287 = vst [vmem:[#allocation2 + $0x178] sm:$0xff] %v3271
        %v3288 = vld [vmem:[%s277 + $0x20] sm:$0xff]
        %v3289 = vld [vmem:[%s277 + $0x28] sm:$0xff]
        %v3290 = vld [vmem:[%s277 + $0x30] sm:$0xff]
        %v3291 = vld [vmem:[%s277 + $0x38] sm:$0xff]
        %v3292 = vld [vmem:[%s277 + $0x68] sm:$0xff]
        %v3293 = vld [vmem:[%s277 + $0x70] sm:$0xff]
        %v3294 = vld [vmem:[%s277 + $0x78] sm:$0xff]
        %v3295 = vld [vmem:[%s277 + $0x80] sm:$0xff]
        %3296 = vst [vmem:[#allocation2 + $0x180] sm:$0xff] %v3288
        %3297 = vst [vmem:[#allocation2 + $0x188] sm:$0xff] %v3289
        %3298 = vst [vmem:[#allocation2 + $0x190] sm:$0xff] %v3290
        %3299 = vst [vmem:[#allocation2 + $0x198] sm:$0xff] %v3291
        %3300 = vst [vmem:[#allocation2 + $0x1a0] sm:$0xff] %v3292
        %3301 = vst [vmem:[#allocation2 + $0x1a8] sm:$0xff] %v3293
        %3302 = vst [vmem:[#allocation2 + $0x1b0] sm:$0xff] %v3294
        %3303 = vst [vmem:[#allocation2 + $0x1b8] sm:$0xff] %v3295
        %v3304 = vld [vmem:[%s277 + $0x20] sm:$0xff]
        %v3305 = vld [vmem:[%s277 + $0x28] sm:$0xff]
        %v3306 = vld [vmem:[%s277 + $0x30] sm:$0xff]
        %v3307 = vld [vmem:[%s277 + $0x38] sm:$0xff]
        %v3308 = vld [vmem:[%s277 + $0x40] sm:$0xff]
        %v3309 = vld [vmem:[%s277 + $0x68] sm:$0xff]
        %v3310 = vld [vmem:[%s277 + $0x70] sm:$0xff]
        %v3311 = vld [vmem:[%s277 + $0x78] sm:$0xff]
        %v3312 = vld [vmem:[%s277 + $0x80] sm:$0xff]
        %v3313 = vld [vmem:[%s277 + $0x88] sm:$0xff]
        %3324 = vrot.lane.b32.xlu0 %v3304, 120
        %v3325 = vpop.permute.xlu0 %3324
        %3326 = vrot.lane.b32.xlu0 %v3305, 120
        %v3327 = vpop.permute.xlu0 %3326
        %3328 = vrot.lane.b32.xlu0 %v3306, 120
        %v3329 = vpop.permute.xlu0 %3328
        %3330 = vrot.lane.b32.xlu0 %v3307, 120
        %v3331 = vpop.permute.xlu0 %3330
        %3332 = vrot.lane.b32.xlu0 %v3308, 120
        %v3333 = vpop.permute.xlu0 %3332
        %3334 = vrot.lane.b32.xlu0 %v3309, 120
        %v3335 = vpop.permute.xlu0 %3334
        %3336 = vrot.lane.b32.xlu0 %v3310, 120
        %v3337 = vpop.permute.xlu0 %3336
        %3338 = vrot.lane.b32.xlu0 %v3311, 120
        %v3339 = vpop.permute.xlu0 %3338
        %3340 = vrot.lane.b32.xlu0 %v3312, 120
        %v3341 = vpop.permute.xlu0 %3340
        %3342 = vrot.lane.b32.xlu0 %v3313, 120
        %v3343 = vpop.permute.xlu0 %3342
        %v3344 = vsel %vm669, %v3325, %v3327
        %v3345 = vsel %vm669, %v3327, %v3329
        %v3346 = vsel %vm669, %v3329, %v3331
        %v3347 = vsel %vm669, %v3331, %v3333
        %v3348 = vsel %vm669, %v3335, %v3337
        %v3349 = vsel %vm669, %v3337, %v3339
        %v3350 = vsel %vm669, %v3339, %v3341
        %v3351 = vsel %vm669, %v3341, %v3343
        %3360 = vst [vmem:[#allocation2 + $0x1c0] sm:$0xff] %v3344
        %3361 = vst [vmem:[#allocation2 + $0x1c8] sm:$0xff] %v3345
        %3362 = vst [vmem:[#allocation2 + $0x1d0] sm:$0xff] %v3346
        %3363 = vst [vmem:[#allocation2 + $0x1d8] sm:$0xff] %v3347
        %3364 = vst [vmem:[#allocation2 + $0x1e0] sm:$0xff] %v3348
        %3365 = vst [vmem:[#allocation2 + $0x1e8] sm:$0xff] %v3349
        %3366 = vst [vmem:[#allocation2 + $0x1f0] sm:$0xff] %v3350
        %3367 = vst [vmem:[#allocation2 + $0x1f8] sm:$0xff] %v3351
        %v3368 = vld [vmem:[%s277 + $0x20] sm:$0xff]
        %v3369 = vld [vmem:[%s277 + $0x28] sm:$0xff]
        %v3370 = vld [vmem:[%s277 + $0x30] sm:$0xff]
        %v3371 = vld [vmem:[%s277 + $0x38] sm:$0xff]
        %v3372 = vld [vmem:[%s277 + $0x40] sm:$0xff]
        %v3373 = vld [vmem:[%s277 + $0x68] sm:$0xff]
        %v3374 = vld [vmem:[%s277 + $0x70] sm:$0xff]
        %v3375 = vld [vmem:[%s277 + $0x78] sm:$0xff]
        %v3376 = vld [vmem:[%s277 + $0x80] sm:$0xff]
        %v3377 = vld [vmem:[%s277 + $0x88] sm:$0xff]
        %3388 = vrot.lane.b32.xlu0 %v3368, 112
        %v3389 = vpop.permute.xlu0 %3388
        %3390 = vrot.lane.b32.xlu0 %v3369, 112
        %v3391 = vpop.permute.xlu0 %3390
        %3392 = vrot.lane.b32.xlu0 %v3370, 112
        %v3393 = vpop.permute.xlu0 %3392
        %3394 = vrot.lane.b32.xlu0 %v3371, 112
        %v3395 = vpop.permute.xlu0 %3394
        %3396 = vrot.lane.b32.xlu0 %v3372, 112
        %v3397 = vpop.permute.xlu0 %3396
        %3398 = vrot.lane.b32.xlu0 %v3373, 112
        %v3399 = vpop.permute.xlu0 %3398
        %3400 = vrot.lane.b32.xlu0 %v3374, 112
        %v3401 = vpop.permute.xlu0 %3400
        %3402 = vrot.lane.b32.xlu0 %v3375, 112
        %v3403 = vpop.permute.xlu0 %3402
        %3404 = vrot.lane.b32.xlu0 %v3376, 112
        %v3405 = vpop.permute.xlu0 %3404
        %3406 = vrot.lane.b32.xlu0 %v3377, 112
        %v3407 = vpop.permute.xlu0 %3406
        %v3408 = vsel %vm3119, %v3389, %v3391
        %v3409 = vsel %vm3119, %v3391, %v3393
        %v3410 = vsel %vm3119, %v3393, %v3395
        %v3411 = vsel %vm3119, %v3395, %v3397
        %v3412 = vsel %vm3119, %v3399, %v3401
        %v3413 = vsel %vm3119, %v3401, %v3403
        %v3414 = vsel %vm3119, %v3403, %v3405
        %v3415 = vsel %vm3119, %v3405, %v3407
        %3424 = vst [vmem:[#allocation2 + $0x200] sm:$0xff] %v3408
        %3425 = vst [vmem:[#allocation2 + $0x208] sm:$0xff] %v3409
        %3426 = vst [vmem:[#allocation2 + $0x210] sm:$0xff] %v3410
        %3427 = vst [vmem:[#allocation2 + $0x218] sm:$0xff] %v3411
        %3428 = vst [vmem:[#allocation2 + $0x220] sm:$0xff] %v3412
        %3429 = vst [vmem:[#allocation2 + $0x228] sm:$0xff] %v3413
        %3430 = vst [vmem:[#allocation2 + $0x230] sm:$0xff] %v3414
        %3431 = vst [vmem:[#allocation2 + $0x238] sm:$0xff] %v3415
        %s3432 = scalar_lea.vmem %s1, 24
        %v3433 = vld [vmem:[%s3432] sm:$0xff]
        %s3434 = scalar_lea.vmem %s2, 12
        %v3435 = vld [vmem:[%s3434] sm:$0xf]
        %v3436 = vld [vmem:[#allocation2] sm:$0xff]
        %v3437 = vld [vmem:[#allocation2 + $0x8] sm:$0xff]
        %v3438 = vld [vmem:[#allocation2 + $0x10] sm:$0xff]
        %v3439 = vld [vmem:[#allocation2 + $0x18] sm:$0xff]
        %v3440 = vld [vmem:[#allocation2 + $0x20] sm:$0xff]
        %v3441 = vld [vmem:[#allocation2 + $0x28] sm:$0xff]
        %v3442 = vld [vmem:[#allocation2 + $0x30] sm:$0xff]
        %v3443 = vld [vmem:[#allocation2 + $0x38] sm:$0xff]
        %v3444 = vld [vmem:[#allocation2 + $0x40] sm:$0xff]
        %v3445 = vld [vmem:[#allocation2 + $0x48] sm:$0xff]
        %v3446 = vld [vmem:[#allocation2 + $0x50] sm:$0xff]
        %v3447 = vld [vmem:[#allocation2 + $0x58] sm:$0xff]
        %v3448 = vld [vmem:[#allocation2 + $0x60] sm:$0xff]
        %v3449 = vld [vmem:[#allocation2 + $0x68] sm:$0xff]
        %v3450 = vld [vmem:[#allocation2 + $0x70] sm:$0xff]
        %v3451 = vld [vmem:[#allocation2 + $0x78] sm:$0xff]
        %v3452 = vld [vmem:[#allocation2 + $0x80] sm:$0xff]
        %v3453 = vld [vmem:[#allocation2 + $0x88] sm:$0xff]
        %v3454 = vld [vmem:[#allocation2 + $0x90] sm:$0xff]
        %v3455 = vld [vmem:[#allocation2 + $0x98] sm:$0xff]
        %v3456 = vld [vmem:[#allocation2 + $0xa0] sm:$0xff]
        %v3457 = vld [vmem:[#allocation2 + $0xa8] sm:$0xff]
        %v3458 = vld [vmem:[#allocation2 + $0xb0] sm:$0xff]
        %v3459 = vld [vmem:[#allocation2 + $0xb8] sm:$0xff]
        %v3460 = vld [vmem:[#allocation2 + $0xc0] sm:$0xff]
        %v3461 = vld [vmem:[#allocation2 + $0xc8] sm:$0xff]
        %v3462 = vld [vmem:[#allocation2 + $0xd0] sm:$0xff]
        %v3463 = vld [vmem:[#allocation2 + $0xd8] sm:$0xff]
        %v3464 = vld [vmem:[#allocation2 + $0xe0] sm:$0xff]
        %v3465 = vld [vmem:[#allocation2 + $0xe8] sm:$0xff]
        %v3466 = vld [vmem:[#allocation2 + $0xf0] sm:$0xff]
        %v3467 = vld [vmem:[#allocation2 + $0xf8] sm:$0xff]
        %v3468 = vld [vmem:[#allocation2 + $0x100] sm:$0xff]
        %v3469 = vld [vmem:[#allocation2 + $0x108] sm:$0xff]
        %v3470 = vld [vmem:[#allocation2 + $0x110] sm:$0xff]
        %v3471 = vld [vmem:[#allocation2 + $0x118] sm:$0xff]
        %v3472 = vld [vmem:[#allocation2 + $0x120] sm:$0xff]
        %v3473 = vld [vmem:[#allocation2 + $0x128] sm:$0xff]
        %v3474 = vld [vmem:[#allocation2 + $0x130] sm:$0xff]
        %v3475 = vld [vmem:[#allocation2 + $0x138] sm:$0xff]
        %v3476 = vld [vmem:[#allocation2 + $0x140] sm:$0xff]
        %v3477 = vld [vmem:[#allocation2 + $0x148] sm:$0xff]
        %v3478 = vld [vmem:[#allocation2 + $0x150] sm:$0xff]
        %v3479 = vld [vmem:[#allocation2 + $0x158] sm:$0xff]
        %v3480 = vld [vmem:[#allocation2 + $0x160] sm:$0xff]
        %v3481 = vld [vmem:[#allocation2 + $0x168] sm:$0xff]
        %v3482 = vld [vmem:[#allocation2 + $0x170] sm:$0xff]
        %v3483 = vld [vmem:[#allocation2 + $0x178] sm:$0xff]
        %v3484 = vld [vmem:[#allocation2 + $0x180] sm:$0xff]
        %v3485 = vld [vmem:[#allocation2 + $0x188] sm:$0xff]
        %v3486 = vld [vmem:[#allocation2 + $0x190] sm:$0xff]
        %v3487 = vld [vmem:[#allocation2 + $0x198] sm:$0xff]
        %v3488 = vld [vmem:[#allocation2 + $0x1a0] sm:$0xff]
        %v3489 = vld [vmem:[#allocation2 + $0x1a8] sm:$0xff]
        %v3490 = vld [vmem:[#allocation2 + $0x1b0] sm:$0xff]
        %v3491 = vld [vmem:[#allocation2 + $0x1b8] sm:$0xff]
        %v3492 = vld [vmem:[#allocation2 + $0x1c0] sm:$0xff]
        %v3493 = vld [vmem:[#allocation2 + $0x1c8] sm:$0xff]
        %v3494 = vld [vmem:[#allocation2 + $0x1d0] sm:$0xff]
        %v3495 = vld [vmem:[#allocation2 + $0x1d8] sm:$0xff]
        %v3496 = vld [vmem:[#allocation2 + $0x1e0] sm:$0xff]
        %v3497 = vld [vmem:[#allocation2 + $0x1e8] sm:$0xff]
        %v3498 = vld [vmem:[#allocation2 + $0x1f0] sm:$0xff]
        %v3499 = vld [vmem:[#allocation2 + $0x1f8] sm:$0xff]
        %v3500 = vld [vmem:[#allocation2 + $0x200] sm:$0xff]
        %v3501 = vld [vmem:[#allocation2 + $0x208] sm:$0xff]
        %v3502 = vld [vmem:[#allocation2 + $0x210] sm:$0xff]
        %v3503 = vld [vmem:[#allocation2 + $0x218] sm:$0xff]
        %v3504 = vld [vmem:[#allocation2 + $0x220] sm:$0xff]
        %v3505 = vld [vmem:[#allocation2 + $0x228] sm:$0xff]
        %v3506 = vld [vmem:[#allocation2 + $0x230] sm:$0xff]
        %v3507 = vld [vmem:[#allocation2 + $0x238] sm:$0xff]
        %3509 = vset.pattern.permute.xlu0 0
        %3510 = vperm.xlu0 %3509, %v3435
        %v3511 = vpop.permute.xlu0 %3510
        %v3514 = vcombine.high %v3433, %v3433
        %v3515 = vsel %vm1050, %v3514, 0
        %3517 = vmatprep.subr.mxu0 %v3437
        %3518 = vmatpush1.msra.mxu0 %v3436
        %3519 = vmatprep.subr.mxu0 %v3441
        %3520 = vmatpush1.msra.mxu0 %v3440
        %3521 = vmatprep.subr.mxu0 %v3445
        %3522 = vmatpush1.msra.mxu0 %v3444
        %3523 = vmatprep.subr.mxu0 %v3449
        %3524 = vmatpush1.msra.mxu0 %v3448
        %3525 = vmatprep.subr.mxu0 %v3453
        %3526 = vmatpush1.msra.mxu0 %v3452
        %3527 = vmatprep.subr.mxu0 %v3457
        %3528 = vmatpush1.msra.mxu0 %v3456
        %3529 = vmatprep.subr.mxu0 %v3461
        %3530 = vmatpush1.msra.mxu0 %v3460
        %3531 = vmatprep.subr.mxu0 %v3465
        %3532 = vmatpush1.msra.mxu0 %v3464
        %3533 = vmatprep.subr.mxu0 %v3469
        %3534 = vmatpush1.msra.mxu0 %v3468
        %3535 = vmatprep.subr.mxu0 %v3473
        %3536 = vmatpush1.msra.mxu0 %v3472
        %3537 = vmatprep.subr.mxu0 %v3477
        %3538 = vmatpush1.msra.mxu0 %v3476
        %3539 = vmatprep.subr.mxu0 %v3481
        %3540 = vmatpush1.msra.mxu0 %v3480
        %3541 = vmatprep.subr.mxu0 %v3485
        %3542 = vmatpush1.msra.mxu0 %v3484
        %3543 = vmatprep.subr.mxu0 %v3489
        %3544 = vmatpush1.msra.mxu0 %v3488
        %3545 = vmatprep.subr.mxu0 %v3493
        %3546 = vmatpush1.msra.mxu0 %v3492
        %3547 = vmatprep.subr.mxu0 %v3497
        %3548 = vmatpush1.msra.mxu0 %v3496
        %3549 = vmatprep.subr.mxu0 %v3501
        %3550 = vmatpush1.msra.mxu0 %v3500
        %3551 = vmatprep.subr.mxu0 %v3505
        %3552 = vmatpush1.msra.mxu0 %v3504
        %3553 = vmatprep.subr.mxu0 0.0
        %3554 = vmatpush1.msra.mxu0 0.0
        %3555 = vmatprep.subr.mxu0 0.0
        %3556 = vmatpush1.msra.mxu0 0.0
        %3557 = vmatprep.subr.mxu0 0.0
        %3558 = vmatpush1.msra.mxu0 0.0
        %3559 = vmatprep.subr.mxu0 0.0
        %3560 = vmatpush1.msra.mxu0 0.0
        %3561 = vmatprep.subr.mxu0 0.0
        %3562 = vmatpush1.msra.mxu0 0.0
        %3563 = vmatprep.subr.mxu0 0.0
        %3564 = vmatpush1.msra.mxu0 0.0
        %3565 = vmatprep.subr.mxu0 0.0
        %3566 = vmatpush1.msra.mxu0 0.0
        %3567 = vmatprep.subr.mxu0 0.0
        %3568 = vmatpush1.msra.mxu0 0.0
        %3569 = vmatprep.subr.mxu0 0.0
        %3570 = vmatpush1.msra.mxu0 0.0
        %3571 = vmatprep.subr.mxu0 0.0
        %3572 = vmatpush1.msra.mxu0 0.0
        %3573 = vmatprep.subr.mxu0 0.0
        %3574 = vmatpush1.msra.mxu0 0.0
        %3575 = vmatprep.subr.mxu0 0.0
        %3576 = vmatpush1.msra.mxu0 0.0
        %3577 = vmatprep.subr.mxu0 0.0
        %3578 = vmatpush1.msra.mxu0 0.0
        %3579 = vmatprep.subr.mxu0 0.0
        %3580 = vmatpush1.msra.mxu0 0.0
        %3581 = vmatprep.mubr.f32.mxu0 %v3515
        %3582 = vmatmul.mubr.f32.gmra.mrb[0].mxu0 %v3433
        %v3583 = vpop.f32.mrb[0].mxu0
        %v3584 = vadd.f32 %v3511, %v3583
        %v3585 = vpop.f32.mrb[0].mxu0
        %v3586 = vadd.f32 %v3511, %v3585
        %3587 = vdwg.mxu0
        %3588 = vmatprep.subr.mxu0 %v3439
        %3589 = vmatpush1.msra.mxu0 %v3438
        %3590 = vmatprep.subr.mxu0 %v3443
        %3591 = vmatpush1.msra.mxu0 %v3442
        %3592 = vmatprep.subr.mxu0 %v3447
        %3593 = vmatpush1.msra.mxu0 %v3446
        %3594 = vmatprep.subr.mxu0 %v3451
        %3595 = vmatpush1.msra.mxu0 %v3450
        %3596 = vmatprep.subr.mxu0 %v3455
        %3597 = vmatpush1.msra.mxu0 %v3454
        %3598 = vmatprep.subr.mxu0 %v3459
        %3599 = vmatpush1.msra.mxu0 %v3458
        %3600 = vmatprep.subr.mxu0 %v3463
        %3601 = vmatpush1.msra.mxu0 %v3462
        %3602 = vmatprep.subr.mxu0 %v3467
        %3603 = vmatpush1.msra.mxu0 %v3466
        %3604 = vmatprep.subr.mxu0 %v3471
        %3605 = vmatpush1.msra.mxu0 %v3470
        %3606 = vmatprep.subr.mxu0 %v3475
        %3607 = vmatpush1.msra.mxu0 %v3474
        %3608 = vmatprep.subr.mxu0 %v3479
        %3609 = vmatpush1.msra.mxu0 %v3478
        %3610 = vmatprep.subr.mxu0 %v3483
        %3611 = vmatpush1.msra.mxu0 %v3482
        %3612 = vmatprep.subr.mxu0 %v3487
        %3613 = vmatpush1.msra.mxu0 %v3486
        %3614 = vmatprep.subr.mxu0 %v3491
        %3615 = vmatpush1.msra.mxu0 %v3490
        %3616 = vmatprep.subr.mxu0 %v3495
        %3617 = vmatpush1.msra.mxu0 %v3494
        %3618 = vmatprep.subr.mxu0 %v3499
        %3619 = vmatpush1.msra.mxu0 %v3498
        %3620 = vmatprep.subr.mxu0 %v3503
        %3621 = vmatpush1.msra.mxu0 %v3502
        %3622 = vmatprep.subr.mxu0 %v3507
        %3623 = vmatpush1.msra.mxu0 %v3506
        %3624 = vmatprep.subr.mxu0 0.0
        %3625 = vmatpush1.msra.mxu0 0.0
        %3626 = vmatprep.subr.mxu0 0.0
        %3627 = vmatpush1.msra.mxu0 0.0
        %3628 = vmatprep.subr.mxu0 0.0
        %3629 = vmatpush1.msra.mxu0 0.0
        %3630 = vmatprep.subr.mxu0 0.0
        %3631 = vmatpush1.msra.mxu0 0.0
        %3632 = vmatprep.subr.mxu0 0.0
        %3633 = vmatpush1.msra.mxu0 0.0
        %3634 = vmatprep.subr.mxu0 0.0
        %3635 = vmatpush1.msra.mxu0 0.0
        %3636 = vmatprep.subr.mxu0 0.0
        %3637 = vmatpush1.msra.mxu0 0.0
        %3638 = vmatprep.subr.mxu0 0.0
        %3639 = vmatpush1.msra.mxu0 0.0
        %3640 = vmatprep.subr.mxu0 0.0
        %3641 = vmatpush1.msra.mxu0 0.0
        %3642 = vmatprep.subr.mxu0 0.0
        %3643 = vmatpush1.msra.mxu0 0.0
        %3644 = vmatprep.subr.mxu0 0.0
        %3645 = vmatpush1.msra.mxu0 0.0
        %3646 = vmatprep.subr.mxu0 0.0
        %3647 = vmatpush1.msra.mxu0 0.0
        %3648 = vmatprep.subr.mxu0 0.0
        %3649 = vmatpush1.msra.mxu0 0.0
        %3650 = vmatprep.subr.mxu0 0.0
        %3651 = vmatpush1.msra.mxu0 0.0
        %3652 = vmatprep.mubr.f32.mxu0 %v3515
        %3653 = vmatmul.mubr.f32.gmra.mrb[0].mxu0 %v3433
        %v3654 = vpop.f32.mrb[0].mxu0
        %v3655 = vadd.f32 %v3511, %v3654
        %v3656 = vpop.f32.mrb[0].mxu0
        %v3657 = vadd.f32 %v3511, %v3656
        %3658 = vdwg.mxu0
        %v3659 = vmax.f32 %v3584, 0.0
        %v3660 = vmax.f32 %v3586, 0.0
        %v3661 = vmax.f32 %v3655, 0.0
        %v3662 = vmax.f32 %v3657, 0.0
        %v3667 = vrot.slane %v2186, 4
        %v3668 = vrot.slane %v2187, 4
        %v3669 = vrot.slane %v2188, 4
        %v3670 = vrot.slane %v2189, 4
        %v3679 = vrot.slane %v3659, 4
        %v3680 = vrot.slane %v3660, 4
        %v3681 = vrot.slane %v3661, 4
        %v3682 = vrot.slane %v3662, 4
        %vm3687 = vcmask 1043456
        %v3688 = vsel %vm3687, %v1374, %v3667
        %v3689 = vsel %vm3687, %v1375, %v3668
        %v3690 = vsel %vm3687, %v1376, %v3669
        %v3691 = vsel %vm3687, %v1377, %v3670
        %v3692 = vsel %vm3687, %v2995, %v3679
        %v3693 = vsel %vm3687, %v2996, %v3680
        %v3694 = vsel %vm3687, %v2997, %v3681
        %v3695 = vsel %vm3687, %v2998, %v3682
        %3696 = vst [vmem:[#allocation3 + $0x8] sm:$0xff] %v3688
        %3697 = vst [vmem:[#allocation3 + $0x10] sm:$0xff] %v3689
        %3698 = vst [vmem:[#allocation3 + $0x18] sm:$0xff] %v3690
        %3699 = vst [vmem:[#allocation3 + $0x20] sm:$0xff] %v3691
        %3700 = vst [vmem:[#allocation3 + $0x38] sm:$0xff] %v3692
        %3701 = vst [vmem:[#allocation3 + $0x40] sm:$0xff] %v3693
        %3702 = vst [vmem:[#allocation3 + $0x48] sm:$0xff] %v3694
        %3703 = vst [vmem:[#allocation3 + $0x50] sm:$0xff] %v3695
        %v3704 = vld [vmem:[#allocation3] sm:$0xff]
        %v3705 = vld [vmem:[#allocation3 + $0x8] sm:$0xff]
        %v3706 = vld [vmem:[#allocation3 + $0x10] sm:$0xff]
        %v3707 = vld [vmem:[#allocation3 + $0x18] sm:$0xff]
        %v3708 = vld [vmem:[#allocation3 + $0x20] sm:$0xff]
        %v3709 = vld [vmem:[#allocation3 + $0x30] sm:$0xff]
        %v3710 = vld [vmem:[#allocation3 + $0x38] sm:$0xff]
        %v3711 = vld [vmem:[#allocation3 + $0x40] sm:$0xff]
        %v3712 = vld [vmem:[#allocation3 + $0x48] sm:$0xff]
        %v3713 = vld [vmem:[#allocation3 + $0x50] sm:$0xff]
        %v3714 = vld [vmem:[#allocation3 + $0x28] sm:$0xff]
        %v3715 = vld [vmem:[#allocation3 + $0x58] sm:$0xff]
        %vm3716 = vcmp.eq.s32.totalorder %v361, 16
        %vm3717 = vcmp.eq.s32.totalorder %v362, 16
        %vm3718 = vcmp.eq.s32.totalorder %v363, 16
        %vm3719 = vcmp.eq.s32.totalorder %v364, 16
        %v3720 = vsel %vm3716, 1, 0
        %v3721 = vsel %vm3717, 1, 0
        %v3722 = vsel %vm3718, 1, 0
        %v3723 = vsel %vm3719, 1, 0
        %vm3724 = vcmp.eq.s32.totalorder %v3720, 1
        %vm3725 = vcmp.eq.s32.totalorder %v3721, 1
        %vm3726 = vcmp.eq.s32.totalorder %v3722, 1
        %vm3727 = vcmp.eq.s32.totalorder %v3723, 1
        %3738 = vrot.lane.b32.xlu0 %v3704, 2
        %v3739 = vpop.permute.xlu0 %3738
        %3740 = vrot.lane.b32.xlu0 %v3705, 2
        %v3741 = vpop.permute.xlu0 %3740
        %3742 = vrot.lane.b32.xlu0 %v3706, 2
        %v3743 = vpop.permute.xlu0 %3742
        %3744 = vrot.lane.b32.xlu0 %v3707, 2
        %v3745 = vpop.permute.xlu0 %3744
        %3746 = vrot.lane.b32.xlu0 %v3708, 2
        %v3747 = vpop.permute.xlu0 %3746
        %3748 = vrot.lane.b32.xlu0 %v3709, 2
        %v3749 = vpop.permute.xlu0 %3748
        %3750 = vrot.lane.b32.xlu0 %v3710, 2
        %v3751 = vpop.permute.xlu0 %3750
        %3752 = vrot.lane.b32.xlu0 %v3711, 2
        %v3753 = vpop.permute.xlu0 %3752
        %3754 = vrot.lane.b32.xlu0 %v3712, 2
        %v3755 = vpop.permute.xlu0 %3754
        %3756 = vrot.lane.b32.xlu0 %v3713, 2
        %v3757 = vpop.permute.xlu0 %3756
        %vm3758 = vcmask 15360
        %v3759 = vsel %vm3758, %v3739, %v3741
        %v3760 = vsel %vm3758, %v3741, %v3743
        %v3761 = vsel %vm3758, %v3743, %v3745
        %v3762 = vsel %vm3758, %v3745, %v3747
        %v3763 = vsel %vm3758, %v3749, %v3751
        %v3764 = vsel %vm3758, %v3751, %v3753
        %v3765 = vsel %vm3758, %v3753, %v3755
        %v3766 = vsel %vm3758, %v3755, %v3757
        %v3775 = vsel %vm3724, %v3759, %v3688
        %v3776 = vsel %vm3725, %v3760, %v3689
        %v3777 = vsel %vm3726, %v3761, %v3690
        %v3778 = vsel %vm3727, %v3762, %v3691
        %v3779 = vsel %vm3724, %v3763, %v3692
        %v3780 = vsel %vm3725, %v3764, %v3693
        %v3781 = vsel %vm3726, %v3765, %v3694
        %v3782 = vsel %vm3727, %v3766, %v3695
        %vm3783 = vcmp.eq.s32.totalorder %v361, 31
        %vm3784 = vcmp.eq.s32.totalorder %v362, 31
        %vm3785 = vcmp.eq.s32.totalorder %v363, 31
        %vm3786 = vcmp.eq.s32.totalorder %v364, 31
        %v3787 = vsel %vm3783, 1, 0
        %v3788 = vsel %vm3784, 1, 0
        %v3789 = vsel %vm3785, 1, 0
        %v3790 = vsel %vm3786, 1, 0
        %vm3791 = vcmp.eq.s32.totalorder %v3787, 1
        %vm3792 = vcmp.eq.s32.totalorder %v3788, 1
        %vm3793 = vcmp.eq.s32.totalorder %v3789, 1
        %vm3794 = vcmp.eq.s32.totalorder %v3790, 1
        %3797 = vrot.lane.b32.xlu0 %v3705, 126
        %v3798 = vpop.permute.xlu0 %3797
        %3799 = vrot.lane.b32.xlu0 %v3706, 126
        %v3800 = vpop.permute.xlu0 %3799
        %3801 = vrot.lane.b32.xlu0 %v3707, 126
        %v3802 = vpop.permute.xlu0 %3801
        %3803 = vrot.lane.b32.xlu0 %v3708, 126
        %v3804 = vpop.permute.xlu0 %3803
        %3805 = vrot.lane.b32.xlu0 %v3714, 126
        %v3806 = vpop.permute.xlu0 %3805
        %3807 = vrot.lane.b32.xlu0 %v3710, 126
        %v3808 = vpop.permute.xlu0 %3807
        %3809 = vrot.lane.b32.xlu0 %v3711, 126
        %v3810 = vpop.permute.xlu0 %3809
        %3811 = vrot.lane.b32.xlu0 %v3712, 126
        %v3812 = vpop.permute.xlu0 %3811
        %3813 = vrot.lane.b32.xlu0 %v3713, 126
        %v3814 = vpop.permute.xlu0 %3813
        %3815 = vrot.lane.b32.xlu0 %v3715, 126
        %v3816 = vpop.permute.xlu0 %3815
        %vm3817 = vcmask 1031168
        %v3818 = vsel %vm3817, %v3798, %v3800
        %v3819 = vsel %vm3817, %v3800, %v3802
        %v3820 = vsel %vm3817, %v3802, %v3804
        %v3821 = vsel %vm3817, %v3804, %v3806
        %v3822 = vsel %vm3817, %v3808, %v3810
        %v3823 = vsel %vm3817, %v3810, %v3812
        %v3824 = vsel %vm3817, %v3812, %v3814
        %v3825 = vsel %vm3817, %v3814, %v3816
        %v3834 = vsel %vm3791, %v3818, %v3775
        %v3835 = vsel %vm3792, %v3819, %v3776
        %v3836 = vsel %vm3793, %v3820, %v3777
        %v3837 = vsel %vm3794, %v3821, %v3778
        %v3838 = vsel %vm3791, %v3822, %v3779
        %v3839 = vsel %vm3792, %v3823, %v3780
        %v3840 = vsel %vm3793, %v3824, %v3781
        %v3841 = vsel %vm3794, %v3825, %v3782
        %3842 = vst [vmem:[#allocation3 + $0x8] sm:$0xff] %v3834
        %3843 = vst [vmem:[#allocation3 + $0x10] sm:$0xff] %v3835
        %3844 = vst [vmem:[#allocation3 + $0x18] sm:$0xff] %v3836
        %3845 = vst [vmem:[#allocation3 + $0x20] sm:$0xff] %v3837
        %3846 = vst [vmem:[#allocation3 + $0x38] sm:$0xff] %v3838
        %3847 = vst [vmem:[#allocation3 + $0x40] sm:$0xff] %v3839
        %3848 = vst [vmem:[#allocation3 + $0x48] sm:$0xff] %v3840
        %3849 = vst [vmem:[#allocation3 + $0x50] sm:$0xff] %v3841
        %v3850 = vld [vmem:[#allocation3 + $0x8] sm:$0xff]
        %v3851 = vld [vmem:[#allocation3 + $0x38] sm:$0xff]
        %3854 = vrot.lane.b32.xlu0 %v3850, 126
        %v3855 = vpop.permute.xlu0 %3854
        %3856 = vrot.lane.b32.xlu0 %v3851, 126
        %v3857 = vpop.permute.xlu0 %3856
        %vm3860 = vcmask 1048568
        %3861 = vst.msk [vmem:[#allocation3] sm:$0xff] %vm3860, %v3855
        %3862 = vst.msk [vmem:[#allocation3 + $0x30] sm:$0xff] %vm3860, %v3857
        %v3863 = vld [vmem:[#allocation3 + $0x8] sm:$0xff]
        %v3864 = vld [vmem:[#allocation3 + $0x38] sm:$0xff]
        %3867 = vrot.lane.b32.xlu0 %v3863, 64
        %v3868 = vpop.permute.xlu0 %3867
        %3869 = vrot.lane.b32.xlu0 %v3864, 64
        %v3870 = vpop.permute.xlu0 %3869
        %vm3873 = vcmask 925432
        %3874 = vst.msk [vmem:[#allocation3] sm:$0xff] %vm3873, %v3868
        %3875 = vst.msk [vmem:[#allocation3 + $0x30] sm:$0xff] %vm3873, %v3870
        %v3876 = vld [vmem:[#allocation3 + $0x20] sm:$0xff]
        %v3877 = vld [vmem:[#allocation3 + $0x50] sm:$0xff]
        %3880 = vrot.lane.b32.xlu0 %v3876, 64
        %v3881 = vpop.permute.xlu0 %3880
        %3882 = vrot.lane.b32.xlu0 %v3877, 64
        %v3883 = vpop.permute.xlu0 %3882
        %3886 = vst.msk [vmem:[#allocation3 + $0x20] sm:$0xff] %vm3860, %v3881
        %vm3887 = vcmask 138240
        %3888 = vst.msk [vmem:[#allocation3 + $0x28] sm:$0xff] %vm3887, %v3881
        %3889 = vst.msk [vmem:[#allocation3 + $0x50] sm:$0xff] %vm3860, %v3883
        %3890 = vst.msk [vmem:[#allocation3 + $0x58] sm:$0xff] %vm3887, %v3883
        %v3891 = vld [vmem:[#allocation3] sm:$0xff]
        %v3892 = vld [vmem:[#allocation3 + $0x8] sm:$0xff]
        %v3893 = vld [vmem:[#allocation3 + $0x10] sm:$0xff]
        %v3894 = vld [vmem:[#allocation3 + $0x18] sm:$0xff]
        %v3895 = vld [vmem:[#allocation3 + $0x20] sm:$0xff]
        %v3896 = vld [vmem:[#allocation3 + $0x30] sm:$0xff]
        %v3897 = vld [vmem:[#allocation3 + $0x38] sm:$0xff]
        %v3898 = vld [vmem:[#allocation3 + $0x40] sm:$0xff]
        %v3899 = vld [vmem:[#allocation3 + $0x48] sm:$0xff]
        %v3900 = vld [vmem:[#allocation3 + $0x50] sm:$0xff]
        %3911 = vrot.lane.b32.xlu0 %v3891, 33
        %v3912 = vpop.permute.xlu0 %3911
        %3913 = vrot.lane.b32.xlu0 %v3892, 33
        %v3914 = vpop.permute.xlu0 %3913
        %3915 = vrot.lane.b32.xlu0 %v3893, 33
        %v3916 = vpop.permute.xlu0 %3915
        %3917 = vrot.lane.b32.xlu0 %v3894, 33
        %v3918 = vpop.permute.xlu0 %3917
        %3919 = vrot.lane.b32.xlu0 %v3895, 33
        %v3920 = vpop.permute.xlu0 %3919
        %3921 = vrot.lane.b32.xlu0 %v3896, 33
        %v3922 = vpop.permute.xlu0 %3921
        %3923 = vrot.lane.b32.xlu0 %v3897, 33
        %v3924 = vpop.permute.xlu0 %3923
        %3925 = vrot.lane.b32.xlu0 %v3898, 33
        %v3926 = vpop.permute.xlu0 %3925
        %3927 = vrot.lane.b32.xlu0 %v3899, 33
        %v3928 = vpop.permute.xlu0 %3927
        %3929 = vrot.lane.b32.xlu0 %v3900, 33
        %v3930 = vpop.permute.xlu0 %3929
        %vm3931 = vcmask 269312
        %v3932 = vsel %vm3931, %v3912, %v3914
        %v3933 = vsel %vm3931, %v3914, %v3916
        %v3934 = vsel %vm3931, %v3916, %v3918
        %v3935 = vsel %vm3931, %v3918, %v3920
        %v3936 = vsel %vm3931, %v3922, %v3924
        %v3937 = vsel %vm3931, %v3924, %v3926
        %v3938 = vsel %vm3931, %v3926, %v3928
        %v3939 = vsel %vm3931, %v3928, %v3930
        %3948 = vst [vmem:[#allocation2] sm:$0xff] %v3932
        %3949 = vst [vmem:[#allocation2 + $0x8] sm:$0xff] %v3933
        %3950 = vst [vmem:[#allocation2 + $0x10] sm:$0xff] %v3934
        %3951 = vst [vmem:[#allocation2 + $0x18] sm:$0xff] %v3935
        %3952 = vst [vmem:[#allocation2 + $0x20] sm:$0xff] %v3936
        %3953 = vst [vmem:[#allocation2 + $0x28] sm:$0xff] %v3937
        %3954 = vst [vmem:[#allocation2 + $0x30] sm:$0xff] %v3938
        %3955 = vst [vmem:[#allocation2 + $0x38] sm:$0xff] %v3939
        %v3956 = vld [vmem:[#allocation3] sm:$0xff]
        %v3957 = vld [vmem:[#allocation3 + $0x8] sm:$0xff]
        %v3958 = vld [vmem:[#allocation3 + $0x10] sm:$0xff]
        %v3959 = vld [vmem:[#allocation3 + $0x18] sm:$0xff]
        %v3960 = vld [vmem:[#allocation3 + $0x20] sm:$0xff]
        %v3961 = vld [vmem:[#allocation3 + $0x30] sm:$0xff]
        %v3962 = vld [vmem:[#allocation3 + $0x38] sm:$0xff]
        %v3963 = vld [vmem:[#allocation3 + $0x40] sm:$0xff]
        %v3964 = vld [vmem:[#allocation3 + $0x48] sm:$0xff]
        %v3965 = vld [vmem:[#allocation3 + $0x50] sm:$0xff]
        %3976 = vrot.lane.b32.xlu0 %v3956, 32
        %v3977 = vpop.permute.xlu0 %3976
        %3978 = vrot.lane.b32.xlu0 %v3957, 32
        %v3979 = vpop.permute.xlu0 %3978
        %3980 = vrot.lane.b32.xlu0 %v3958, 32
        %v3981 = vpop.permute.xlu0 %3980
        %3982 = vrot.lane.b32.xlu0 %v3959, 32
        %v3983 = vpop.permute.xlu0 %3982
        %3984 = vrot.lane.b32.xlu0 %v3960, 32
        %v3985 = vpop.permute.xlu0 %3984
        %3986 = vrot.lane.b32.xlu0 %v3961, 32
        %v3987 = vpop.permute.xlu0 %3986
        %3988 = vrot.lane.b32.xlu0 %v3962, 32
        %v3989 = vpop.permute.xlu0 %3988
        %3990 = vrot.lane.b32.xlu0 %v3963, 32
        %v3991 = vpop.permute.xlu0 %3990
        %3992 = vrot.lane.b32.xlu0 %v3964, 32
        %v3993 = vpop.permute.xlu0 %3992
        %3994 = vrot.lane.b32.xlu0 %v3965, 32
        %v3995 = vpop.permute.xlu0 %3994
        %vm3996 = vcmask 261120
        %v3997 = vsel %vm3996, %v3977, %v3979
        %v3998 = vsel %vm3996, %v3979, %v3981
        %v3999 = vsel %vm3996, %v3981, %v3983
        %v4000 = vsel %vm3996, %v3983, %v3985
        %v4001 = vsel %vm3996, %v3987, %v3989
        %v4002 = vsel %vm3996, %v3989, %v3991
        %v4003 = vsel %vm3996, %v3991, %v3993
        %v4004 = vsel %vm3996, %v3993, %v3995
        %4013 = vst [vmem:[#allocation2 + $0x40] sm:$0xff] %v3997
        %4014 = vst [vmem:[#allocation2 + $0x48] sm:$0xff] %v3998
        %4015 = vst [vmem:[#allocation2 + $0x50] sm:$0xff] %v3999
        %4016 = vst [vmem:[#allocation2 + $0x58] sm:$0xff] %v4000
        %4017 = vst [vmem:[#allocation2 + $0x60] sm:$0xff] %v4001
        %4018 = vst [vmem:[#allocation2 + $0x68] sm:$0xff] %v4002
        %4019 = vst [vmem:[#allocation2 + $0x70] sm:$0xff] %v4003
        %4020 = vst [vmem:[#allocation2 + $0x78] sm:$0xff] %v4004
        %v4021 = vld [vmem:[#allocation3] sm:$0xff]
        %v4022 = vld [vmem:[#allocation3 + $0x8] sm:$0xff]
        %v4023 = vld [vmem:[#allocation3 + $0x10] sm:$0xff]
        %v4024 = vld [vmem:[#allocation3 + $0x18] sm:$0xff]
        %v4025 = vld [vmem:[#allocation3 + $0x20] sm:$0xff]
        %v4026 = vld [vmem:[#allocation3 + $0x30] sm:$0xff]
        %v4027 = vld [vmem:[#allocation3 + $0x38] sm:$0xff]
        %v4028 = vld [vmem:[#allocation3 + $0x40] sm:$0xff]
        %v4029 = vld [vmem:[#allocation3 + $0x48] sm:$0xff]
        %v4030 = vld [vmem:[#allocation3 + $0x50] sm:$0xff]
        %4041 = vrot.lane.b32.xlu0 %v4021, 31
        %v4042 = vpop.permute.xlu0 %4041
        %4043 = vrot.lane.b32.xlu0 %v4022, 31
        %v4044 = vpop.permute.xlu0 %4043
        %4045 = vrot.lane.b32.xlu0 %v4023, 31
        %v4046 = vpop.permute.xlu0 %4045
        %4047 = vrot.lane.b32.xlu0 %v4024, 31
        %v4048 = vpop.permute.xlu0 %4047
        %4049 = vrot.lane.b32.xlu0 %v4025, 31
        %v4050 = vpop.permute.xlu0 %4049
        %4051 = vrot.lane.b32.xlu0 %v4026, 31
        %v4052 = vpop.permute.xlu0 %4051
        %4053 = vrot.lane.b32.xlu0 %v4027, 31
        %v4054 = vpop.permute.xlu0 %4053
        %4055 = vrot.lane.b32.xlu0 %v4028, 31
        %v4056 = vpop.permute.xlu0 %4055
        %4057 = vrot.lane.b32.xlu0 %v4029, 31
        %v4058 = vpop.permute.xlu0 %4057
        %4059 = vrot.lane.b32.xlu0 %v4030, 31
        %v4060 = vpop.permute.xlu0 %4059
        %vm4061 = vcmask 252928
        %v4062 = vsel %vm4061, %v4042, %v4044
        %v4063 = vsel %vm4061, %v4044, %v4046
        %v4064 = vsel %vm4061, %v4046, %v4048
        %v4065 = vsel %vm4061, %v4048, %v4050
        %v4066 = vsel %vm4061, %v4052, %v4054
        %v4067 = vsel %vm4061, %v4054, %v4056
        %v4068 = vsel %vm4061, %v4056, %v4058
        %v4069 = vsel %vm4061, %v4058, %v4060
        %4078 = vst [vmem:[#allocation2 + $0x80] sm:$0xff] %v4062
        %4079 = vst [vmem:[#allocation2 + $0x88] sm:$0xff] %v4063
        %4080 = vst [vmem:[#allocation2 + $0x90] sm:$0xff] %v4064
        %4081 = vst [vmem:[#allocation2 + $0x98] sm:$0xff] %v4065
        %4082 = vst [vmem:[#allocation2 + $0xa0] sm:$0xff] %v4066
        %4083 = vst [vmem:[#allocation2 + $0xa8] sm:$0xff] %v4067
        %4084 = vst [vmem:[#allocation2 + $0xb0] sm:$0xff] %v4068
        %4085 = vst [vmem:[#allocation2 + $0xb8] sm:$0xff] %v4069
        %v4086 = vld [vmem:[#allocation3] sm:$0xff]
        %v4087 = vld [vmem:[#allocation3 + $0x8] sm:$0xff]
        %v4088 = vld [vmem:[#allocation3 + $0x10] sm:$0xff]
        %v4089 = vld [vmem:[#allocation3 + $0x18] sm:$0xff]
        %v4090 = vld [vmem:[#allocation3 + $0x20] sm:$0xff]
        %v4091 = vld [vmem:[#allocation3 + $0x30] sm:$0xff]
        %v4092 = vld [vmem:[#allocation3 + $0x38] sm:$0xff]
        %v4093 = vld [vmem:[#allocation3 + $0x40] sm:$0xff]
        %v4094 = vld [vmem:[#allocation3 + $0x48] sm:$0xff]
        %v4095 = vld [vmem:[#allocation3 + $0x50] sm:$0xff]
        %4106 = vrot.lane.b32.xlu0 %v4086, 1
        %v4107 = vpop.permute.xlu0 %4106
        %4108 = vrot.lane.b32.xlu0 %v4087, 1
        %v4109 = vpop.permute.xlu0 %4108
        %4110 = vrot.lane.b32.xlu0 %v4088, 1
        %v4111 = vpop.permute.xlu0 %4110
        %4112 = vrot.lane.b32.xlu0 %v4089, 1
        %v4113 = vpop.permute.xlu0 %4112
        %4114 = vrot.lane.b32.xlu0 %v4090, 1
        %v4115 = vpop.permute.xlu0 %4114
        %4116 = vrot.lane.b32.xlu0 %v4091, 1
        %v4117 = vpop.permute.xlu0 %4116
        %4118 = vrot.lane.b32.xlu0 %v4092, 1
        %v4119 = vpop.permute.xlu0 %4118
        %4120 = vrot.lane.b32.xlu0 %v4093, 1
        %v4121 = vpop.permute.xlu0 %4120
        %4122 = vrot.lane.b32.xlu0 %v4094, 1
        %v4123 = vpop.permute.xlu0 %4122
        %4124 = vrot.lane.b32.xlu0 %v4095, 1
        %v4125 = vpop.permute.xlu0 %4124
        %vm4126 = vcmask 7168
        %v4127 = vsel %vm4126, %v4107, %v4109
        %v4128 = vsel %vm4126, %v4109, %v4111
        %v4129 = vsel %vm4126, %v4111, %v4113
        %v4130 = vsel %vm4126, %v4113, %v4115
        %v4131 = vsel %vm4126, %v4117, %v4119
        %v4132 = vsel %vm4126, %v4119, %v4121
        %v4133 = vsel %vm4126, %v4121, %v4123
        %v4134 = vsel %vm4126, %v4123, %v4125
        %4143 = vst [vmem:[#allocation2 + $0xc0] sm:$0xff] %v4127
        %4144 = vst [vmem:[#allocation2 + $0xc8] sm:$0xff] %v4128
        %4145 = vst [vmem:[#allocation2 + $0xd0] sm:$0xff] %v4129
        %4146 = vst [vmem:[#allocation2 + $0xd8] sm:$0xff] %v4130
        %4147 = vst [vmem:[#allocation2 + $0xe0] sm:$0xff] %v4131
        %4148 = vst [vmem:[#allocation2 + $0xe8] sm:$0xff] %v4132
        %4149 = vst [vmem:[#allocation2 + $0xf0] sm:$0xff] %v4133
        %4150 = vst [vmem:[#allocation2 + $0xf8] sm:$0xff] %v4134
        %v4151 = vld [vmem:[#allocation3 + $0x8] sm:$0xff]
        %v4152 = vld [vmem:[#allocation3 + $0x10] sm:$0xff]
        %v4153 = vld [vmem:[#allocation3 + $0x18] sm:$0xff]
        %v4154 = vld [vmem:[#allocation3 + $0x20] sm:$0xff]
        %v4155 = vld [vmem:[#allocation3 + $0x38] sm:$0xff]
        %v4156 = vld [vmem:[#allocation3 + $0x40] sm:$0xff]
        %v4157 = vld [vmem:[#allocation3 + $0x48] sm:$0xff]
        %v4158 = vld [vmem:[#allocation3 + $0x50] sm:$0xff]
        %4159 = vst [vmem:[#allocation2 + $0x100] sm:$0xff] %v4151
        %4160 = vst [vmem:[#allocation2 + $0x108] sm:$0xff] %v4152
        %4161 = vst [vmem:[#allocation2 + $0x110] sm:$0xff] %v4153
        %4162 = vst [vmem:[#allocation2 + $0x118] sm:$0xff] %v4154
        %4163 = vst [vmem:[#allocation2 + $0x120] sm:$0xff] %v4155
        %4164 = vst [vmem:[#allocation2 + $0x128] sm:$0xff] %v4156
        %4165 = vst [vmem:[#allocation2 + $0x130] sm:$0xff] %v4157
        %4166 = vst [vmem:[#allocation2 + $0x138] sm:$0xff] %v4158
        %v4167 = vld [vmem:[#allocation3 + $0x8] sm:$0xff]
        %v4168 = vld [vmem:[#allocation3 + $0x10] sm:$0xff]
        %v4169 = vld [vmem:[#allocation3 + $0x18] sm:$0xff]
        %v4170 = vld [vmem:[#allocation3 + $0x20] sm:$0xff]
        %v4171 = vld [vmem:[#allocation3 + $0x28] sm:$0xff]
        %v4172 = vld [vmem:[#allocation3 + $0x38] sm:$0xff]
        %v4173 = vld [vmem:[#allocation3 + $0x40] sm:$0xff]
        %v4174 = vld [vmem:[#allocation3 + $0x48] sm:$0xff]
        %v4175 = vld [vmem:[#allocation3 + $0x50] sm:$0xff]
        %v4176 = vld [vmem:[#allocation3 + $0x58] sm:$0xff]
        %4187 = vrot.lane.b32.xlu0 %v4167, 127
        %v4188 = vpop.permute.xlu0 %4187
        %4189 = vrot.lane.b32.xlu0 %v4168, 127
        %v4190 = vpop.permute.xlu0 %4189
        %4191 = vrot.lane.b32.xlu0 %v4169, 127
        %v4192 = vpop.permute.xlu0 %4191
        %4193 = vrot.lane.b32.xlu0 %v4170, 127
        %v4194 = vpop.permute.xlu0 %4193
        %4195 = vrot.lane.b32.xlu0 %v4171, 127
        %v4196 = vpop.permute.xlu0 %4195
        %4197 = vrot.lane.b32.xlu0 %v4172, 127
        %v4198 = vpop.permute.xlu0 %4197
        %4199 = vrot.lane.b32.xlu0 %v4173, 127
        %v4200 = vpop.permute.xlu0 %4199
        %4201 = vrot.lane.b32.xlu0 %v4174, 127
        %v4202 = vpop.permute.xlu0 %4201
        %4203 = vrot.lane.b32.xlu0 %v4175, 127
        %v4204 = vpop.permute.xlu0 %4203
        %4205 = vrot.lane.b32.xlu0 %v4176, 127
        %v4206 = vpop.permute.xlu0 %4205
        %vm4207 = vcmask 1039360
        %v4208 = vsel %vm4207, %v4188, %v4190
        %v4209 = vsel %vm4207, %v4190, %v4192
        %v4210 = vsel %vm4207, %v4192, %v4194
        %v4211 = vsel %vm4207, %v4194, %v4196
        %v4212 = vsel %vm4207, %v4198, %v4200
        %v4213 = vsel %vm4207, %v4200, %v4202
        %v4214 = vsel %vm4207, %v4202, %v4204
        %v4215 = vsel %vm4207, %v4204, %v4206
        %4224 = vst [vmem:[#allocation2 + $0x140] sm:$0xff] %v4208
        %4225 = vst [vmem:[#allocation2 + $0x148] sm:$0xff] %v4209
        %4226 = vst [vmem:[#allocation2 + $0x150] sm:$0xff] %v4210
        %4227 = vst [vmem:[#allocation2 + $0x158] sm:$0xff] %v4211
        %4228 = vst [vmem:[#allocation2 + $0x160] sm:$0xff] %v4212
        %4229 = vst [vmem:[#allocation2 + $0x168] sm:$0xff] %v4213
        %4230 = vst [vmem:[#allocation2 + $0x170] sm:$0xff] %v4214
        %4231 = vst [vmem:[#allocation2 + $0x178] sm:$0xff] %v4215
        %v4232 = vld [vmem:[#allocation3 + $0x8] sm:$0xff]
        %v4233 = vld [vmem:[#allocation3 + $0x10] sm:$0xff]
        %v4234 = vld [vmem:[#allocation3 + $0x18] sm:$0xff]
        %v4235 = vld [vmem:[#allocation3 + $0x20] sm:$0xff]
        %v4236 = vld [vmem:[#allocation3 + $0x28] sm:$0xff]
        %v4237 = vld [vmem:[#allocation3 + $0x38] sm:$0xff]
        %v4238 = vld [vmem:[#allocation3 + $0x40] sm:$0xff]
        %v4239 = vld [vmem:[#allocation3 + $0x48] sm:$0xff]
        %v4240 = vld [vmem:[#allocation3 + $0x50] sm:$0xff]
        %v4241 = vld [vmem:[#allocation3 + $0x58] sm:$0xff]
        %4252 = vrot.lane.b32.xlu0 %v4232, 97
        %v4253 = vpop.permute.xlu0 %4252
        %4254 = vrot.lane.b32.xlu0 %v4233, 97
        %v4255 = vpop.permute.xlu0 %4254
        %4256 = vrot.lane.b32.xlu0 %v4234, 97
        %v4257 = vpop.permute.xlu0 %4256
        %4258 = vrot.lane.b32.xlu0 %v4235, 97
        %v4259 = vpop.permute.xlu0 %4258
        %4260 = vrot.lane.b32.xlu0 %v4236, 97
        %v4261 = vpop.permute.xlu0 %4260
        %4262 = vrot.lane.b32.xlu0 %v4237, 97
        %v4263 = vpop.permute.xlu0 %4262
        %4264 = vrot.lane.b32.xlu0 %v4238, 97
        %v4265 = vpop.permute.xlu0 %4264
        %4266 = vrot.lane.b32.xlu0 %v4239, 97
        %v4267 = vpop.permute.xlu0 %4266
        %4268 = vrot.lane.b32.xlu0 %v4240, 97
        %v4269 = vpop.permute.xlu0 %4268
        %4270 = vrot.lane.b32.xlu0 %v4241, 97
        %v4271 = vpop.permute.xlu0 %4270
        %vm4272 = vcmask 793600
        %v4273 = vsel %vm4272, %v4253, %v4255
        %v4274 = vsel %vm4272, %v4255, %v4257
        %v4275 = vsel %vm4272, %v4257, %v4259
        %v4276 = vsel %vm4272, %v4259, %v4261
        %v4277 = vsel %vm4272, %v4263, %v4265
        %v4278 = vsel %vm4272, %v4265, %v4267
        %v4279 = vsel %vm4272, %v4267, %v4269
        %v4280 = vsel %vm4272, %v4269, %v4271
        %4289 = vst [vmem:[#allocation2 + $0x180] sm:$0xff] %v4273
        %4290 = vst [vmem:[#allocation2 + $0x188] sm:$0xff] %v4274
        %4291 = vst [vmem:[#allocation2 + $0x190] sm:$0xff] %v4275
        %4292 = vst [vmem:[#allocation2 + $0x198] sm:$0xff] %v4276
        %4293 = vst [vmem:[#allocation2 + $0x1a0] sm:$0xff] %v4277
        %4294 = vst [vmem:[#allocation2 + $0x1a8] sm:$0xff] %v4278
        %4295 = vst [vmem:[#allocation2 + $0x1b0] sm:$0xff] %v4279
        %4296 = vst [vmem:[#allocation2 + $0x1b8] sm:$0xff] %v4280
        %v4297 = vld [vmem:[#allocation3 + $0x8] sm:$0xff]
        %v4298 = vld [vmem:[#allocation3 + $0x10] sm:$0xff]
        %v4299 = vld [vmem:[#allocation3 + $0x18] sm:$0xff]
        %v4300 = vld [vmem:[#allocation3 + $0x20] sm:$0xff]
        %v4301 = vld [vmem:[#allocation3 + $0x28] sm:$0xff]
        %v4302 = vld [vmem:[#allocation3 + $0x38] sm:$0xff]
        %v4303 = vld [vmem:[#allocation3 + $0x40] sm:$0xff]
        %v4304 = vld [vmem:[#allocation3 + $0x48] sm:$0xff]
        %v4305 = vld [vmem:[#allocation3 + $0x50] sm:$0xff]
        %v4306 = vld [vmem:[#allocation3 + $0x58] sm:$0xff]
        %4317 = vrot.lane.b32.xlu0 %v4297, 96
        %v4318 = vpop.permute.xlu0 %4317
        %4319 = vrot.lane.b32.xlu0 %v4298, 96
        %v4320 = vpop.permute.xlu0 %4319
        %4321 = vrot.lane.b32.xlu0 %v4299, 96
        %v4322 = vpop.permute.xlu0 %4321
        %4323 = vrot.lane.b32.xlu0 %v4300, 96
        %v4324 = vpop.permute.xlu0 %4323
        %4325 = vrot.lane.b32.xlu0 %v4301, 96
        %v4326 = vpop.permute.xlu0 %4325
        %4327 = vrot.lane.b32.xlu0 %v4302, 96
        %v4328 = vpop.permute.xlu0 %4327
        %4329 = vrot.lane.b32.xlu0 %v4303, 96
        %v4330 = vpop.permute.xlu0 %4329
        %4331 = vrot.lane.b32.xlu0 %v4304, 96
        %v4332 = vpop.permute.xlu0 %4331
        %4333 = vrot.lane.b32.xlu0 %v4305, 96
        %v4334 = vpop.permute.xlu0 %4333
        %4335 = vrot.lane.b32.xlu0 %v4306, 96
        %v4336 = vpop.permute.xlu0 %4335
        %vm4337 = vcmask 785408
        %v4338 = vsel %vm4337, %v4318, %v4320
        %v4339 = vsel %vm4337, %v4320, %v4322
        %v4340 = vsel %vm4337, %v4322, %v4324
        %v4341 = vsel %vm4337, %v4324, %v4326
        %v4342 = vsel %vm4337, %v4328, %v4330
        %v4343 = vsel %vm4337, %v4330, %v4332
        %v4344 = vsel %vm4337, %v4332, %v4334
        %v4345 = vsel %vm4337, %v4334, %v4336
        %4354 = vst [vmem:[#allocation2 + $0x1c0] sm:$0xff] %v4338
        %4355 = vst [vmem:[#allocation2 + $0x1c8] sm:$0xff] %v4339
        %4356 = vst [vmem:[#allocation2 + $0x1d0] sm:$0xff] %v4340
        %4357 = vst [vmem:[#allocation2 + $0x1d8] sm:$0xff] %v4341
        %4358 = vst [vmem:[#allocation2 + $0x1e0] sm:$0xff] %v4342
        %4359 = vst [vmem:[#allocation2 + $0x1e8] sm:$0xff] %v4343
        %4360 = vst [vmem:[#allocation2 + $0x1f0] sm:$0xff] %v4344
        %4361 = vst [vmem:[#allocation2 + $0x1f8] sm:$0xff] %v4345
        %v4362 = vld [vmem:[#allocation3 + $0x8] sm:$0xff]
        %v4363 = vld [vmem:[#allocation3 + $0x10] sm:$0xff]
        %v4364 = vld [vmem:[#allocation3 + $0x18] sm:$0xff]
        %v4365 = vld [vmem:[#allocation3 + $0x20] sm:$0xff]
        %v4366 = vld [vmem:[#allocation3 + $0x28] sm:$0xff]
        %v4367 = vld [vmem:[#allocation3 + $0x38] sm:$0xff]
        %v4368 = vld [vmem:[#allocation3 + $0x40] sm:$0xff]
        %v4369 = vld [vmem:[#allocation3 + $0x48] sm:$0xff]
        %v4370 = vld [vmem:[#allocation3 + $0x50] sm:$0xff]
        %v4371 = vld [vmem:[#allocation3 + $0x58] sm:$0xff]
        %4382 = vrot.lane.b32.xlu0 %v4362, 95
        %v4383 = vpop.permute.xlu0 %4382
        %4384 = vrot.lane.b32.xlu0 %v4363, 95
        %v4385 = vpop.permute.xlu0 %4384
        %4386 = vrot.lane.b32.xlu0 %v4364, 95
        %v4387 = vpop.permute.xlu0 %4386
        %4388 = vrot.lane.b32.xlu0 %v4365, 95
        %v4389 = vpop.permute.xlu0 %4388
        %4390 = vrot.lane.b32.xlu0 %v4366, 95
        %v4391 = vpop.permute.xlu0 %4390
        %4392 = vrot.lane.b32.xlu0 %v4367, 95
        %v4393 = vpop.permute.xlu0 %4392
        %4394 = vrot.lane.b32.xlu0 %v4368, 95
        %v4395 = vpop.permute.xlu0 %4394
        %4396 = vrot.lane.b32.xlu0 %v4369, 95
        %v4397 = vpop.permute.xlu0 %4396
        %4398 = vrot.lane.b32.xlu0 %v4370, 95
        %v4399 = vpop.permute.xlu0 %4398
        %4400 = vrot.lane.b32.xlu0 %v4371, 95
        %v4401 = vpop.permute.xlu0 %4400
        %vm4402 = vcmask 777216
        %v4403 = vsel %vm4402, %v4383, %v4385
        %v4404 = vsel %vm4402, %v4385, %v4387
        %v4405 = vsel %vm4402, %v4387, %v4389
        %v4406 = vsel %vm4402, %v4389, %v4391
        %v4407 = vsel %vm4402, %v4393, %v4395
        %v4408 = vsel %vm4402, %v4395, %v4397
        %v4409 = vsel %vm4402, %v4397, %v4399
        %v4410 = vsel %vm4402, %v4399, %v4401
        %4419 = vst [vmem:[#allocation2 + $0x200] sm:$0xff] %v4403
        %4420 = vst [vmem:[#allocation2 + $0x208] sm:$0xff] %v4404
        %4421 = vst [vmem:[#allocation2 + $0x210] sm:$0xff] %v4405
        %4422 = vst [vmem:[#allocation2 + $0x218] sm:$0xff] %v4406
        %4423 = vst [vmem:[#allocation2 + $0x220] sm:$0xff] %v4407
        %4424 = vst [vmem:[#allocation2 + $0x228] sm:$0xff] %v4408
        %4425 = vst [vmem:[#allocation2 + $0x230] sm:$0xff] %v4409
        %4426 = vst [vmem:[#allocation2 + $0x238] sm:$0xff] %v4410
        %v4427 = vld [vmem:[#allocation7] sm:$0xff]
        %v4428 = vld [vmem:[#allocation7 + $0x8] sm:$0xff]
        %v4429 = vld [vmem:[#allocation7 + $0x10] sm:$0xff]
        %v4430 = vld [vmem:[#allocation7 + $0x18] sm:$0xff]
        %v4431 = vld [vmem:[%s4] sm:$0xff]
        %v4432 = vld [vmem:[%s4 + $0x8] sm:$0xff]
        %v4433 = vld [vmem:[#allocation2] sm:$0xff]
        %v4434 = vld [vmem:[#allocation2 + $0x8] sm:$0xff]
        %v4435 = vld [vmem:[#allocation2 + $0x10] sm:$0xff]
        %v4436 = vld [vmem:[#allocation2 + $0x18] sm:$0xff]
        %v4437 = vld [vmem:[#allocation2 + $0x20] sm:$0xff]
        %v4438 = vld [vmem:[#allocation2 + $0x28] sm:$0xff]
        %v4439 = vld [vmem:[#allocation2 + $0x30] sm:$0xff]
        %v4440 = vld [vmem:[#allocation2 + $0x38] sm:$0xff]
        %v4441 = vld [vmem:[#allocation2 + $0x40] sm:$0xff]
        %v4442 = vld [vmem:[#allocation2 + $0x48] sm:$0xff]
        %v4443 = vld [vmem:[#allocation2 + $0x50] sm:$0xff]
        %v4444 = vld [vmem:[#allocation2 + $0x58] sm:$0xff]
        %v4445 = vld [vmem:[#allocation2 + $0x60] sm:$0xff]
        %v4446 = vld [vmem:[#allocation2 + $0x68] sm:$0xff]
        %v4447 = vld [vmem:[#allocation2 + $0x70] sm:$0xff]
        %v4448 = vld [vmem:[#allocation2 + $0x78] sm:$0xff]
        %v4449 = vld [vmem:[#allocation2 + $0x80] sm:$0xff]
        %v4450 = vld [vmem:[#allocation2 + $0x88] sm:$0xff]
        %v4451 = vld [vmem:[#allocation2 + $0x90] sm:$0xff]
        %v4452 = vld [vmem:[#allocation2 + $0x98] sm:$0xff]
        %v4453 = vld [vmem:[#allocation2 + $0xa0] sm:$0xff]
        %v4454 = vld [vmem:[#allocation2 + $0xa8] sm:$0xff]
        %v4455 = vld [vmem:[#allocation2 + $0xb0] sm:$0xff]
        %v4456 = vld [vmem:[#allocation2 + $0xb8] sm:$0xff]
        %v4457 = vld [vmem:[#allocation2 + $0xc0] sm:$0xff]
        %v4458 = vld [vmem:[#allocation2 + $0xc8] sm:$0xff]
        %v4459 = vld [vmem:[#allocation2 + $0xd0] sm:$0xff]
        %v4460 = vld [vmem:[#allocation2 + $0xd8] sm:$0xff]
        %v4461 = vld [vmem:[#allocation2 + $0xe0] sm:$0xff]
        %v4462 = vld [vmem:[#allocation2 + $0xe8] sm:$0xff]
        %v4463 = vld [vmem:[#allocation2 + $0xf0] sm:$0xff]
        %v4464 = vld [vmem:[#allocation2 + $0xf8] sm:$0xff]
        %v4465 = vld [vmem:[#allocation2 + $0x100] sm:$0xff]
        %v4466 = vld [vmem:[#allocation2 + $0x108] sm:$0xff]
        %v4467 = vld [vmem:[#allocation2 + $0x110] sm:$0xff]
        %v4468 = vld [vmem:[#allocation2 + $0x118] sm:$0xff]
        %v4469 = vld [vmem:[#allocation2 + $0x120] sm:$0xff]
        %v4470 = vld [vmem:[#allocation2 + $0x128] sm:$0xff]
        %v4471 = vld [vmem:[#allocation2 + $0x130] sm:$0xff]
        %v4472 = vld [vmem:[#allocation2 + $0x138] sm:$0xff]
        %v4473 = vld [vmem:[#allocation2 + $0x140] sm:$0xff]
        %v4474 = vld [vmem:[#allocation2 + $0x148] sm:$0xff]
        %v4475 = vld [vmem:[#allocation2 + $0x150] sm:$0xff]
        %v4476 = vld [vmem:[#allocation2 + $0x158] sm:$0xff]
        %v4477 = vld [vmem:[#allocation2 + $0x160] sm:$0xff]
        %v4478 = vld [vmem:[#allocation2 + $0x168] sm:$0xff]
        %v4479 = vld [vmem:[#allocation2 + $0x170] sm:$0xff]
        %v4480 = vld [vmem:[#allocation2 + $0x178] sm:$0xff]
        %v4481 = vld [vmem:[#allocation2 + $0x180] sm:$0xff]
        %v4482 = vld [vmem:[#allocation2 + $0x188] sm:$0xff]
        %v4483 = vld [vmem:[#allocation2 + $0x190] sm:$0xff]
        %v4484 = vld [vmem:[#allocation2 + $0x198] sm:$0xff]
        %v4485 = vld [vmem:[#allocation2 + $0x1a0] sm:$0xff]
        %v4486 = vld [vmem:[#allocation2 + $0x1a8] sm:$0xff]
        %v4487 = vld [vmem:[#allocation2 + $0x1b0] sm:$0xff]
        %v4488 = vld [vmem:[#allocation2 + $0x1b8] sm:$0xff]
        %v4489 = vld [vmem:[#allocation2 + $0x1c0] sm:$0xff]
        %v4490 = vld [vmem:[#allocation2 + $0x1c8] sm:$0xff]
        %v4491 = vld [vmem:[#allocation2 + $0x1d0] sm:$0xff]
        %v4492 = vld [vmem:[#allocation2 + $0x1d8] sm:$0xff]
        %v4493 = vld [vmem:[#allocation2 + $0x1e0] sm:$0xff]
        %v4494 = vld [vmem:[#allocation2 + $0x1e8] sm:$0xff]
        %v4495 = vld [vmem:[#allocation2 + $0x1f0] sm:$0xff]
        %v4496 = vld [vmem:[#allocation2 + $0x1f8] sm:$0xff]
        %v4497 = vld [vmem:[#allocation2 + $0x200] sm:$0xff]
        %v4498 = vld [vmem:[#allocation2 + $0x208] sm:$0xff]
        %v4499 = vld [vmem:[#allocation2 + $0x210] sm:$0xff]
        %v4500 = vld [vmem:[#allocation2 + $0x218] sm:$0xff]
        %v4501 = vld [vmem:[#allocation2 + $0x220] sm:$0xff]
        %v4502 = vld [vmem:[#allocation2 + $0x228] sm:$0xff]
        %v4503 = vld [vmem:[#allocation2 + $0x230] sm:$0xff]
        %v4504 = vld [vmem:[#allocation2 + $0x238] sm:$0xff]
        %4506 = vset.pattern.permute.xlu0 0
        %4507 = vperm.xlu0 %4506, %v4431
        %v4508 = vpop.permute.xlu0 %4507
        %4511 = vset.pattern.permute.xlu0 0
        %4512 = vperm.xlu0 %4511, %v4432
        %v4513 = vpop.permute.xlu0 %4512
        %v4516 = vsel %vm1050, %v4428, 0
        %v4519 = vsel %vm1050, %v4430, 0
        %4521 = vmatprep.subr.mxu0 %v4434
        %4522 = vmatpush1.msra.mxu0 %v4433
        %4523 = vmatprep.subr.mxu0 %v4438
        %4524 = vmatpush1.msra.mxu0 %v4437
        %4525 = vmatprep.subr.mxu0 %v4442
        %4526 = vmatpush1.msra.mxu0 %v4441
        %4527 = vmatprep.subr.mxu0 %v4446
        %4528 = vmatpush1.msra.mxu0 %v4445
        %4529 = vmatprep.subr.mxu0 %v4450
        %4530 = vmatpush1.msra.mxu0 %v4449
        %4531 = vmatprep.subr.mxu0 %v4454
        %4532 = vmatpush1.msra.mxu0 %v4453
        %4533 = vmatprep.subr.mxu0 %v4458
        %4534 = vmatpush1.msra.mxu0 %v4457
        %4535 = vmatprep.subr.mxu0 %v4462
        %4536 = vmatpush1.msra.mxu0 %v4461
        %4537 = vmatprep.subr.mxu0 %v4466
        %4538 = vmatpush1.msra.mxu0 %v4465
        %4539 = vmatprep.subr.mxu0 %v4470
        %4540 = vmatpush1.msra.mxu0 %v4469
        %4541 = vmatprep.subr.mxu0 %v4474
        %4542 = vmatpush1.msra.mxu0 %v4473
        %4543 = vmatprep.subr.mxu0 %v4478
        %4544 = vmatpush1.msra.mxu0 %v4477
        %4545 = vmatprep.subr.mxu0 %v4482
        %4546 = vmatpush1.msra.mxu0 %v4481
        %4547 = vmatprep.subr.mxu0 %v4486
        %4548 = vmatpush1.msra.mxu0 %v4485
        %4549 = vmatprep.subr.mxu0 %v4490
        %4550 = vmatpush1.msra.mxu0 %v4489
        %4551 = vmatprep.subr.mxu0 %v4494
        %4552 = vmatpush1.msra.mxu0 %v4493
        %4553 = vmatprep.subr.mxu0 %v4498
        %4554 = vmatpush1.msra.mxu0 %v4497
        %4555 = vmatprep.subr.mxu0 %v4502
        %4556 = vmatpush1.msra.mxu0 %v4501
        %4557 = vmatprep.subr.mxu0 0.0
        %4558 = vmatpush1.msra.mxu0 0.0
        %4559 = vmatprep.subr.mxu0 0.0
        %4560 = vmatpush1.msra.mxu0 0.0
        %4561 = vmatprep.subr.mxu0 0.0
        %4562 = vmatpush1.msra.mxu0 0.0
        %4563 = vmatprep.subr.mxu0 0.0
        %4564 = vmatpush1.msra.mxu0 0.0
        %4565 = vmatprep.subr.mxu0 0.0
        %4566 = vmatpush1.msra.mxu0 0.0
        %4567 = vmatprep.subr.mxu0 0.0
        %4568 = vmatpush1.msra.mxu0 0.0
        %4569 = vmatprep.subr.mxu0 0.0
        %4570 = vmatpush1.msra.mxu0 0.0
        %4571 = vmatprep.subr.mxu0 0.0
        %4572 = vmatpush1.msra.mxu0 0.0
        %4573 = vmatprep.subr.mxu0 0.0
        %4574 = vmatpush1.msra.mxu0 0.0
        %4575 = vmatprep.subr.mxu0 0.0
        %4576 = vmatpush1.msra.mxu0 0.0
        %4577 = vmatprep.subr.mxu0 0.0
        %4578 = vmatpush1.msra.mxu0 0.0
        %4579 = vmatprep.subr.mxu0 0.0
        %4580 = vmatpush1.msra.mxu0 0.0
        %4581 = vmatprep.subr.mxu0 0.0
        %4582 = vmatpush1.msra.mxu0 0.0
        %4583 = vmatprep.subr.mxu0 0.0
        %4584 = vmatpush1.msra.mxu0 0.0
        %4585 = vmatprep.mubr.f32.mxu0 %v4516
        %4586 = vmatmul.mubr.f32.gmra.mrb[0].mxu0 %v4427
        %v4587 = vpop.f32.mrb[0].mxu0
        %v4588 = vadd.f32 %v4508, %v4587
        %v4589 = vpop.f32.mrb[0].mxu0
        %v4590 = vadd.f32 %v4508, %v4589
        %4591 = vmatprep.mubr.f32.mxu0 %v4519
        %4592 = vmatmul.mubr.f32.gmra.mrb[0].mxu0 %v4429
        %v4593 = vpop.f32.mrb[0].mxu0
        %v4594 = vadd.f32 %v4513, %v4593
        %v4595 = vpop.f32.mrb[0].mxu0
        %v4596 = vadd.f32 %v4513, %v4595
        %4597 = vdwg.mxu0
        %4598 = vmatprep.subr.mxu0 %v4436
        %4599 = vmatpush1.msra.mxu0 %v4435
        %4600 = vmatprep.subr.mxu0 %v4440
        %4601 = vmatpush1.msra.mxu0 %v4439
        %4602 = vmatprep.subr.mxu0 %v4444
        %4603 = vmatpush1.msra.mxu0 %v4443
        %4604 = vmatprep.subr.mxu0 %v4448
        %4605 = vmatpush1.msra.mxu0 %v4447
        %4606 = vmatprep.subr.mxu0 %v4452
        %4607 = vmatpush1.msra.mxu0 %v4451
        %4608 = vmatprep.subr.mxu0 %v4456
        %4609 = vmatpush1.msra.mxu0 %v4455
        %4610 = vmatprep.subr.mxu0 %v4460
        %4611 = vmatpush1.msra.mxu0 %v4459
        %4612 = vmatprep.subr.mxu0 %v4464
        %4613 = vmatpush1.msra.mxu0 %v4463
        %4614 = vmatprep.subr.mxu0 %v4468
        %4615 = vmatpush1.msra.mxu0 %v4467
        %4616 = vmatprep.subr.mxu0 %v4472
        %4617 = vmatpush1.msra.mxu0 %v4471
        %4618 = vmatprep.subr.mxu0 %v4476
        %4619 = vmatpush1.msra.mxu0 %v4475
        %4620 = vmatprep.subr.mxu0 %v4480
        %4621 = vmatpush1.msra.mxu0 %v4479
        %4622 = vmatprep.subr.mxu0 %v4484
        %4623 = vmatpush1.msra.mxu0 %v4483
        %4624 = vmatprep.subr.mxu0 %v4488
        %4625 = vmatpush1.msra.mxu0 %v4487
        %4626 = vmatprep.subr.mxu0 %v4492
        %4627 = vmatpush1.msra.mxu0 %v4491
        %4628 = vmatprep.subr.mxu0 %v4496
        %4629 = vmatpush1.msra.mxu0 %v4495
        %4630 = vmatprep.subr.mxu0 %v4500
        %4631 = vmatpush1.msra.mxu0 %v4499
        %4632 = vmatprep.subr.mxu0 %v4504
        %4633 = vmatpush1.msra.mxu0 %v4503
        %4634 = vmatprep.subr.mxu0 0.0
        %4635 = vmatpush1.msra.mxu0 0.0
        %4636 = vmatprep.subr.mxu0 0.0
        %4637 = vmatpush1.msra.mxu0 0.0
        %4638 = vmatprep.subr.mxu0 0.0
        %4639 = vmatpush1.msra.mxu0 0.0
        %4640 = vmatprep.subr.mxu0 0.0
        %4641 = vmatpush1.msra.mxu0 0.0
        %4642 = vmatprep.subr.mxu0 0.0
        %4643 = vmatpush1.msra.mxu0 0.0
        %4644 = vmatprep.subr.mxu0 0.0
        %4645 = vmatpush1.msra.mxu0 0.0
        %4646 = vmatprep.subr.mxu0 0.0
        %4647 = vmatpush1.msra.mxu0 0.0
        %4648 = vmatprep.subr.mxu0 0.0
        %4649 = vmatpush1.msra.mxu0 0.0
        %4650 = vmatprep.subr.mxu0 0.0
        %4651 = vmatpush1.msra.mxu0 0.0
        %4652 = vmatprep.subr.mxu0 0.0
        %4653 = vmatpush1.msra.mxu0 0.0
        %4654 = vmatprep.subr.mxu0 0.0
        %4655 = vmatpush1.msra.mxu0 0.0
        %4656 = vmatprep.subr.mxu0 0.0
        %4657 = vmatpush1.msra.mxu0 0.0
        %4658 = vmatprep.subr.mxu0 0.0
        %4659 = vmatpush1.msra.mxu0 0.0
        %4660 = vmatprep.subr.mxu0 0.0
        %4661 = vmatpush1.msra.mxu0 0.0
        %4662 = vmatprep.mubr.f32.mxu0 %v4516
        %4663 = vmatmul.mubr.f32.gmra.mrb[0].mxu0 %v4427
        %v4664 = vpop.f32.mrb[0].mxu0
        %v4665 = vadd.f32 %v4508, %v4664
        %v4666 = vpop.f32.mrb[0].mxu0
        %v4667 = vadd.f32 %v4508, %v4666
        %4668 = vmatprep.mubr.f32.mxu0 %v4519
        %4669 = vmatmul.mubr.f32.gmra.mrb[0].mxu0 %v4429
        %v4670 = vpop.f32.mrb[0].mxu0
        %v4671 = vadd.f32 %v4513, %v4670
        %v4672 = vpop.f32.mrb[0].mxu0
        %v4673 = vadd.f32 %v4513, %v4672
        %4674 = vdwg.mxu0
        %v4675 = vld [vmem:[%s277 + $0x10] sm:$0xff]
        %v4676 = vld [vmem:[%s277 + $0x18] sm:$0xff]
        %v4677 = vld [vmem:[%s277 + $0x20] sm:$0xff]
        %v4678 = vld [vmem:[%s277 + $0x28] sm:$0xff]
        %v4679 = vld [vmem:[%s277 + $0x30] sm:$0xff]
        %v4680 = vld [vmem:[%s277 + $0x58] sm:$0xff]
        %v4681 = vld [vmem:[%s277 + $0x60] sm:$0xff]
        %v4682 = vld [vmem:[%s277 + $0x68] sm:$0xff]
        %v4683 = vld [vmem:[%s277 + $0x70] sm:$0xff]
        %v4684 = vld [vmem:[%s277 + $0x78] sm:$0xff]
        %v4685 = vsub.f32 1.0, %v1366
        %v4686 = vsub.f32 1.0, %v1367
        %v4687 = vsub.f32 1.0, %v1368
        %v4688 = vsub.f32 1.0, %v1369
        %v4689 = vsub.f32 1.0, %v1370
        %v4690 = vsub.f32 1.0, %v1371
        %v4691 = vsub.f32 1.0, %v1372
        %v4692 = vsub.f32 1.0, %v1373
        %4701 = vrot.lane.b32.xlu0 %v4685, 8
        %v4702 = vpop.permute.xlu0 %4701
        %4703 = vrot.lane.b32.xlu0 %v4686, 8
        %v4704 = vpop.permute.xlu0 %4703
        %4705 = vrot.lane.b32.xlu0 %v4687, 8
        %v4706 = vpop.permute.xlu0 %4705
        %4707 = vrot.lane.b32.xlu0 %v4688, 8
        %v4708 = vpop.permute.xlu0 %4707
        %4709 = vrot.lane.b32.xlu0 %v4689, 8
        %v4710 = vpop.permute.xlu0 %4709
        %4711 = vrot.lane.b32.xlu0 %v4690, 8
        %v4712 = vpop.permute.xlu0 %4711
        %4713 = vrot.lane.b32.xlu0 %v4691, 8
        %v4714 = vpop.permute.xlu0 %4713
        %4715 = vrot.lane.b32.xlu0 %v4692, 8
        %v4716 = vpop.permute.xlu0 %4715
        %vm4717 = vcmask 64512
        %v4718 = vsel %vm4717, %v4702, %v4704
        %v4719 = vsel %vm4717, %v4704, %v4706
        %v4720 = vsel %vm4717, %v4706, %v4708
        %v4721 = vsel %vm4717, %v4710, %v4712
        %v4722 = vsel %vm4717, %v4712, %v4714
        %v4723 = vsel %vm4717, %v4714, %v4716
        %v4734 = vmul.f32 %v4675, %v4702
        %v4735 = vmul.f32 %v4676, %v4718
        %v4736 = vmul.f32 %v4677, %v4719
        %v4737 = vmul.f32 %v4678, %v4720
        %v4738 = vmul.f32 %v4679, %v4708
        %v4739 = vmul.f32 %v4680, %v4710
        %v4740 = vmul.f32 %v4681, %v4721
        %v4741 = vmul.f32 %v4682, %v4722
        %v4742 = vmul.f32 %v4683, %v4723
        %v4743 = vmul.f32 %v4684, %v4716
        %v4744 = vmul.f32 %v4588, %v1366
        %v4745 = vmul.f32 %v4590, %v1367
        %v4746 = vmul.f32 %v4665, %v1368
        %v4747 = vmul.f32 %v4667, %v1369
        %v4748 = vmul.f32 %v4594, %v1370
        %v4749 = vmul.f32 %v4596, %v1371
        %v4750 = vmul.f32 %v4671, %v1372
        %v4751 = vmul.f32 %v4673, %v1373
        %4760 = vrot.lane.b32.xlu0 %v4744, 8
        %v4761 = vpop.permute.xlu0 %4760
        %4762 = vrot.lane.b32.xlu0 %v4745, 8
        %v4763 = vpop.permute.xlu0 %4762
        %4764 = vrot.lane.b32.xlu0 %v4746, 8
        %v4765 = vpop.permute.xlu0 %4764
        %4766 = vrot.lane.b32.xlu0 %v4747, 8
        %v4767 = vpop.permute.xlu0 %4766
        %4768 = vrot.lane.b32.xlu0 %v4748, 8
        %v4769 = vpop.permute.xlu0 %4768
        %4770 = vrot.lane.b32.xlu0 %v4749, 8
        %v4771 = vpop.permute.xlu0 %4770
        %4772 = vrot.lane.b32.xlu0 %v4750, 8
        %v4773 = vpop.permute.xlu0 %4772
        %4774 = vrot.lane.b32.xlu0 %v4751, 8
        %v4775 = vpop.permute.xlu0 %4774
        %v4776 = vsel %vm4717, %v4761, %v4763
        %v4777 = vsel %vm4717, %v4763, %v4765
        %v4778 = vsel %vm4717, %v4765, %v4767
        %v4779 = vsel %vm4717, %v4769, %v4771
        %v4780 = vsel %vm4717, %v4771, %v4773
        %v4781 = vsel %vm4717, %v4773, %v4775
        %v4792 = vadd.f32 %v4734, %v4761
        %v4793 = vadd.f32 %v4735, %v4776
        %v4794 = vadd.f32 %v4736, %v4777
        %v4795 = vadd.f32 %v4737, %v4778
        %v4796 = vadd.f32 %v4738, %v4767
        %v4797 = vadd.f32 %v4739, %v4769
        %v4798 = vadd.f32 %v4740, %v4779
        %v4799 = vadd.f32 %v4741, %v4780
        %v4800 = vadd.f32 %v4742, %v4781
        %v4801 = vadd.f32 %v4743, %v4775
        %4812 = vrot.lane.b32.xlu0 %v4792, 120
        %v4813 = vpop.permute.xlu0 %4812
        %4814 = vrot.lane.b32.xlu0 %v4793, 120
        %v4815 = vpop.permute.xlu0 %4814
        %4816 = vrot.lane.b32.xlu0 %v4794, 120
        %v4817 = vpop.permute.xlu0 %4816
        %4818 = vrot.lane.b32.xlu0 %v4795, 120
        %v4819 = vpop.permute.xlu0 %4818
        %4820 = vrot.lane.b32.xlu0 %v4796, 120
        %v4821 = vpop.permute.xlu0 %4820
        %4822 = vrot.lane.b32.xlu0 %v4797, 120
        %v4823 = vpop.permute.xlu0 %4822
        %4824 = vrot.lane.b32.xlu0 %v4798, 120
        %v4825 = vpop.permute.xlu0 %4824
        %4826 = vrot.lane.b32.xlu0 %v4799, 120
        %v4827 = vpop.permute.xlu0 %4826
        %4828 = vrot.lane.b32.xlu0 %v4800, 120
        %v4829 = vpop.permute.xlu0 %4828
        %4830 = vrot.lane.b32.xlu0 %v4801, 120
        %v4831 = vpop.permute.xlu0 %4830
        %v4832 = vsel %vm669, %v4813, %v4815
        %v4833 = vsel %vm669, %v4815, %v4817
        %v4834 = vsel %vm669, %v4817, %v4819
        %v4835 = vsel %vm669, %v4819, %v4821
        %v4836 = vsel %vm669, %v4823, %v4825
        %v4837 = vsel %vm669, %v4825, %v4827
        %v4838 = vsel %vm669, %v4827, %v4829
        %v4839 = vsel %vm669, %v4829, %v4831
        %4848 = vst [vmem:[%s311] sm:$0xff] %v4832
        %4849 = vst [vmem:[%s311 + $0x8] sm:$0xff] %v4833
        %4850 = vst [vmem:[%s311 + $0x10] sm:$0xff] %v4834
        %4851 = vst [vmem:[%s311 + $0x18] sm:$0xff] %v4835
        %4852 = vst [vmem:[%s311 + $0x20] sm:$0xff] %v4836
        %4853 = vst [vmem:[%s311 + $0x28] sm:$0xff] %v4837
        %4854 = vst [vmem:[%s311 + $0x30] sm:$0xff] %v4838
        %4855 = vst [vmem:[%s311 + $0x38] sm:$0xff] %v4839
        %s4856 = sand.u32 %s185, 1
        %s4857 = scalar_lea.sflag [#allocation6], %s4856
        %s4858 = sand.u32 %s185, 1
        %s4859 = smul.addr %s4858, 64
        %s4860 = scalar_lea.vmem [#allocation9], %s4859
        // Predicated region
        $region57: #{tpu_custom_call.1} parent=47 // pred_check
          %p4861 = pneg %p195
        $region58: #{tpu_custom_call.1} parent=47 // pred_check_branch
          %4863 = sbr.rel (%p4861) target = $region60
        $region59: #{tpu_custom_call.1} parent=47 // pred_region
          %s4865 = ssub.s32 1024, 1024
          %4866 = vsyncadd %s4857, %s4865
          %s4867 = smul.addr %s25, 8
          %s4868 = smul.addr %s4867, 128
          %s4869 = scalar_lea.hbm %s7, %s4868
          %s4870 = sshll.u32 %s4860, 4
          %s4871 = int_to_ptr.vmem [resolvable:$true] %s4870
          %4876 = dma.vmem_to_hbm [thread:$0]  %s4871, 1024, %s4869, %s4857, 512, 512, 32
        $region60: #{tpu_custom_call.1} parent=47 // pred_fallthru
          _
      $region48: #{tpu_custom_call.1} parent=5 // pred_fallthru
        _
      %p4877 = scmp.le.s32.totalorder 2, %s20
      // Predicated region
      $region61: #{tpu_custom_call.1} parent=5 // pred_check
        %p4878 = pneg %p4877
      $region62: #{tpu_custom_call.1} parent=5 // pred_check_branch
        %4880 = sbr.rel (%p4878) target = $region64
      $region63: #{tpu_custom_call.1} parent=5 // pred_region
        %s4881 = ssub.s32 %s20, 2
        // Predicated region
        $region65: #{tpu_custom_call.1} parent=63 // pred_check
          %p4882 = pneg %p201
        $region66: #{tpu_custom_call.1} parent=63 // pred_check_branch
          %4884 = sbr.rel (%p4882) target = $region68
        $region67: #{tpu_custom_call.1} parent=63 // pred_region
          %s4885 = sand.u32 %s186, 1
          %s4886 = scalar_lea.sflag [#allocation6], %s4885
          %s4887 = sand.u32 %s186, 1
          %s4888 = smul.addr %s4887, 64
          %s4889 = scalar_lea.vmem [#allocation9], %s4888
          %4890 = dma.done %s4886, 1024
        $region68: #{tpu_custom_call.1} parent=63 // pred_fallthru
          _
      $region64: #{tpu_custom_call.1} parent=5 // pred_fallthru
        _
    $region6: #{tpu_custom_call.1} parent=1 // loop_footer
      %s24 = sadd.s32 1, %s20
    $region7: #{tpu_custom_call.1} parent=1 // loop_footer_branch
      %19 = sbr.rel target = $region3
    $region8: #{tpu_custom_call.1} parent=1 // loop_exit
      _
    %4891 = vsyncpa [#allocation5], 1
    %s4892 = scalar_lea.sflag [#allocation5], 1
    %4893 = vsyncpa %s4892, 1
    %4894 = vsyncpa [#allocation8], 1
    %4895 = vsyncpa [#allocation6], 1
    %s4896 = scalar_lea.sflag [#allocation6], 1
    %4897 = vsyncpa %s4896, 1

</llo_original>
